<compile_context>
chip_gen: v7x
topology: tpu7x:2x2x1
jax: 0.10.0
libtpu: 0.0.40
codegen_flags: <defaults>
</compile_context>

<pallas_src>
import functools

import jax
import jax.numpy as jnp
import numpy as np
from jax import lax
from jax.experimental import pallas as pl
from jax.experimental.pallas import tpu as pltpu


def _round_up(n, m):
    return ((n + m - 1) // m) * m


# ----------------------------------------------------------------------------
# Fused Pallas kernel: backbone(z), backbone(x) and the xcorr head for ONE sample.
# Every feature map is flattened (spatial positions on the lane axis, original row
# stride kept), so a conv/xcorr tap is a static lane shift of the same map.
# ----------------------------------------------------------------------------
def _siamfc_fused_kernel(zmap_ref, xmap_ref, w1_ref, b1_ref, w2_ref, b2_ref,
                         scale_ref, out_ref,
                         p1_scr, p2_scr, m1z_scr, zf_scr, m1x_scr, xf_scr,
                         *, Wz, Wx, zf_h, zf_w, W1z, W2z, W1x, W2x, Pw):
    f32 = jnp.float32

    def conv3x3_relu(src, w_ref, b_ref, stride, out_w, patch_scr, dst_scr):
        cin = src.shape[0]
        # Stage the 9 shifted slices as a (9*cin, out_w) patch matrix (sublane concat),
        # then contract in ONE MXU dot against the pre-flattened (cout, 9*cin) weight.
        for t in range(9):
            i, j = divmod(t, 3)
            s = i * stride + j                               # static tap shift
            patch_scr[t * cin:(t + 1) * cin, 0:out_w] = src[:, s:s + out_w]
        acc = jnp.dot(w_ref[...], patch_scr[:, 0:out_w],
                      preferred_element_type=f32)            # (cout, out_w) f32
        y = jnp.maximum(acc + b_ref[...], 0.0)               # bias + ReLU in f32
        dst_scr[:, 0:out_w] = y.astype(dst_scr.dtype)        # lane-dense store
        tail = dst_scr.shape[1] - out_w
        if tail:                                             # keep junk reads finite
            dst_scr[:, out_w:] = jnp.zeros((dst_scr.shape[0], tail), dst_scr.dtype)

    # ---- backbone(z): both conv+ReLU layers, intermediates stay in VMEM ----
    conv3x3_relu(zmap_ref[0], w1_ref, b1_ref, Wz, W1z, p1_scr, m1z_scr)
    conv3x3_relu(m1z_scr[...], w2_ref, b2_ref, Wz, W2z, p2_scr, zf_scr)

    # ---- backbone(x) ----
    conv3x3_relu(xmap_ref[0], w1_ref, b1_ref, Wx, W1x, p1_scr, m1x_scr)
    conv3x3_relu(m1x_scr[...], w2_ref, b2_ref, Wx, W2x, p2_scr, xf_scr)

    # ---- head: per-sample cross-correlation ----
    # out[p*Wx+q] = sum_{c,i,j} zf[c, i*Wz+j] * xf[c, (p+i)*Wx + (q+j)]
    # Per tap: lane-broadcast the (C,1) exemplar column and FMA on the VPU; reduce over
    # C once at the end.  (Keeps the MXU for the convs and avoids M=1/K=8 matmuls.)
    zf = zf_scr[...].astype(f32)                              # (C, W2z)
    xf = xf_scr[...].astype(f32)                              # (C, Xf_w)
    acc = jnp.zeros((zf.shape[0], Pw), f32)
    for i in range(zf_h):
        for j in range(zf_w):
            pos = i * Wz + j                                  # exemplar tap lane
            s = i * Wx + j                                    # search map shift
            acc = acc + zf[:, pos:pos + 1] * xf[:, s:s + Pw]
    out = jnp.sum(acc, axis=0, keepdims=True) * scale_ref[0]  # (1, Pw) f32
    out_ref[0, :, :] = out


# ----------------------------------------------------------------------------
# One-time parameter preparation (hoisted out of the forward pass).
# ----------------------------------------------------------------------------
def prepare_params(params):
    """Flatten weights to (Cout, 9*Cin) bf16 in (tap, cin) K-order matching the kernel's
    patch layout; bias -> (Cout, 1) f32; out_scale -> (1,) f32 SMEM scalar (traced, so
    it may be a learned parameter)."""
    def wflat(w):
        cout, cin, kh, kw = w.shape
        assert (kh, kw) == (3, 3)
        return jnp.transpose(w, (0, 2, 3, 1)).reshape(cout, kh * kw * cin).astype(jnp.bfloat16)

    return {
        "w1": wflat(params["w1"]),
        "b1": params["b1"].reshape(-1, 1).astype(jnp.float32),
        "w2": wflat(params["w2"]),
        "b2": params["b2"].reshape(-1, 1).astype(jnp.float32),
        "out_scale": jnp.asarray(params["out_scale"], jnp.float32).reshape(1),
    }


def net_forward(prepped, z, x):
    """Equivalent of Net.forward(z, x): head(backbone(z), backbone(x)) — one pallas_call."""
    B, Cin, Hz, Wz = z.shape
    Bx, Cinx, Hx, Wx = x.shape
    assert (Bx, Cinx) == (B, Cin)
    C1, K1 = prepped["w1"].shape
    C2, K2 = prepped["w2"].shape
    assert K1 == 9 * Cin and K2 == 9 * C1

    # Spatial sizes after two VALID 3x3 convs and the xcorr head.
    zf_h, zf_w = Hz - 4, Wz - 4
    xf_h, xf_w = Hx - 4, Wx - 4
    Ho, Wo = xf_h - zf_h + 1, xf_w - zf_w + 1

    # Lane sizing: each layer only computes the lane range its downstream VALID outputs
    # read (rounded up to 128), and zero-fills the tail its own junk columns may read.
    sz, sx = 2 * Wz + 2, 2 * Wx + 2                  # max 3x3 tap shift (z / x stride)
    sh = (zf_h - 1) * Wx + (zf_w - 1)                # max head tap shift
    zf_need = (zf_h - 1) * Wz + (zf_w - 1) + 1       # zf lanes the head reads
    out_need = (Ho - 1) * Wx + (Wo - 1) + 1          # head lanes the caller reads

    W2z = _round_up(zf_need, 128)                    # conv2(z) computed width
    W1z = _round_up(zf_need + sz, 128)               # conv1(z) computed width
    M1z_w = _round_up(W2z + sz, 128)                 # conv1(z) scratch width
    Zin_w = _round_up(max(W1z + sz, Hz * Wz), 128)   # padded raw z map width

    Pw = _round_up(Ho * Wx, 128)                     # head computed width (lane-dense)
    W2x = _round_up(out_need + sh, 128)              # conv2(x) computed width
    W1x = _round_up(out_need + sh + sx, 128)         # conv1(x) computed width
    Xf_w = _round_up(Pw + sh, 128)                   # xf scratch width
    M1x_w = _round_up(W2x + sx, 128)                 # conv1(x) scratch width
    Xin_w = _round_up(max(W1x + sx, Hx * Wx), 128)   # padded raw x map width

    Wpatch = max(W1z, W2z, W1x, W2x)

    # Flatten + pad + bf16-cast the raw inputs (only remaining XLA glue).
    zmap = jnp.pad(z.reshape(B, Cin, Hz * Wz).astype(jnp.bfloat16),
                   ((0, 0), (0, 0), (0, Zin_w - Hz * Wz)))
    xmap = jnp.pad(x.reshape(B, Cin, Hx * Wx).astype(jnp.bfloat16),
                   ((0, 0), (0, 0), (0, Xin_w - Hx * Wx)))

    kern = functools.partial(
        _siamfc_fused_kernel, Wz=Wz, Wx=Wx, zf_h=zf_h, zf_w=zf_w,
        W1z=W1z, W2z=W2z, W1x=W1x, W2x=W2x, Pw=Pw)

    out = pl.pallas_call(
        kern,
        out_shape=jax.ShapeDtypeStruct((B, 1, Pw), jnp.float32),
        grid=(B,),
        in_specs=[
            pl.BlockSpec((1, Cin, Zin_w), lambda b: (b, 0, 0)),
            pl.BlockSpec((1, Cin, Xin_w), lambda b: (b, 0, 0)),
            pl.BlockSpec((C1, K1), lambda b: (0, 0)),
            pl.BlockSpec((C1, 1), lambda b: (0, 0)),
            pl.BlockSpec((C2, K2), lambda b: (0, 0)),
            pl.BlockSpec((C2, 1), lambda b: (0, 0)),
            pl.BlockSpec(memory_space=pltpu.MemorySpace.SMEM),     # out_scale scalar
        ],
        out_specs=pl.BlockSpec((1, 1, Pw), lambda b: (b, 0, 0)),
        scratch_shapes=[
            pltpu.VMEM((K1, Wpatch), jnp.bfloat16),   # conv1 patch staging
            pltpu.VMEM((K2, Wpatch), jnp.bfloat16),   # conv2 patch staging
            pltpu.VMEM((C1, M1z_w), jnp.bfloat16),    # conv1(z) map
            pltpu.VMEM((C2, W2z), jnp.bfloat16),      # zf map
            pltpu.VMEM((C1, M1x_w), jnp.bfloat16),    # conv1(x) map
            pltpu.VMEM((C2, Xf_w), jnp.bfloat16),     # xf map
        ],
        compiler_params=pltpu.CompilerParams(dimension_semantics=("parallel",)),
        # TODO(synk): at production SiamFC sizes add Cout/lane tiling grid axes and set
        # vmem_limit_bytes against v7x's 64 MiB VMEM.
    )(zmap, xmap, prepped["w1"], prepped["b1"], prepped["w2"], prepped["b2"],
      prepped["out_scale"])

    # Valid head outputs live at lane p*Wx + q (p < Ho, q < Wo); the rest is junk.
    return out[:, :, :Ho * Wx].reshape(B, 1, Ho, Wx)[:, :, :, :Wo]


# ----------------------------------------------------------------------------
# Pure-JAX reference (mirrors the bf16-operand / f32-accumulate numerics).
# ----------------------------------------------------------------------------
def _net_ref(params, z, x):
    bf, f32 = jnp.bfloat16, jnp.float32

    def conv_relu(t_bf, w, b):
        y = lax.conv_general_dilated(
            t_bf.astype(f32), w.astype(bf).astype(f32), (1, 1), "VALID",
            dimension_numbers=("NCHW", "OIHW", "NCHW"),
            preferred_element_type=f32)
        return jnp.maximum(y + b[None, :, None, None], 0.0).astype(bf)

    def backbone(t):
        t = t.astype(bf)
        t = conv_relu(t, params["w1"], params["b1"])
        t = conv_relu(t, params["w2"], params["b2"])
        return t

    zf, xf = backbone(z), backbone(x)
    B = zf.shape[0]
    outs = []
    for i in range(B):
        o = lax.conv_general_dilated(
            xf[i:i + 1].astype(f32), zf[i:i + 1].astype(f32), (1, 1), "VALID",
            dimension_numbers=("NCHW", "OIHW", "NCHW"),
            preferred_element_type=f32)
        outs.append(o)
    return jnp.concatenate(outs, axis=0) * jnp.float32(params["out_scale"])


# ----------------------------------------------------------------------------
if __name__ == "__main__":
    key = jax.random.PRNGKey(0)
    k1, k2, k3, k4, k5, k6 = jax.random.split(key, 6)

    # Deterministic synthetic parameters (backbone: 4 -> 8 -> 8 channels, 3x3 convs).
    params = {
        "w1": jax.random.normal(k1, (8, 4, 3, 3), jnp.float32) * 0.1,
        "b1": jax.random.normal(k2, (8,), jnp.float32) * 0.1,
        "w2": jax.random.normal(k3, (8, 8, 3, 3), jnp.float32) * 0.1,
        "b2": jax.random.normal(k4, (8,), jnp.float32) * 0.1,
        "out_scale": 0.001,
    }

    # Small SiamFC-style inputs: exemplar z and search region x (NCHW).
    z = jax.random.normal(k5, (2, 4, 12, 12), jnp.float32)
    x = jax.random.normal(k6, (2, 4, 20, 20), jnp.float32)

    prepped = prepare_params(params)                 # one-time param prep (hoisted)
    fwd = jax.jit(net_forward)

    out = jax.block_until_ready(fwd(prepped, z, x))  # (2, 1, 9, 9)
    ref = jax.block_until_ready(_net_ref(params, z, x))

    assert out.shape == (2, 1, 9, 9), out.shape
    np.testing.assert_allclose(np.asarray(out), np.asarray(ref), rtol=1e-2, atol=1e-4)

    print("KERNEL_OK")
</pallas_src>

<mosaic_0001>
module attributes {stable_mosaic.version = 11 : i64} {
  func.func @_siamfc_fused_kernel(%arg0: i32, %arg1: memref<1x4x256xbf16, #tpu.memory_space<vmem>>, %arg2: memref<1x4x512xbf16, #tpu.memory_space<vmem>>, %arg3: memref<8x36xbf16, #tpu.memory_space<vmem>>, %arg4: memref<8x1xf32, #tpu.memory_space<vmem>>, %arg5: memref<8x72xbf16, #tpu.memory_space<vmem>>, %arg6: memref<8x1xf32, #tpu.memory_space<vmem>>, %arg7: memref<1xf32, #tpu.memory_space<smem>>, %arg8: memref<1x1x256xf32, #tpu.memory_space<vmem>>, %arg9: memref<36x384xbf16, #tpu.memory_space<vmem>>, %arg10: memref<72x384xbf16, #tpu.memory_space<vmem>>, %arg11: memref<8x256xbf16, #tpu.memory_space<vmem>>, %arg12: memref<8x128xbf16, #tpu.memory_space<vmem>>, %arg13: memref<8x512xbf16, #tpu.memory_space<vmem>>, %arg14: memref<8x512xbf16, #tpu.memory_space<vmem>>) attributes {dimension_semantics = [#tpu.dimension_semantics<parallel>], iteration_bounds = array<i64: 2>, scalar_prefetch = 0 : i64, scratch_operands = 6 : i64, tpu.core_type = #tpu.core_type<tc>, window_params = [{transform_indices = @transform_0, window_bounds = array<i64: 1, 4, 256>}, {transform_indices = @transform_1, window_bounds = array<i64: 1, 4, 512>}, {pipeline_mode = #tpu.pipeline_mode<synchronous>, transform_indices = @transform_2, window_bounds = array<i64: 8, 36>}, {pipeline_mode = #tpu.pipeline_mode<synchronous>, transform_indices = @transform_3, window_bounds = array<i64: 8, 1>}, {pipeline_mode = #tpu.pipeline_mode<synchronous>, transform_indices = @transform_4, window_bounds = array<i64: 8, 72>}, {pipeline_mode = #tpu.pipeline_mode<synchronous>, transform_indices = @transform_5, window_bounds = array<i64: 8, 1>}, {transform_indices = @transform_6, window_bounds = array<i64: 1>}, {transform_indices = @transform_7, window_bounds = array<i64: 1, 1, 256>}]} {
    %c0 = arith.constant 0 : index
    %c0_0 = arith.constant 0 : index
    %c0_1 = arith.constant 0 : index
    %0 = vector.load %arg1[%c0, %c0_0, %c0_1] : memref<1x4x256xbf16, #tpu.memory_space<vmem>>, vector<1x4x256xbf16>
    %1 = vector.shape_cast %0 : vector<1x4x256xbf16> to vector<4x256xbf16>
    %2 = vector.extract_strided_slice %1 {offsets = [0, 0], sizes = [4, 128], strides = [1, 1]} : vector<4x256xbf16> to vector<4x128xbf16>
    %c0_2 = arith.constant 0 : index
    %c0_3 = arith.constant 0 : index
    %3 = vector.load %arg9[%c0_2, %c0_3] : memref<36x384xbf16, #tpu.memory_space<vmem>>, vector<4x128xbf16>
    tpu.vector_store %arg9[%c0_2, %c0_3], %2 {strides = array<i32>} : memref<36x384xbf16, #tpu.memory_space<vmem>>, vector<4x128xbf16>,
    %4 = vector.extract_strided_slice %1 {offsets = [0, 1], sizes = [4, 128], strides = [1, 1]} : vector<4x256xbf16> to vector<4x128xbf16>
    %c4 = arith.constant 4 : index
    %c0_4 = arith.constant 0 : index
    %5 = vector.load %arg9[%c4, %c0_4] : memref<36x384xbf16, #tpu.memory_space<vmem>>, vector<4x128xbf16>
    tpu.vector_store %arg9[%c4, %c0_4], %4 {strides = array<i32>} : memref<36x384xbf16, #tpu.memory_space<vmem>>, vector<4x128xbf16>,
    %6 = vector.extract_strided_slice %1 {offsets = [0, 2], sizes = [4, 128], strides = [1, 1]} : vector<4x256xbf16> to vector<4x128xbf16>
    %c8 = arith.constant 8 : index
    %c0_5 = arith.constant 0 : index
    %7 = vector.load %arg9[%c8, %c0_5] : memref<36x384xbf16, #tpu.memory_space<vmem>>, vector<4x128xbf16>
    tpu.vector_store %arg9[%c8, %c0_5], %6 {strides = array<i32>} : memref<36x384xbf16, #tpu.memory_space<vmem>>, vector<4x128xbf16>,
    %8 = vector.extract_strided_slice %1 {offsets = [0, 12], sizes = [4, 128], strides = [1, 1]} : vector<4x256xbf16> to vector<4x128xbf16>
    %c12 = arith.constant 12 : index
    %c0_6 = arith.constant 0 : index
    %9 = vector.load %arg9[%c12, %c0_6] : memref<36x384xbf16, #tpu.memory_space<vmem>>, vector<4x128xbf16>
    tpu.vector_store %arg9[%c12, %c0_6], %8 {strides = array<i32>} : memref<36x384xbf16, #tpu.memory_space<vmem>>, vector<4x128xbf16>,
    %10 = vector.extract_strided_slice %1 {offsets = [0, 13], sizes = [4, 128], strides = [1, 1]} : vector<4x256xbf16> to vector<4x128xbf16>
    %c16 = arith.constant 16 : index
    %c0_7 = arith.constant 0 : index
    %11 = vector.load %arg9[%c16, %c0_7] : memref<36x384xbf16, #tpu.memory_space<vmem>>, vector<4x128xbf16>
    tpu.vector_store %arg9[%c16, %c0_7], %10 {strides = array<i32>} : memref<36x384xbf16, #tpu.memory_space<vmem>>, vector<4x128xbf16>,
    %12 = vector.extract_strided_slice %1 {offsets = [0, 14], sizes = [4, 128], strides = [1, 1]} : vector<4x256xbf16> to vector<4x128xbf16>
    %c20 = arith.constant 20 : index
    %c0_8 = arith.constant 0 : index
    %13 = vector.load %arg9[%c20, %c0_8] : memref<36x384xbf16, #tpu.memory_space<vmem>>, vector<4x128xbf16>
    tpu.vector_store %arg9[%c20, %c0_8], %12 {strides = array<i32>} : memref<36x384xbf16, #tpu.memory_space<vmem>>, vector<4x128xbf16>,
    %14 = vector.extract_strided_slice %1 {offsets = [0, 24], sizes = [4, 128], strides = [1, 1]} : vector<4x256xbf16> to vector<4x128xbf16>
    %c24 = arith.constant 24 : index
    %c0_9 = arith.constant 0 : index
    %15 = vector.load %arg9[%c24, %c0_9] : memref<36x384xbf16, #tpu.memory_space<vmem>>, vector<4x128xbf16>
    tpu.vector_store %arg9[%c24, %c0_9], %14 {strides = array<i32>} : memref<36x384xbf16, #tpu.memory_space<vmem>>, vector<4x128xbf16>,
    %16 = vector.extract_strided_slice %1 {offsets = [0, 25], sizes = [4, 128], strides = [1, 1]} : vector<4x256xbf16> to vector<4x128xbf16>
    %c28 = arith.constant 28 : index
    %c0_10 = arith.constant 0 : index
    %17 = vector.load %arg9[%c28, %c0_10] : memref<36x384xbf16, #tpu.memory_space<vmem>>, vector<4x128xbf16>
    tpu.vector_store %arg9[%c28, %c0_10], %16 {strides = array<i32>} : memref<36x384xbf16, #tpu.memory_space<vmem>>, vector<4x128xbf16>,
    %18 = vector.extract_strided_slice %1 {offsets = [0, 26], sizes = [4, 128], strides = [1, 1]} : vector<4x256xbf16> to vector<4x128xbf16>
    %c32 = arith.constant 32 : index
    %c0_11 = arith.constant 0 : index
    %19 = vector.load %arg9[%c32, %c0_11] : memref<36x384xbf16, #tpu.memory_space<vmem>>, vector<4x128xbf16>
    tpu.vector_store %arg9[%c32, %c0_11], %18 {strides = array<i32>} : memref<36x384xbf16, #tpu.memory_space<vmem>>, vector<4x128xbf16>,
    %c0_12 = arith.constant 0 : index
    %c0_13 = arith.constant 0 : index
    %20 = vector.load %arg3[%c0_12, %c0_13] : memref<8x36xbf16, #tpu.memory_space<vmem>>, vector<8x36xbf16>
    %c0_14 = arith.constant 0 : index
    %c0_15 = arith.constant 0 : index
    %21 = vector.load %arg9[%c0_14, %c0_15] : memref<36x384xbf16, #tpu.memory_space<vmem>>, vector<36x128xbf16>
    %cst = arith.constant dense<0.000000e+00> : vector<8x128xf32>
    %22 = tpu.matmul %20, %21, %cst {dimension_numbers = #tpu.dot_dimension_numbers<[1], [0], [0], [1], [0, 0, 1, 1], [], []>} : vector<8x36xbf16>, vector<36x128xbf16>, vector<8x128xf32> -> vector<8x128xf32>
    %c0_16 = arith.constant 0 : index
    %c0_17 = arith.constant 0 : index
    %23 = vector.load %arg4[%c0_16, %c0_17] : memref<8x1xf32, #tpu.memory_space<vmem>>, vector<8x1xf32>
    %24 = vector.broadcast %23 : vector<8x1xf32> to vector<8x128xf32>
    %25 = arith.addf %22, %24 : vector<8x128xf32>
    %cst_18 = arith.constant 0.000000e+00 : f32
    %26 = vector.broadcast %cst_18 : f32 to vector<8x128xf32>
    %27 = arith.maximumf %25, %26 : vector<8x128xf32>
    %28 = arith.truncf %27 : vector<8x128xf32> to vector<8x128xbf16>
    %c0_19 = arith.constant 0 : index
    %c0_20 = arith.constant 0 : index
    %29 = vector.load %arg11[%c0_19, %c0_20] : memref<8x256xbf16, #tpu.memory_space<vmem>>, vector<8x128xbf16>
    tpu.vector_store %arg11[%c0_19, %c0_20], %28 {strides = array<i32>} : memref<8x256xbf16, #tpu.memory_space<vmem>>, vector<8x128xbf16>,
    %cst_21 = arith.constant 0.000000e+00 : bf16
    %30 = vector.broadcast %cst_21 : bf16 to vector<8x128xbf16>
    %c0_22 = arith.constant 0 : index
    %c128 = arith.constant 128 : index
    %31 = vector.load %arg11[%c0_22, %c128] : memref<8x256xbf16, #tpu.memory_space<vmem>>, vector<8x128xbf16>
    tpu.vector_store %arg11[%c0_22, %c128], %30 {strides = array<i32>} : memref<8x256xbf16, #tpu.memory_space<vmem>>, vector<8x128xbf16>,
    %c0_23 = arith.constant 0 : index
    %c0_24 = arith.constant 0 : index
    %32 = vector.load %arg11[%c0_23, %c0_24] : memref<8x256xbf16, #tpu.memory_space<vmem>>, vector<8x256xbf16>
    %33 = vector.extract_strided_slice %32 {offsets = [0, 0], sizes = [8, 128], strides = [1, 1]} : vector<8x256xbf16> to vector<8x128xbf16>
    %c0_25 = arith.constant 0 : index
    %c0_26 = arith.constant 0 : index
    %34 = vector.load %arg10[%c0_25, %c0_26] : memref<72x384xbf16, #tpu.memory_space<vmem>>, vector<8x128xbf16>
    tpu.vector_store %arg10[%c0_25, %c0_26], %33 {strides = array<i32>} : memref<72x384xbf16, #tpu.memory_space<vmem>>, vector<8x128xbf16>,
    %35 = vector.extract_strided_slice %32 {offsets = [0, 1], sizes = [8, 128], strides = [1, 1]} : vector<8x256xbf16> to vector<8x128xbf16>
    %c8_27 = arith.constant 8 : index
    %c0_28 = arith.constant 0 : index
    %36 = vector.load %arg10[%c8_27, %c0_28] : memref<72x384xbf16, #tpu.memory_space<vmem>>, vector<8x128xbf16>
    tpu.vector_store %arg10[%c8_27, %c0_28], %35 {strides = array<i32>} : memref<72x384xbf16, #tpu.memory_space<vmem>>, vector<8x128xbf16>,
    %37 = vector.extract_strided_slice %32 {offsets = [0, 2], sizes = [8, 128], strides = [1, 1]} : vector<8x256xbf16> to vector<8x128xbf16>
    %c16_29 = arith.constant 16 : index
    %c0_30 = arith.constant 0 : index
    %38 = vector.load %arg10[%c16_29, %c0_30] : memref<72x384xbf16, #tpu.memory_space<vmem>>, vector<8x128xbf16>
    tpu.vector_store %arg10[%c16_29, %c0_30], %37 {strides = array<i32>} : memref<72x384xbf16, #tpu.memory_space<vmem>>, vector<8x128xbf16>,
    %39 = vector.extract_strided_slice %32 {offsets = [0, 12], sizes = [8, 128], strides = [1, 1]} : vector<8x256xbf16> to vector<8x128xbf16>
    %c24_31 = arith.constant 24 : index
    %c0_32 = arith.constant 0 : index
    %40 = vector.load %arg10[%c24_31, %c0_32] : memref<72x384xbf16, #tpu.memory_space<vmem>>, vector<8x128xbf16>
    tpu.vector_store %arg10[%c24_31, %c0_32], %39 {strides = array<i32>} : memref<72x384xbf16, #tpu.memory_space<vmem>>, vector<8x128xbf16>,
    %41 = vector.extract_strided_slice %32 {offsets = [0, 13], sizes = [8, 128], strides = [1, 1]} : vector<8x256xbf16> to vector<8x128xbf16>
    %c32_33 = arith.constant 32 : index
    %c0_34 = arith.constant 0 : index
    %42 = vector.load %arg10[%c32_33, %c0_34] : memref<72x384xbf16, #tpu.memory_space<vmem>>, vector<8x128xbf16>
    tpu.vector_store %arg10[%c32_33, %c0_34], %41 {strides = array<i32>} : memref<72x384xbf16, #tpu.memory_space<vmem>>, vector<8x128xbf16>,
    %43 = vector.extract_strided_slice %32 {offsets = [0, 14], sizes = [8, 128], strides = [1, 1]} : vector<8x256xbf16> to vector<8x128xbf16>
    %c40 = arith.constant 40 : index
    %c0_35 = arith.constant 0 : index
    %44 = vector.load %arg10[%c40, %c0_35] : memref<72x384xbf16, #tpu.memory_space<vmem>>, vector<8x128xbf16>
    tpu.vector_store %arg10[%c40, %c0_35], %43 {strides = array<i32>} : memref<72x384xbf16, #tpu.memory_space<vmem>>, vector<8x128xbf16>,
    %45 = vector.extract_strided_slice %32 {offsets = [0, 24], sizes = [8, 128], strides = [1, 1]} : vector<8x256xbf16> to vector<8x128xbf16>
    %c48 = arith.constant 48 : index
    %c0_36 = arith.constant 0 : index
    %46 = vector.load %arg10[%c48, %c0_36] : memref<72x384xbf16, #tpu.memory_space<vmem>>, vector<8x128xbf16>
    tpu.vector_store %arg10[%c48, %c0_36], %45 {strides = array<i32>} : memref<72x384xbf16, #tpu.memory_space<vmem>>, vector<8x128xbf16>,
    %47 = vector.extract_strided_slice %32 {offsets = [0, 25], sizes = [8, 128], strides = [1, 1]} : vector<8x256xbf16> to vector<8x128xbf16>
    %c56 = arith.constant 56 : index
    %c0_37 = arith.constant 0 : index
    %48 = vector.load %arg10[%c56, %c0_37] : memref<72x384xbf16, #tpu.memory_space<vmem>>, vector<8x128xbf16>
    tpu.vector_store %arg10[%c56, %c0_37], %47 {strides = array<i32>} : memref<72x384xbf16, #tpu.memory_space<vmem>>, vector<8x128xbf16>,
    %49 = vector.extract_strided_slice %32 {offsets = [0, 26], sizes = [8, 128], strides = [1, 1]} : vector<8x256xbf16> to vector<8x128xbf16>
    %c64 = arith.constant 64 : index
    %c0_38 = arith.constant 0 : index
    %50 = vector.load %arg10[%c64, %c0_38] : memref<72x384xbf16, #tpu.memory_space<vmem>>, vector<8x128xbf16>
    tpu.vector_store %arg10[%c64, %c0_38], %49 {strides = array<i32>} : memref<72x384xbf16, #tpu.memory_space<vmem>>, vector<8x128xbf16>,
    %c0_39 = arith.constant 0 : index
    %c0_40 = arith.constant 0 : index
    %51 = vector.load %arg5[%c0_39, %c0_40] : memref<8x72xbf16, #tpu.memory_space<vmem>>, vector<8x72xbf16>
    %c0_41 = arith.constant 0 : index
    %c0_42 = arith.constant 0 : index
    %52 = vector.load %arg10[%c0_41, %c0_42] : memref<72x384xbf16, #tpu.memory_space<vmem>>, vector<72x128xbf16>
    %cst_43 = arith.constant dense<0.000000e+00> : vector<8x128xf32>
    %53 = tpu.matmul %51, %52, %cst_43 {dimension_numbers = #tpu.dot_dimension_numbers<[1], [0], [0], [1], [0, 0, 1, 1], [], []>} : vector<8x72xbf16>, vector<72x128xbf16>, vector<8x128xf32> -> vector<8x128xf32>
    %c0_44 = arith.constant 0 : index
    %c0_45 = arith.constant 0 : index
    %54 = vector.load %arg6[%c0_44, %c0_45] : memref<8x1xf32, #tpu.memory_space<vmem>>, vector<8x1xf32>
    %55 = vector.broadcast %54 : vector<8x1xf32> to vector<8x128xf32>
    %56 = arith.addf %53, %55 : vector<8x128xf32>
    %cst_46 = arith.constant 0.000000e+00 : f32
    %57 = vector.broadcast %cst_46 : f32 to vector<8x128xf32>
    %58 = arith.maximumf %56, %57 : vector<8x128xf32>
    %59 = arith.truncf %58 : vector<8x128xf32> to vector<8x128xbf16>
    %c0_47 = arith.constant 0 : index
    %c0_48 = arith.constant 0 : index
    %60 = vector.load %arg12[%c0_47, %c0_48] : memref<8x128xbf16, #tpu.memory_space<vmem>>, vector<8x128xbf16>
    tpu.vector_store %arg12[%c0_47, %c0_48], %59 {strides = array<i32>} : memref<8x128xbf16, #tpu.memory_space<vmem>>, vector<8x128xbf16>,
    %c0_49 = arith.constant 0 : index
    %c0_50 = arith.constant 0 : index
    %c0_51 = arith.constant 0 : index
    %61 = vector.load %arg2[%c0_49, %c0_50, %c0_51] : memref<1x4x512xbf16, #tpu.memory_space<vmem>>, vector<1x4x512xbf16>
    %62 = vector.shape_cast %61 : vector<1x4x512xbf16> to vector<4x512xbf16>
    %63 = vector.extract_strided_slice %62 {offsets = [0, 0], sizes = [4, 384], strides = [1, 1]} : vector<4x512xbf16> to vector<4x384xbf16>
    %c0_52 = arith.constant 0 : index
    %c0_53 = arith.constant 0 : index
    %64 = vector.load %arg9[%c0_52, %c0_53] : memref<36x384xbf16, #tpu.memory_space<vmem>>, vector<4x384xbf16>
    tpu.vector_store %arg9[%c0_52, %c0_53], %63 {strides = array<i32>} : memref<36x384xbf16, #tpu.memory_space<vmem>>, vector<4x384xbf16>,
    %65 = vector.extract_strided_slice %62 {offsets = [0, 1], sizes = [4, 384], strides = [1, 1]} : vector<4x512xbf16> to vector<4x384xbf16>
    %c4_54 = arith.constant 4 : index
    %c0_55 = arith.constant 0 : index
    %66 = vector.load %arg9[%c4_54, %c0_55] : memref<36x384xbf16, #tpu.memory_space<vmem>>, vector<4x384xbf16>
    tpu.vector_store %arg9[%c4_54, %c0_55], %65 {strides = array<i32>} : memref<36x384xbf16, #tpu.memory_space<vmem>>, vector<4x384xbf16>,
    %67 = vector.extract_strided_slice %62 {offsets = [0, 2], sizes = [4, 384], strides = [1, 1]} : vector<4x512xbf16> to vector<4x384xbf16>
    %c8_56 = arith.constant 8 : index
    %c0_57 = arith.constant 0 : index
    %68 = vector.load %arg9[%c8_56, %c0_57] : memref<36x384xbf16, #tpu.memory_space<vmem>>, vector<4x384xbf16>
    tpu.vector_store %arg9[%c8_56, %c0_57], %67 {strides = array<i32>} : memref<36x384xbf16, #tpu.memory_space<vmem>>, vector<4x384xbf16>,
    %69 = vector.extract_strided_slice %62 {offsets = [0, 20], sizes = [4, 384], strides = [1, 1]} : vector<4x512xbf16> to vector<4x384xbf16>
    %c12_58 = arith.constant 12 : index
    %c0_59 = arith.constant 0 : index
    %70 = vector.load %arg9[%c12_58, %c0_59] : memref<36x384xbf16, #tpu.memory_space<vmem>>, vector<4x384xbf16>
    tpu.vector_store %arg9[%c12_58, %c0_59], %69 {strides = array<i32>} : memref<36x384xbf16, #tpu.memory_space<vmem>>, vector<4x384xbf16>,
    %71 = vector.extract_strided_slice %62 {offsets = [0, 21], sizes = [4, 384], strides = [1, 1]} : vector<4x512xbf16> to vector<4x384xbf16>
    %c16_60 = arith.constant 16 : index
    %c0_61 = arith.constant 0 : index
    %72 = vector.load %arg9[%c16_60, %c0_61] : memref<36x384xbf16, #tpu.memory_space<vmem>>, vector<4x384xbf16>
    tpu.vector_store %arg9[%c16_60, %c0_61], %71 {strides = array<i32>} : memref<36x384xbf16, #tpu.memory_space<vmem>>, vector<4x384xbf16>,
    %73 = vector.extract_strided_slice %62 {offsets = [0, 22], sizes = [4, 384], strides = [1, 1]} : vector<4x512xbf16> to vector<4x384xbf16>
    %c20_62 = arith.constant 20 : index
    %c0_63 = arith.constant 0 : index
    %74 = vector.load %arg9[%c20_62, %c0_63] : memref<36x384xbf16, #tpu.memory_space<vmem>>, vector<4x384xbf16>
    tpu.vector_store %arg9[%c20_62, %c0_63], %73 {strides = array<i32>} : memref<36x384xbf16, #tpu.memory_space<vmem>>, vector<4x384xbf16>,
    %75 = vector.extract_strided_slice %62 {offsets = [0, 40], sizes = [4, 384], strides = [1, 1]} : vector<4x512xbf16> to vector<4x384xbf16>
    %c24_64 = arith.constant 24 : index
    %c0_65 = arith.constant 0 : index
    %76 = vector.load %arg9[%c24_64, %c0_65] : memref<36x384xbf16, #tpu.memory_space<vmem>>, vector<4x384xbf16>
    tpu.vector_store %arg9[%c24_64, %c0_65], %75 {strides = array<i32>} : memref<36x384xbf16, #tpu.memory_space<vmem>>, vector<4x384xbf16>,
    %77 = vector.extract_strided_slice %62 {offsets = [0, 41], sizes = [4, 384], strides = [1, 1]} : vector<4x512xbf16> to vector<4x384xbf16>
    %c28_66 = arith.constant 28 : index
    %c0_67 = arith.constant 0 : index
    %78 = vector.load %arg9[%c28_66, %c0_67] : memref<36x384xbf16, #tpu.memory_space<vmem>>, vector<4x384xbf16>
    tpu.vector_store %arg9[%c28_66, %c0_67], %77 {strides = array<i32>} : memref<36x384xbf16, #tpu.memory_space<vmem>>, vector<4x384xbf16>,
    %79 = vector.extract_strided_slice %62 {offsets = [0, 42], sizes = [4, 384], strides = [1, 1]} : vector<4x512xbf16> to vector<4x384xbf16>
    %c32_68 = arith.constant 32 : index
    %c0_69 = arith.constant 0 : index
    %80 = vector.load %arg9[%c32_68, %c0_69] : memref<36x384xbf16, #tpu.memory_space<vmem>>, vector<4x384xbf16>
    tpu.vector_store %arg9[%c32_68, %c0_69], %79 {strides = array<i32>} : memref<36x384xbf16, #tpu.memory_space<vmem>>, vector<4x384xbf16>,
    %c0_70 = arith.constant 0 : index
    %c0_71 = arith.constant 0 : index
    %81 = vector.load %arg3[%c0_70, %c0_71] : memref<8x36xbf16, #tpu.memory_space<vmem>>, vector<8x36xbf16>
    %c0_72 = arith.constant 0 : index
    %c0_73 = arith.constant 0 : index
    %82 = vector.load %arg9[%c0_72, %c0_73] : memref<36x384xbf16, #tpu.memory_space<vmem>>, vector<36x384xbf16>
    %cst_74 = arith.constant dense<0.000000e+00> : vector<8x384xf32>
    %83 = tpu.matmul %81, %82, %cst_74 {dimension_numbers = #tpu.dot_dimension_numbers<[1], [0], [0], [1], [0, 0, 1, 1], [], []>} : vector<8x36xbf16>, vector<36x384xbf16>, vector<8x384xf32> -> vector<8x384xf32>
    %c0_75 = arith.constant 0 : index
    %c0_76 = arith.constant 0 : index
    %84 = vector.load %arg4[%c0_75, %c0_76] : memref<8x1xf32, #tpu.memory_space<vmem>>, vector<8x1xf32>
    %85 = vector.broadcast %84 : vector<8x1xf32> to vector<8x384xf32>
    %86 = arith.addf %83, %85 : vector<8x384xf32>
    %cst_77 = arith.constant 0.000000e+00 : f32
    %87 = vector.broadcast %cst_77 : f32 to vector<8x384xf32>
    %88 = arith.maximumf %86, %87 : vector<8x384xf32>
    %89 = arith.truncf %88 : vector<8x384xf32> to vector<8x384xbf16>
    %c0_78 = arith.constant 0 : index
    %c0_79 = arith.constant 0 : index
    %90 = vector.load %arg13[%c0_78, %c0_79] : memref<8x512xbf16, #tpu.memory_space<vmem>>, vector<8x384xbf16>
    tpu.vector_store %arg13[%c0_78, %c0_79], %89 {strides = array<i32>} : memref<8x512xbf16, #tpu.memory_space<vmem>>, vector<8x384xbf16>,
    %cst_80 = arith.constant 0.000000e+00 : bf16
    %91 = vector.broadcast %cst_80 : bf16 to vector<8x128xbf16>
    %c0_81 = arith.constant 0 : index
    %c384 = arith.constant 384 : index
    %92 = vector.load %arg13[%c0_81, %c384] : memref<8x512xbf16, #tpu.memory_space<vmem>>, vector<8x128xbf16>
    tpu.vector_store %arg13[%c0_81, %c384], %91 {strides = array<i32>} : memref<8x512xbf16, #tpu.memory_space<vmem>>, vector<8x128xbf16>,
    %c0_82 = arith.constant 0 : index
    %c0_83 = arith.constant 0 : index
    %93 = vector.load %arg13[%c0_82, %c0_83] : memref<8x512xbf16, #tpu.memory_space<vmem>>, vector<8x512xbf16>
    %94 = vector.extract_strided_slice %93 {offsets = [0, 0], sizes = [8, 384], strides = [1, 1]} : vector<8x512xbf16> to vector<8x384xbf16>
    %c0_84 = arith.constant 0 : index
    %c0_85 = arith.constant 0 : index
    %95 = vector.load %arg10[%c0_84, %c0_85] : memref<72x384xbf16, #tpu.memory_space<vmem>>, vector<8x384xbf16>
    tpu.vector_store %arg10[%c0_84, %c0_85], %94 {strides = array<i32>} : memref<72x384xbf16, #tpu.memory_space<vmem>>, vector<8x384xbf16>,
    %96 = vector.extract_strided_slice %93 {offsets = [0, 1], sizes = [8, 384], strides = [1, 1]} : vector<8x512xbf16> to vector<8x384xbf16>
    %c8_86 = arith.constant 8 : index
    %c0_87 = arith.constant 0 : index
    %97 = vector.load %arg10[%c8_86, %c0_87] : memref<72x384xbf16, #tpu.memory_space<vmem>>, vector<8x384xbf16>
    tpu.vector_store %arg10[%c8_86, %c0_87], %96 {strides = array<i32>} : memref<72x384xbf16, #tpu.memory_space<vmem>>, vector<8x384xbf16>,
    %98 = vector.extract_strided_slice %93 {offsets = [0, 2], sizes = [8, 384], strides = [1, 1]} : vector<8x512xbf16> to vector<8x384xbf16>
    %c16_88 = arith.constant 16 : index
    %c0_89 = arith.constant 0 : index
    %99 = vector.load %arg10[%c16_88, %c0_89] : memref<72x384xbf16, #tpu.memory_space<vmem>>, vector<8x384xbf16>
    tpu.vector_store %arg10[%c16_88, %c0_89], %98 {strides = array<i32>} : memref<72x384xbf16, #tpu.memory_space<vmem>>, vector<8x384xbf16>,
    %100 = vector.extract_strided_slice %93 {offsets = [0, 20], sizes = [8, 384], strides = [1, 1]} : vector<8x512xbf16> to vector<8x384xbf16>
    %c24_90 = arith.constant 24 : index
    %c0_91 = arith.constant 0 : index
    %101 = vector.load %arg10[%c24_90, %c0_91] : memref<72x384xbf16, #tpu.memory_space<vmem>>, vector<8x384xbf16>
    tpu.vector_store %arg10[%c24_90, %c0_91], %100 {strides = array<i32>} : memref<72x384xbf16, #tpu.memory_space<vmem>>, vector<8x384xbf16>,
    %102 = vector.extract_strided_slice %93 {offsets = [0, 21], sizes = [8, 384], strides = [1, 1]} : vector<8x512xbf16> to vector<8x384xbf16>
    %c32_92 = arith.constant 32 : index
    %c0_93 = arith.constant 0 : index
    %103 = vector.load %arg10[%c32_92, %c0_93] : memref<72x384xbf16, #tpu.memory_space<vmem>>, vector<8x384xbf16>
    tpu.vector_store %arg10[%c32_92, %c0_93], %102 {strides = array<i32>} : memref<72x384xbf16, #tpu.memory_space<vmem>>, vector<8x384xbf16>,
    %104 = vector.extract_strided_slice %93 {offsets = [0, 22], sizes = [8, 384], strides = [1, 1]} : vector<8x512xbf16> to vector<8x384xbf16>
    %c40_94 = arith.constant 40 : index
    %c0_95 = arith.constant 0 : index
    %105 = vector.load %arg10[%c40_94, %c0_95] : memref<72x384xbf16, #tpu.memory_space<vmem>>, vector<8x384xbf16>
    tpu.vector_store %arg10[%c40_94, %c0_95], %104 {strides = array<i32>} : memref<72x384xbf16, #tpu.memory_space<vmem>>, vector<8x384xbf16>,
    %106 = vector.extract_strided_slice %93 {offsets = [0, 40], sizes = [8, 384], strides = [1, 1]} : vector<8x512xbf16> to vector<8x384xbf16>
    %c48_96 = arith.constant 48 : index
    %c0_97 = arith.constant 0 : index
    %107 = vector.load %arg10[%c48_96, %c0_97] : memref<72x384xbf16, #tpu.memory_space<vmem>>, vector<8x384xbf16>
    tpu.vector_store %arg10[%c48_96, %c0_97], %106 {strides = array<i32>} : memref<72x384xbf16, #tpu.memory_space<vmem>>, vector<8x384xbf16>,
    %108 = vector.extract_strided_slice %93 {offsets = [0, 41], sizes = [8, 384], strides = [1, 1]} : vector<8x512xbf16> to vector<8x384xbf16>
    %c56_98 = arith.constant 56 : index
    %c0_99 = arith.constant 0 : index
    %109 = vector.load %arg10[%c56_98, %c0_99] : memref<72x384xbf16, #tpu.memory_space<vmem>>, vector<8x384xbf16>
    tpu.vector_store %arg10[%c56_98, %c0_99], %108 {strides = array<i32>} : memref<72x384xbf16, #tpu.memory_space<vmem>>, vector<8x384xbf16>,
    %110 = vector.extract_strided_slice %93 {offsets = [0, 42], sizes = [8, 384], strides = [1, 1]} : vector<8x512xbf16> to vector<8x384xbf16>
    %c64_100 = arith.constant 64 : index
    %c0_101 = arith.constant 0 : index
    %111 = vector.load %arg10[%c64_100, %c0_101] : memref<72x384xbf16, #tpu.memory_space<vmem>>, vector<8x384xbf16>
    tpu.vector_store %arg10[%c64_100, %c0_101], %110 {strides = array<i32>} : memref<72x384xbf16, #tpu.memory_space<vmem>>, vector<8x384xbf16>,
    %c0_102 = arith.constant 0 : index
    %c0_103 = arith.constant 0 : index
    %112 = vector.load %arg5[%c0_102, %c0_103] : memref<8x72xbf16, #tpu.memory_space<vmem>>, vector<8x72xbf16>
    %c0_104 = arith.constant 0 : index
    %c0_105 = arith.constant 0 : index
    %113 = vector.load %arg10[%c0_104, %c0_105] : memref<72x384xbf16, #tpu.memory_space<vmem>>, vector<72x384xbf16>
    %cst_106 = arith.constant dense<0.000000e+00> : vector<8x384xf32>
    %114 = tpu.matmul %112, %113, %cst_106 {dimension_numbers = #tpu.dot_dimension_numbers<[1], [0], [0], [1], [0, 0, 1, 1], [], []>} : vector<8x72xbf16>, vector<72x384xbf16>, vector<8x384xf32> -> vector<8x384xf32>
    %c0_107 = arith.constant 0 : index
    %c0_108 = arith.constant 0 : index
    %115 = vector.load %arg6[%c0_107, %c0_108] : memref<8x1xf32, #tpu.memory_space<vmem>>, vector<8x1xf32>
    %116 = vector.broadcast %115 : vector<8x1xf32> to vector<8x384xf32>
    %117 = arith.addf %114, %116 : vector<8x384xf32>
    %cst_109 = arith.constant 0.000000e+00 : f32
    %118 = vector.broadcast %cst_109 : f32 to vector<8x384xf32>
    %119 = arith.maximumf %117, %118 : vector<8x384xf32>
    %120 = arith.truncf %119 : vector<8x384xf32> to vector<8x384xbf16>
    %c0_110 = arith.constant 0 : index
    %c0_111 = arith.constant 0 : index
    %121 = vector.load %arg14[%c0_110, %c0_111] : memref<8x512xbf16, #tpu.memory_space<vmem>>, vector<8x384xbf16>
    tpu.vector_store %arg14[%c0_110, %c0_111], %120 {strides = array<i32>} : memref<8x512xbf16, #tpu.memory_space<vmem>>, vector<8x384xbf16>,
    %cst_112 = arith.constant 0.000000e+00 : bf16
    %122 = vector.broadcast %cst_112 : bf16 to vector<8x128xbf16>
    %c0_113 = arith.constant 0 : index
    %c384_114 = arith.constant 384 : index
    %123 = vector.load %arg14[%c0_113, %c384_114] : memref<8x512xbf16, #tpu.memory_space<vmem>>, vector<8x128xbf16>
    tpu.vector_store %arg14[%c0_113, %c384_114], %122 {strides = array<i32>} : memref<8x512xbf16, #tpu.memory_space<vmem>>, vector<8x128xbf16>,
    %c0_115 = arith.constant 0 : index
    %c0_116 = arith.constant 0 : index
    %124 = vector.load %arg12[%c0_115, %c0_116] : memref<8x128xbf16, #tpu.memory_space<vmem>>, vector<8x128xbf16>
    %125 = arith.extf %124 : vector<8x128xbf16> to vector<8x128xf32>
    %c0_117 = arith.constant 0 : index
    %c0_118 = arith.constant 0 : index
    %126 = vector.load %arg14[%c0_117, %c0_118] : memref<8x512xbf16, #tpu.memory_space<vmem>>, vector<8x512xbf16>
    %127 = arith.extf %126 : vector<8x512xbf16> to vector<8x512xf32>
    %cst_119 = arith.constant 0.000000e+00 : f32
    %128 = vector.broadcast %cst_119 : f32 to vector<8x256xf32>
    %129 = vector.extract_strided_slice %125 {offsets = [0, 0], sizes = [8, 1], strides = [1, 1]} : vector<8x128xf32> to vector<8x1xf32>
    %130 = vector.extract_strided_slice %127 {offsets = [0, 0], sizes = [8, 256], strides = [1, 1]} : vector<8x512xf32> to vector<8x256xf32>
    %131 = vector.broadcast %129 : vector<8x1xf32> to vector<8x256xf32>
    %132 = arith.mulf %131, %130 : vector<8x256xf32>
    %133 = arith.addf %128, %132 : vector<8x256xf32>
    %134 = vector.extract_strided_slice %125 {offsets = [0, 1], sizes = [8, 1], strides = [1, 1]} : vector<8x128xf32> to vector<8x1xf32>
    %135 = vector.extract_strided_slice %127 {offsets = [0, 1], sizes = [8, 256], strides = [1, 1]} : vector<8x512xf32> to vector<8x256xf32>
    %136 = vector.broadcast %134 : vector<8x1xf32> to vector<8x256xf32>
    %137 = arith.mulf %136, %135 : vector<8x256xf32>
    %138 = arith.addf %133, %137 : vector<8x256xf32>
    %139 = vector.extract_strided_slice %125 {offsets = [0, 2], sizes = [8, 1], strides = [1, 1]} : vector<8x128xf32> to vector<8x1xf32>
    %140 = vector.extract_strided_slice %127 {offsets = [0, 2], sizes = [8, 256], strides = [1, 1]} : vector<8x512xf32> to vector<8x256xf32>
    %141 = vector.broadcast %139 : vector<8x1xf32> to vector<8x256xf32>
    %142 = arith.mulf %141, %140 : vector<8x256xf32>
    %143 = arith.addf %138, %142 : vector<8x256xf32>
    %144 = vector.extract_strided_slice %125 {offsets = [0, 3], sizes = [8, 1], strides = [1, 1]} : vector<8x128xf32> to vector<8x1xf32>
    %145 = vector.extract_strided_slice %127 {offsets = [0, 3], sizes = [8, 256], strides = [1, 1]} : vector<8x512xf32> to vector<8x256xf32>
    %146 = vector.broadcast %144 : vector<8x1xf32> to vector<8x256xf32>
    %147 = arith.mulf %146, %145 : vector<8x256xf32>
    %148 = arith.addf %143, %147 : vector<8x256xf32>
    %149 = vector.extract_strided_slice %125 {offsets = [0, 4], sizes = [8, 1], strides = [1, 1]} : vector<8x128xf32> to vector<8x1xf32>
    %150 = vector.extract_strided_slice %127 {offsets = [0, 4], sizes = [8, 256], strides = [1, 1]} : vector<8x512xf32> to vector<8x256xf32>
    %151 = vector.broadcast %149 : vector<8x1xf32> to vector<8x256xf32>
    %152 = arith.mulf %151, %150 : vector<8x256xf32>
    %153 = arith.addf %148, %152 : vector<8x256xf32>
    %154 = vector.extract_strided_slice %125 {offsets = [0, 5], sizes = [8, 1], strides = [1, 1]} : vector<8x128xf32> to vector<8x1xf32>
    %155 = vector.extract_strided_slice %127 {offsets = [0, 5], sizes = [8, 256], strides = [1, 1]} : vector<8x512xf32> to vector<8x256xf32>
    %156 = vector.broadcast %154 : vector<8x1xf32> to vector<8x256xf32>
    %157 = arith.mulf %156, %155 : vector<8x256xf32>
    %158 = arith.addf %153, %157 : vector<8x256xf32>
    %159 = vector.extract_strided_slice %125 {offsets = [0, 6], sizes = [8, 1], strides = [1, 1]} : vector<8x128xf32> to vector<8x1xf32>
    %160 = vector.extract_strided_slice %127 {offsets = [0, 6], sizes = [8, 256], strides = [1, 1]} : vector<8x512xf32> to vector<8x256xf32>
    %161 = vector.broadcast %159 : vector<8x1xf32> to vector<8x256xf32>
    %162 = arith.mulf %161, %160 : vector<8x256xf32>
    %163 = arith.addf %158, %162 : vector<8x256xf32>
    %164 = vector.extract_strided_slice %125 {offsets = [0, 7], sizes = [8, 1], strides = [1, 1]} : vector<8x128xf32> to vector<8x1xf32>
    %165 = vector.extract_strided_slice %127 {offsets = [0, 7], sizes = [8, 256], strides = [1, 1]} : vector<8x512xf32> to vector<8x256xf32>
    %166 = vector.broadcast %164 : vector<8x1xf32> to vector<8x256xf32>
    %167 = arith.mulf %166, %165 : vector<8x256xf32>
    %168 = arith.addf %163, %167 : vector<8x256xf32>
    %169 = vector.extract_strided_slice %125 {offsets = [0, 12], sizes = [8, 1], strides = [1, 1]} : vector<8x128xf32> to vector<8x1xf32>
    %170 = vector.extract_strided_slice %127 {offsets = [0, 20], sizes = [8, 256], strides = [1, 1]} : vector<8x512xf32> to vector<8x256xf32>
    %171 = vector.broadcast %169 : vector<8x1xf32> to vector<8x256xf32>
    %172 = arith.mulf %171, %170 : vector<8x256xf32>
    %173 = arith.addf %168, %172 : vector<8x256xf32>
    %174 = vector.extract_strided_slice %125 {offsets = [0, 13], sizes = [8, 1], strides = [1, 1]} : vector<8x128xf32> to vector<8x1xf32>
    %175 = vector.extract_strided_slice %127 {offsets = [0, 21], sizes = [8, 256], strides = [1, 1]} : vector<8x512xf32> to vector<8x256xf32>
    %176 = vector.broadcast %174 : vector<8x1xf32> to vector<8x256xf32>
    %177 = arith.mulf %176, %175 : vector<8x256xf32>
    %178 = arith.addf %173, %177 : vector<8x256xf32>
    %179 = vector.extract_strided_slice %125 {offsets = [0, 14], sizes = [8, 1], strides = [1, 1]} : vector<8x128xf32> to vector<8x1xf32>
    %180 = vector.extract_strided_slice %127 {offsets = [0, 22], sizes = [8, 256], strides = [1, 1]} : vector<8x512xf32> to vector<8x256xf32>
    %181 = vector.broadcast %179 : vector<8x1xf32> to vector<8x256xf32>
    %182 = arith.mulf %181, %180 : vector<8x256xf32>
    %183 = arith.addf %178, %182 : vector<8x256xf32>
    %184 = vector.extract_strided_slice %125 {offsets = [0, 15], sizes = [8, 1], strides = [1, 1]} : vector<8x128xf32> to vector<8x1xf32>
    %185 = vector.extract_strided_slice %127 {offsets = [0, 23], sizes = [8, 256], strides = [1, 1]} : vector<8x512xf32> to vector<8x256xf32>
    %186 = vector.broadcast %184 : vector<8x1xf32> to vector<8x256xf32>
    %187 = arith.mulf %186, %185 : vector<8x256xf32>
    %188 = arith.addf %183, %187 : vector<8x256xf32>
    %189 = vector.extract_strided_slice %125 {offsets = [0, 16], sizes = [8, 1], strides = [1, 1]} : vector<8x128xf32> to vector<8x1xf32>
    %190 = vector.extract_strided_slice %127 {offsets = [0, 24], sizes = [8, 256], strides = [1, 1]} : vector<8x512xf32> to vector<8x256xf32>
    %191 = vector.broadcast %189 : vector<8x1xf32> to vector<8x256xf32>
    %192 = arith.mulf %191, %190 : vector<8x256xf32>
    %193 = arith.addf %188, %192 : vector<8x256xf32>
    %194 = vector.extract_strided_slice %125 {offsets = [0, 17], sizes = [8, 1], strides = [1, 1]} : vector<8x128xf32> to vector<8x1xf32>
    %195 = vector.extract_strided_slice %127 {offsets = [0, 25], sizes = [8, 256], strides = [1, 1]} : vector<8x512xf32> to vector<8x256xf32>
    %196 = vector.broadcast %194 : vector<8x1xf32> to vector<8x256xf32>
    %197 = arith.mulf %196, %195 : vector<8x256xf32>
    %198 = arith.addf %193, %197 : vector<8x256xf32>
    %199 = vector.extract_strided_slice %125 {offsets = [0, 18], sizes = [8, 1], strides = [1, 1]} : vector<8x128xf32> to vector<8x1xf32>
    %200 = vector.extract_strided_slice %127 {offsets = [0, 26], sizes = [8, 256], strides = [1, 1]} : vector<8x512xf32> to vector<8x256xf32>
    %201 = vector.broadcast %199 : vector<8x1xf32> to vector<8x256xf32>
    %202 = arith.mulf %201, %200 : vector<8x256xf32>
    %203 = arith.addf %198, %202 : vector<8x256xf32>
    %204 = vector.extract_strided_slice %125 {offsets = [0, 19], sizes = [8, 1], strides = [1, 1]} : vector<8x128xf32> to vector<8x1xf32>
    %205 = vector.extract_strided_slice %127 {offsets = [0, 27], sizes = [8, 256], strides = [1, 1]} : vector<8x512xf32> to vector<8x256xf32>
    %206 = vector.broadcast %204 : vector<8x1xf32> to vector<8x256xf32>
    %207 = arith.mulf %206, %205 : vector<8x256xf32>
    %208 = arith.addf %203, %207 : vector<8x256xf32>
    %209 = vector.extract_strided_slice %125 {offsets = [0, 24], sizes = [8, 1], strides = [1, 1]} : vector<8x128xf32> to vector<8x1xf32>
    %210 = vector.extract_strided_slice %127 {offsets = [0, 40], sizes = [8, 256], strides = [1, 1]} : vector<8x512xf32> to vector<8x256xf32>
    %211 = vector.broadcast %209 : vector<8x1xf32> to vector<8x256xf32>
    %212 = arith.mulf %211, %210 : vector<8x256xf32>
    %213 = arith.addf %208, %212 : vector<8x256xf32>
    %214 = vector.extract_strided_slice %125 {offsets = [0, 25], sizes = [8, 1], strides = [1, 1]} : vector<8x128xf32> to vector<8x1xf32>
    %215 = vector.extract_strided_slice %127 {offsets = [0, 41], sizes = [8, 256], strides = [1, 1]} : vector<8x512xf32> to vector<8x256xf32>
    %216 = vector.broadcast %214 : vector<8x1xf32> to vector<8x256xf32>
    %217 = arith.mulf %216, %215 : vector<8x256xf32>
    %218 = arith.addf %213, %217 : vector<8x256xf32>
    %219 = vector.extract_strided_slice %125 {offsets = [0, 26], sizes = [8, 1], strides = [1, 1]} : vector<8x128xf32> to vector<8x1xf32>
    %220 = vector.extract_strided_slice %127 {offsets = [0, 42], sizes = [8, 256], strides = [1, 1]} : vector<8x512xf32> to vector<8x256xf32>
    %221 = vector.broadcast %219 : vector<8x1xf32> to vector<8x256xf32>
    %222 = arith.mulf %221, %220 : vector<8x256xf32>
    %223 = arith.addf %218, %222 : vector<8x256xf32>
    %224 = vector.extract_strided_slice %125 {offsets = [0, 27], sizes = [8, 1], strides = [1, 1]} : vector<8x128xf32> to vector<8x1xf32>
    %225 = vector.extract_strided_slice %127 {offsets = [0, 43], sizes = [8, 256], strides = [1, 1]} : vector<8x512xf32> to vector<8x256xf32>
    %226 = vector.broadcast %224 : vector<8x1xf32> to vector<8x256xf32>
    %227 = arith.mulf %226, %225 : vector<8x256xf32>
    %228 = arith.addf %223, %227 : vector<8x256xf32>
    %229 = vector.extract_strided_slice %125 {offsets = [0, 28], sizes = [8, 1], strides = [1, 1]} : vector<8x128xf32> to vector<8x1xf32>
    %230 = vector.extract_strided_slice %127 {offsets = [0, 44], sizes = [8, 256], strides = [1, 1]} : vector<8x512xf32> to vector<8x256xf32>
    %231 = vector.broadcast %229 : vector<8x1xf32> to vector<8x256xf32>
    %232 = arith.mulf %231, %230 : vector<8x256xf32>
    %233 = arith.addf %228, %232 : vector<8x256xf32>
    %234 = vector.extract_strided_slice %125 {offsets = [0, 29], sizes = [8, 1], strides = [1, 1]} : vector<8x128xf32> to vector<8x1xf32>
    %235 = vector.extract_strided_slice %127 {offsets = [0, 45], sizes = [8, 256], strides = [1, 1]} : vector<8x512xf32> to vector<8x256xf32>
    %236 = vector.broadcast %234 : vector<8x1xf32> to vector<8x256xf32>
    %237 = arith.mulf %236, %235 : vector<8x256xf32>
    %238 = arith.addf %233, %237 : vector<8x256xf32>
    %239 = vector.extract_strided_slice %125 {offsets = [0, 30], sizes = [8, 1], strides = [1, 1]} : vector<8x128xf32> to vector<8x1xf32>
    %240 = vector.extract_strided_slice %127 {offsets = [0, 46], sizes = [8, 256], strides = [1, 1]} : vector<8x512xf32> to vector<8x256xf32>
    %241 = vector.broadcast %239 : vector<8x1xf32> to vector<8x256xf32>
    %242 = arith.mulf %241, %240 : vector<8x256xf32>
    %243 = arith.addf %238, %242 : vector<8x256xf32>
    %244 = vector.extract_strided_slice %125 {offsets = [0, 31], sizes = [8, 1], strides = [1, 1]} : vector<8x128xf32> to vector<8x1xf32>
    %245 = vector.extract_strided_slice %127 {offsets = [0, 47], sizes = [8, 256], strides = [1, 1]} : vector<8x512xf32> to vector<8x256xf32>
    %246 = vector.broadcast %244 : vector<8x1xf32> to vector<8x256xf32>
    %247 = arith.mulf %246, %245 : vector<8x256xf32>
    %248 = arith.addf %243, %247 : vector<8x256xf32>
    %249 = vector.extract_strided_slice %125 {offsets = [0, 36], sizes = [8, 1], strides = [1, 1]} : vector<8x128xf32> to vector<8x1xf32>
    %250 = vector.extract_strided_slice %127 {offsets = [0, 60], sizes = [8, 256], strides = [1, 1]} : vector<8x512xf32> to vector<8x256xf32>
    %251 = vector.broadcast %249 : vector<8x1xf32> to vector<8x256xf32>
    %252 = arith.mulf %251, %250 : vector<8x256xf32>
    %253 = arith.addf %248, %252 : vector<8x256xf32>
    %254 = vector.extract_strided_slice %125 {offsets = [0, 37], sizes = [8, 1], strides = [1, 1]} : vector<8x128xf32> to vector<8x1xf32>
    %255 = vector.extract_strided_slice %127 {offsets = [0, 61], sizes = [8, 256], strides = [1, 1]} : vector<8x512xf32> to vector<8x256xf32>
    %256 = vector.broadcast %254 : vector<8x1xf32> to vector<8x256xf32>
    %257 = arith.mulf %256, %255 : vector<8x256xf32>
    %258 = arith.addf %253, %257 : vector<8x256xf32>
    %259 = vector.extract_strided_slice %125 {offsets = [0, 38], sizes = [8, 1], strides = [1, 1]} : vector<8x128xf32> to vector<8x1xf32>
    %260 = vector.extract_strided_slice %127 {offsets = [0, 62], sizes = [8, 256], strides = [1, 1]} : vector<8x512xf32> to vector<8x256xf32>
    %261 = vector.broadcast %259 : vector<8x1xf32> to vector<8x256xf32>
    %262 = arith.mulf %261, %260 : vector<8x256xf32>
    %263 = arith.addf %258, %262 : vector<8x256xf32>
    %264 = vector.extract_strided_slice %125 {offsets = [0, 39], sizes = [8, 1], strides = [1, 1]} : vector<8x128xf32> to vector<8x1xf32>
    %265 = vector.extract_strided_slice %127 {offsets = [0, 63], sizes = [8, 256], strides = [1, 1]} : vector<8x512xf32> to vector<8x256xf32>
    %266 = vector.broadcast %264 : vector<8x1xf32> to vector<8x256xf32>
    %267 = arith.mulf %266, %265 : vector<8x256xf32>
    %268 = arith.addf %263, %267 : vector<8x256xf32>
    %269 = vector.extract_strided_slice %125 {offsets = [0, 40], sizes = [8, 1], strides = [1, 1]} : vector<8x128xf32> to vector<8x1xf32>
    %270 = vector.extract_strided_slice %127 {offsets = [0, 64], sizes = [8, 256], strides = [1, 1]} : vector<8x512xf32> to vector<8x256xf32>
    %271 = vector.broadcast %269 : vector<8x1xf32> to vector<8x256xf32>
    %272 = arith.mulf %271, %270 : vector<8x256xf32>
    %273 = arith.addf %268, %272 : vector<8x256xf32>
    %274 = vector.extract_strided_slice %125 {offsets = [0, 41], sizes = [8, 1], strides = [1, 1]} : vector<8x128xf32> to vector<8x1xf32>
    %275 = vector.extract_strided_slice %127 {offsets = [0, 65], sizes = [8, 256], strides = [1, 1]} : vector<8x512xf32> to vector<8x256xf32>
    %276 = vector.broadcast %274 : vector<8x1xf32> to vector<8x256xf32>
    %277 = arith.mulf %276, %275 : vector<8x256xf32>
    %278 = arith.addf %273, %277 : vector<8x256xf32>
    %279 = vector.extract_strided_slice %125 {offsets = [0, 42], sizes = [8, 1], strides = [1, 1]} : vector<8x128xf32> to vector<8x1xf32>
    %280 = vector.extract_strided_slice %127 {offsets = [0, 66], sizes = [8, 256], strides = [1, 1]} : vector<8x512xf32> to vector<8x256xf32>
    %281 = vector.broadcast %279 : vector<8x1xf32> to vector<8x256xf32>
    %282 = arith.mulf %281, %280 : vector<8x256xf32>
    %283 = arith.addf %278, %282 : vector<8x256xf32>
    %284 = vector.extract_strided_slice %125 {offsets = [0, 43], sizes = [8, 1], strides = [1, 1]} : vector<8x128xf32> to vector<8x1xf32>
    %285 = vector.extract_strided_slice %127 {offsets = [0, 67], sizes = [8, 256], strides = [1, 1]} : vector<8x512xf32> to vector<8x256xf32>
    %286 = vector.broadcast %284 : vector<8x1xf32> to vector<8x256xf32>
    %287 = arith.mulf %286, %285 : vector<8x256xf32>
    %288 = arith.addf %283, %287 : vector<8x256xf32>
    %289 = vector.extract_strided_slice %125 {offsets = [0, 48], sizes = [8, 1], strides = [1, 1]} : vector<8x128xf32> to vector<8x1xf32>
    %290 = vector.extract_strided_slice %127 {offsets = [0, 80], sizes = [8, 256], strides = [1, 1]} : vector<8x512xf32> to vector<8x256xf32>
    %291 = vector.broadcast %289 : vector<8x1xf32> to vector<8x256xf32>
    %292 = arith.mulf %291, %290 : vector<8x256xf32>
    %293 = arith.addf %288, %292 : vector<8x256xf32>
    %294 = vector.extract_strided_slice %125 {offsets = [0, 49], sizes = [8, 1], strides = [1, 1]} : vector<8x128xf32> to vector<8x1xf32>
    %295 = vector.extract_strided_slice %127 {offsets = [0, 81], sizes = [8, 256], strides = [1, 1]} : vector<8x512xf32> to vector<8x256xf32>
    %296 = vector.broadcast %294 : vector<8x1xf32> to vector<8x256xf32>
    %297 = arith.mulf %296, %295 : vector<8x256xf32>
    %298 = arith.addf %293, %297 : vector<8x256xf32>
    %299 = vector.extract_strided_slice %125 {offsets = [0, 50], sizes = [8, 1], strides = [1, 1]} : vector<8x128xf32> to vector<8x1xf32>
    %300 = vector.extract_strided_slice %127 {offsets = [0, 82], sizes = [8, 256], strides = [1, 1]} : vector<8x512xf32> to vector<8x256xf32>
    %301 = vector.broadcast %299 : vector<8x1xf32> to vector<8x256xf32>
    %302 = arith.mulf %301, %300 : vector<8x256xf32>
    %303 = arith.addf %298, %302 : vector<8x256xf32>
    %304 = vector.extract_strided_slice %125 {offsets = [0, 51], sizes = [8, 1], strides = [1, 1]} : vector<8x128xf32> to vector<8x1xf32>
    %305 = vector.extract_strided_slice %127 {offsets = [0, 83], sizes = [8, 256], strides = [1, 1]} : vector<8x512xf32> to vector<8x256xf32>
    %306 = vector.broadcast %304 : vector<8x1xf32> to vector<8x256xf32>
    %307 = arith.mulf %306, %305 : vector<8x256xf32>
    %308 = arith.addf %303, %307 : vector<8x256xf32>
    %309 = vector.extract_strided_slice %125 {offsets = [0, 52], sizes = [8, 1], strides = [1, 1]} : vector<8x128xf32> to vector<8x1xf32>
    %310 = vector.extract_strided_slice %127 {offsets = [0, 84], sizes = [8, 256], strides = [1, 1]} : vector<8x512xf32> to vector<8x256xf32>
    %311 = vector.broadcast %309 : vector<8x1xf32> to vector<8x256xf32>
    %312 = arith.mulf %311, %310 : vector<8x256xf32>
    %313 = arith.addf %308, %312 : vector<8x256xf32>
    %314 = vector.extract_strided_slice %125 {offsets = [0, 53], sizes = [8, 1], strides = [1, 1]} : vector<8x128xf32> to vector<8x1xf32>
    %315 = vector.extract_strided_slice %127 {offsets = [0, 85], sizes = [8, 256], strides = [1, 1]} : vector<8x512xf32> to vector<8x256xf32>
    %316 = vector.broadcast %314 : vector<8x1xf32> to vector<8x256xf32>
    %317 = arith.mulf %316, %315 : vector<8x256xf32>
    %318 = arith.addf %313, %317 : vector<8x256xf32>
    %319 = vector.extract_strided_slice %125 {offsets = [0, 54], sizes = [8, 1], strides = [1, 1]} : vector<8x128xf32> to vector<8x1xf32>
    %320 = vector.extract_strided_slice %127 {offsets = [0, 86], sizes = [8, 256], strides = [1, 1]} : vector<8x512xf32> to vector<8x256xf32>
    %321 = vector.broadcast %319 : vector<8x1xf32> to vector<8x256xf32>
    %322 = arith.mulf %321, %320 : vector<8x256xf32>
    %323 = arith.addf %318, %322 : vector<8x256xf32>
    %324 = vector.extract_strided_slice %125 {offsets = [0, 55], sizes = [8, 1], strides = [1, 1]} : vector<8x128xf32> to vector<8x1xf32>
    %325 = vector.extract_strided_slice %127 {offsets = [0, 87], sizes = [8, 256], strides = [1, 1]} : vector<8x512xf32> to vector<8x256xf32>
    %326 = vector.broadcast %324 : vector<8x1xf32> to vector<8x256xf32>
    %327 = arith.mulf %326, %325 : vector<8x256xf32>
    %328 = arith.addf %323, %327 : vector<8x256xf32>
    %329 = vector.extract_strided_slice %125 {offsets = [0, 60], sizes = [8, 1], strides = [1, 1]} : vector<8x128xf32> to vector<8x1xf32>
    %330 = vector.extract_strided_slice %127 {offsets = [0, 100], sizes = [8, 256], strides = [1, 1]} : vector<8x512xf32> to vector<8x256xf32>
    %331 = vector.broadcast %329 : vector<8x1xf32> to vector<8x256xf32>
    %332 = arith.mulf %331, %330 : vector<8x256xf32>
    %333 = arith.addf %328, %332 : vector<8x256xf32>
    %334 = vector.extract_strided_slice %125 {offsets = [0, 61], sizes = [8, 1], strides = [1, 1]} : vector<8x128xf32> to vector<8x1xf32>
    %335 = vector.extract_strided_slice %127 {offsets = [0, 101], sizes = [8, 256], strides = [1, 1]} : vector<8x512xf32> to vector<8x256xf32>
    %336 = vector.broadcast %334 : vector<8x1xf32> to vector<8x256xf32>
    %337 = arith.mulf %336, %335 : vector<8x256xf32>
    %338 = arith.addf %333, %337 : vector<8x256xf32>
    %339 = vector.extract_strided_slice %125 {offsets = [0, 62], sizes = [8, 1], strides = [1, 1]} : vector<8x128xf32> to vector<8x1xf32>
    %340 = vector.extract_strided_slice %127 {offsets = [0, 102], sizes = [8, 256], strides = [1, 1]} : vector<8x512xf32> to vector<8x256xf32>
    %341 = vector.broadcast %339 : vector<8x1xf32> to vector<8x256xf32>
    %342 = arith.mulf %341, %340 : vector<8x256xf32>
    %343 = arith.addf %338, %342 : vector<8x256xf32>
    %344 = vector.extract_strided_slice %125 {offsets = [0, 63], sizes = [8, 1], strides = [1, 1]} : vector<8x128xf32> to vector<8x1xf32>
    %345 = vector.extract_strided_slice %127 {offsets = [0, 103], sizes = [8, 256], strides = [1, 1]} : vector<8x512xf32> to vector<8x256xf32>
    %346 = vector.broadcast %344 : vector<8x1xf32> to vector<8x256xf32>
    %347 = arith.mulf %346, %345 : vector<8x256xf32>
    %348 = arith.addf %343, %347 : vector<8x256xf32>
    %349 = vector.extract_strided_slice %125 {offsets = [0, 64], sizes = [8, 1], strides = [1, 1]} : vector<8x128xf32> to vector<8x1xf32>
    %350 = vector.extract_strided_slice %127 {offsets = [0, 104], sizes = [8, 256], strides = [1, 1]} : vector<8x512xf32> to vector<8x256xf32>
    %351 = vector.broadcast %349 : vector<8x1xf32> to vector<8x256xf32>
    %352 = arith.mulf %351, %350 : vector<8x256xf32>
    %353 = arith.addf %348, %352 : vector<8x256xf32>
    %354 = vector.extract_strided_slice %125 {offsets = [0, 65], sizes = [8, 1], strides = [1, 1]} : vector<8x128xf32> to vector<8x1xf32>
    %355 = vector.extract_strided_slice %127 {offsets = [0, 105], sizes = [8, 256], strides = [1, 1]} : vector<8x512xf32> to vector<8x256xf32>
    %356 = vector.broadcast %354 : vector<8x1xf32> to vector<8x256xf32>
    %357 = arith.mulf %356, %355 : vector<8x256xf32>
    %358 = arith.addf %353, %357 : vector<8x256xf32>
    %359 = vector.extract_strided_slice %125 {offsets = [0, 66], sizes = [8, 1], strides = [1, 1]} : vector<8x128xf32> to vector<8x1xf32>
    %360 = vector.extract_strided_slice %127 {offsets = [0, 106], sizes = [8, 256], strides = [1, 1]} : vector<8x512xf32> to vector<8x256xf32>
    %361 = vector.broadcast %359 : vector<8x1xf32> to vector<8x256xf32>
    %362 = arith.mulf %361, %360 : vector<8x256xf32>
    %363 = arith.addf %358, %362 : vector<8x256xf32>
    %364 = vector.extract_strided_slice %125 {offsets = [0, 67], sizes = [8, 1], strides = [1, 1]} : vector<8x128xf32> to vector<8x1xf32>
    %365 = vector.extract_strided_slice %127 {offsets = [0, 107], sizes = [8, 256], strides = [1, 1]} : vector<8x512xf32> to vector<8x256xf32>
    %366 = vector.broadcast %364 : vector<8x1xf32> to vector<8x256xf32>
    %367 = arith.mulf %366, %365 : vector<8x256xf32>
    %368 = arith.addf %363, %367 : vector<8x256xf32>
    %369 = vector.extract_strided_slice %125 {offsets = [0, 72], sizes = [8, 1], strides = [1, 1]} : vector<8x128xf32> to vector<8x1xf32>
    %370 = vector.extract_strided_slice %127 {offsets = [0, 120], sizes = [8, 256], strides = [1, 1]} : vector<8x512xf32> to vector<8x256xf32>
    %371 = vector.broadcast %369 : vector<8x1xf32> to vector<8x256xf32>
    %372 = arith.mulf %371, %370 : vector<8x256xf32>
    %373 = arith.addf %368, %372 : vector<8x256xf32>
    %374 = vector.extract_strided_slice %125 {offsets = [0, 73], sizes = [8, 1], strides = [1, 1]} : vector<8x128xf32> to vector<8x1xf32>
    %375 = vector.extract_strided_slice %127 {offsets = [0, 121], sizes = [8, 256], strides = [1, 1]} : vector<8x512xf32> to vector<8x256xf32>
    %376 = vector.broadcast %374 : vector<8x1xf32> to vector<8x256xf32>
    %377 = arith.mulf %376, %375 : vector<8x256xf32>
    %378 = arith.addf %373, %377 : vector<8x256xf32>
    %379 = vector.extract_strided_slice %125 {offsets = [0, 74], sizes = [8, 1], strides = [1, 1]} : vector<8x128xf32> to vector<8x1xf32>
    %380 = vector.extract_strided_slice %127 {offsets = [0, 122], sizes = [8, 256], strides = [1, 1]} : vector<8x512xf32> to vector<8x256xf32>
    %381 = vector.broadcast %379 : vector<8x1xf32> to vector<8x256xf32>
    %382 = arith.mulf %381, %380 : vector<8x256xf32>
    %383 = arith.addf %378, %382 : vector<8x256xf32>
    %384 = vector.extract_strided_slice %125 {offsets = [0, 75], sizes = [8, 1], strides = [1, 1]} : vector<8x128xf32> to vector<8x1xf32>
    %385 = vector.extract_strided_slice %127 {offsets = [0, 123], sizes = [8, 256], strides = [1, 1]} : vector<8x512xf32> to vector<8x256xf32>
    %386 = vector.broadcast %384 : vector<8x1xf32> to vector<8x256xf32>
    %387 = arith.mulf %386, %385 : vector<8x256xf32>
    %388 = arith.addf %383, %387 : vector<8x256xf32>
    %389 = vector.extract_strided_slice %125 {offsets = [0, 76], sizes = [8, 1], strides = [1, 1]} : vector<8x128xf32> to vector<8x1xf32>
    %390 = vector.extract_strided_slice %127 {offsets = [0, 124], sizes = [8, 256], strides = [1, 1]} : vector<8x512xf32> to vector<8x256xf32>
    %391 = vector.broadcast %389 : vector<8x1xf32> to vector<8x256xf32>
    %392 = arith.mulf %391, %390 : vector<8x256xf32>
    %393 = arith.addf %388, %392 : vector<8x256xf32>
    %394 = vector.extract_strided_slice %125 {offsets = [0, 77], sizes = [8, 1], strides = [1, 1]} : vector<8x128xf32> to vector<8x1xf32>
    %395 = vector.extract_strided_slice %127 {offsets = [0, 125], sizes = [8, 256], strides = [1, 1]} : vector<8x512xf32> to vector<8x256xf32>
    %396 = vector.broadcast %394 : vector<8x1xf32> to vector<8x256xf32>
    %397 = arith.mulf %396, %395 : vector<8x256xf32>
    %398 = arith.addf %393, %397 : vector<8x256xf32>
    %399 = vector.extract_strided_slice %125 {offsets = [0, 78], sizes = [8, 1], strides = [1, 1]} : vector<8x128xf32> to vector<8x1xf32>
    %400 = vector.extract_strided_slice %127 {offsets = [0, 126], sizes = [8, 256], strides = [1, 1]} : vector<8x512xf32> to vector<8x256xf32>
    %401 = vector.broadcast %399 : vector<8x1xf32> to vector<8x256xf32>
    %402 = arith.mulf %401, %400 : vector<8x256xf32>
    %403 = arith.addf %398, %402 : vector<8x256xf32>
    %404 = vector.extract_strided_slice %125 {offsets = [0, 79], sizes = [8, 1], strides = [1, 1]} : vector<8x128xf32> to vector<8x1xf32>
    %405 = vector.extract_strided_slice %127 {offsets = [0, 127], sizes = [8, 256], strides = [1, 1]} : vector<8x512xf32> to vector<8x256xf32>
    %406 = vector.broadcast %404 : vector<8x1xf32> to vector<8x256xf32>
    %407 = arith.mulf %406, %405 : vector<8x256xf32>
    %408 = arith.addf %403, %407 : vector<8x256xf32>
    %409 = vector.extract_strided_slice %125 {offsets = [0, 84], sizes = [8, 1], strides = [1, 1]} : vector<8x128xf32> to vector<8x1xf32>
    %410 = vector.extract_strided_slice %127 {offsets = [0, 140], sizes = [8, 256], strides = [1, 1]} : vector<8x512xf32> to vector<8x256xf32>
    %411 = vector.broadcast %409 : vector<8x1xf32> to vector<8x256xf32>
    %412 = arith.mulf %411, %410 : vector<8x256xf32>
    %413 = arith.addf %408, %412 : vector<8x256xf32>
    %414 = vector.extract_strided_slice %125 {offsets = [0, 85], sizes = [8, 1], strides = [1, 1]} : vector<8x128xf32> to vector<8x1xf32>
    %415 = vector.extract_strided_slice %127 {offsets = [0, 141], sizes = [8, 256], strides = [1, 1]} : vector<8x512xf32> to vector<8x256xf32>
    %416 = vector.broadcast %414 : vector<8x1xf32> to vector<8x256xf32>
    %417 = arith.mulf %416, %415 : vector<8x256xf32>
    %418 = arith.addf %413, %417 : vector<8x256xf32>
    %419 = vector.extract_strided_slice %125 {offsets = [0, 86], sizes = [8, 1], strides = [1, 1]} : vector<8x128xf32> to vector<8x1xf32>
    %420 = vector.extract_strided_slice %127 {offsets = [0, 142], sizes = [8, 256], strides = [1, 1]} : vector<8x512xf32> to vector<8x256xf32>
    %421 = vector.broadcast %419 : vector<8x1xf32> to vector<8x256xf32>
    %422 = arith.mulf %421, %420 : vector<8x256xf32>
    %423 = arith.addf %418, %422 : vector<8x256xf32>
    %424 = vector.extract_strided_slice %125 {offsets = [0, 87], sizes = [8, 1], strides = [1, 1]} : vector<8x128xf32> to vector<8x1xf32>
    %425 = vector.extract_strided_slice %127 {offsets = [0, 143], sizes = [8, 256], strides = [1, 1]} : vector<8x512xf32> to vector<8x256xf32>
    %426 = vector.broadcast %424 : vector<8x1xf32> to vector<8x256xf32>
    %427 = arith.mulf %426, %425 : vector<8x256xf32>
    %428 = arith.addf %423, %427 : vector<8x256xf32>
    %429 = vector.extract_strided_slice %125 {offsets = [0, 88], sizes = [8, 1], strides = [1, 1]} : vector<8x128xf32> to vector<8x1xf32>
    %430 = vector.extract_strided_slice %127 {offsets = [0, 144], sizes = [8, 256], strides = [1, 1]} : vector<8x512xf32> to vector<8x256xf32>
    %431 = vector.broadcast %429 : vector<8x1xf32> to vector<8x256xf32>
    %432 = arith.mulf %431, %430 : vector<8x256xf32>
    %433 = arith.addf %428, %432 : vector<8x256xf32>
    %434 = vector.extract_strided_slice %125 {offsets = [0, 89], sizes = [8, 1], strides = [1, 1]} : vector<8x128xf32> to vector<8x1xf32>
    %435 = vector.extract_strided_slice %127 {offsets = [0, 145], sizes = [8, 256], strides = [1, 1]} : vector<8x512xf32> to vector<8x256xf32>
    %436 = vector.broadcast %434 : vector<8x1xf32> to vector<8x256xf32>
    %437 = arith.mulf %436, %435 : vector<8x256xf32>
    %438 = arith.addf %433, %437 : vector<8x256xf32>
    %439 = vector.extract_strided_slice %125 {offsets = [0, 90], sizes = [8, 1], strides = [1, 1]} : vector<8x128xf32> to vector<8x1xf32>
    %440 = vector.extract_strided_slice %127 {offsets = [0, 146], sizes = [8, 256], strides = [1, 1]} : vector<8x512xf32> to vector<8x256xf32>
    %441 = vector.broadcast %439 : vector<8x1xf32> to vector<8x256xf32>
    %442 = arith.mulf %441, %440 : vector<8x256xf32>
    %443 = arith.addf %438, %442 : vector<8x256xf32>
    %444 = vector.extract_strided_slice %125 {offsets = [0, 91], sizes = [8, 1], strides = [1, 1]} : vector<8x128xf32> to vector<8x1xf32>
    %445 = vector.extract_strided_slice %127 {offsets = [0, 147], sizes = [8, 256], strides = [1, 1]} : vector<8x512xf32> to vector<8x256xf32>
    %446 = vector.broadcast %444 : vector<8x1xf32> to vector<8x256xf32>
    %447 = arith.mulf %446, %445 : vector<8x256xf32>
    %448 = arith.addf %443, %447 : vector<8x256xf32>
    %cst_120 = arith.constant dense<0.000000e+00> : vector<256xf32>
    %449 = vector.multi_reduction <add>, %448, %cst_120 [0] : vector<8x256xf32> to vector<256xf32>
    %450 = vector.shape_cast %449 : vector<256xf32> to vector<1x256xf32>
    %c0_121 = arith.constant 0 : index
    %451 = memref.load %arg7[%c0_121] : memref<1xf32, #tpu.memory_space<smem>>
    %452 = vector.broadcast %451 : f32 to vector<1x256xf32>
    %453 = arith.mulf %450, %452 : vector<1x256xf32>
    %c0_122 = arith.constant 0 : index
    %c0_123 = arith.constant 0 : index
    %c0_124 = arith.constant 0 : index
    %454 = vector.load %arg8[%c0_122, %c0_123, %c0_124] : memref<1x1x256xf32, #tpu.memory_space<vmem>>, vector<1x1x256xf32>
    %455 = vector.shape_cast %454 : vector<1x1x256xf32> to vector<1x256xf32>
    %456 = vector.shape_cast %453 : vector<1x256xf32> to vector<1x1x256xf32>
    tpu.vector_store %arg8[%c0_122, %c0_123, %c0_124], %456 {strides = array<i32>} : memref<1x1x256xf32, #tpu.memory_space<vmem>>, vector<1x1x256xf32>,
    return
  }
  func.func @transform_0(%arg0: i32) -> (i32, i32, i32) {
    %c0_i32 = arith.constant 0 : i32
    %c0_i32_0 = arith.constant 0 : i32
    %c0_i32_1 = arith.constant 0 : i32
    return %arg0, %c0_i32, %c0_i32_0 : i32, i32, i32
  }
  func.func @transform_1(%arg0: i32) -> (i32, i32, i32) {
    %c0_i32 = arith.constant 0 : i32
    %c0_i32_0 = arith.constant 0 : i32
    %c0_i32_1 = arith.constant 0 : i32
    return %arg0, %c0_i32, %c0_i32_0 : i32, i32, i32
  }
  func.func @transform_2(%arg0: i32) -> (i32, i32) {
    %c0_i32 = arith.constant 0 : i32
    %c0_i32_0 = arith.constant 0 : i32
    %c0_i32_1 = arith.constant 0 : i32
    return %c0_i32, %c0_i32_0 : i32, i32
  }
  func.func @transform_3(%arg0: i32) -> (i32, i32) {
    %c0_i32 = arith.constant 0 : i32
    %c0_i32_0 = arith.constant 0 : i32
    %c0_i32_1 = arith.constant 0 : i32
    return %c0_i32, %c0_i32_0 : i32, i32
  }
  func.func @transform_4(%arg0: i32) -> (i32, i32) {
    %c0_i32 = arith.constant 0 : i32
    %c0_i32_0 = arith.constant 0 : i32
    %c0_i32_1 = arith.constant 0 : i32
    return %c0_i32, %c0_i32_0 : i32, i32
  }
  func.func @transform_5(%arg0: i32) -> (i32, i32) {
    %c0_i32 = arith.constant 0 : i32
    %c0_i32_0 = arith.constant 0 : i32
    %c0_i32_1 = arith.constant 0 : i32
    return %c0_i32, %c0_i32_0 : i32, i32
  }
  func.func @transform_6(%arg0: i32) -> i32 {
    %c0_i32 = arith.constant 0 : i32
    %c0_i32_0 = arith.constant 0 : i32
    return %c0_i32 : i32
  }
  func.func @transform_7(%arg0: i32) -> (i32, i32, i32) {
    %c0_i32 = arith.constant 0 : i32
    %c0_i32_0 = arith.constant 0 : i32
    %c0_i32_1 = arith.constant 0 : i32
    return %arg0, %c0_i32, %c0_i32_0 : i32, i32, i32
  }
}

</mosaic_0001>

<llo_original>
// kernel: net_forward.1
$region0: #{net_forward.1}
  #allocation0 [shape = 'u32[]', space=smem, size = 0x4, offset = 0x4, fixed_abs, tag = 'smem constant byte address 0x4 - core index']
  #allocation1 [shape = 'u32[144,128]{1,0:T(1,128)}', space=vmem, size = 0x12000, scoped, tag = 'internal scratch']
  #allocation2 [shape = 'bf16[36,384]{1,0:T(8,128)(2,1)}', space=vmem, size = 0x7800, scoped, tag = 'scratch operand']
  #allocation3 [shape = 'bf16[72,384]{1,0:T(8,128)(2,1)}', space=vmem, size = 0xd800, scoped, tag = 'scratch operand']
  #allocation4 [shape = 'bf16[8,256]{1,0:T(8,128)(2,1)}', space=vmem, size = 0x1000, scoped, tag = 'scratch operand']
  #allocation5 [shape = 'bf16[8,128]{1,0:T(8,128)(2,1)}', space=vmem, size = 0x800, scoped, tag = 'scratch operand']
  #allocation6 [shape = 'bf16[8,512]{1,0:T(8,128)(2,1)}', space=vmem, size = 0x2000, scoped, tag = 'scratch operand']
  #allocation7 [shape = 'bf16[8,512]{1,0:T(8,128)(2,1)}', space=vmem, size = 0x2000, scoped, tag = 'scratch operand']
  #allocation8 [shape = 'f32[1]{0:T(128)S(6)}', space=smem, size = 0x200, scoped, tag = 'scoped memory for net_forward.1']
  %s0 = inlined_call_operand.vmem [shape: bf16[2,4,256], index: 0, kind: input, shape index: {}]
  %s1 = inlined_call_operand.vmem [shape: bf16[2,4,512], index: 1, kind: input, shape index: {}]
  %s2 = inlined_call_operand.vmem [shape: bf16[8,36], index: 2, kind: input, shape index: {}]
  %s3 = inlined_call_operand.vmem [shape: f32[8,1], index: 3, kind: input, shape index: {}]
  %s4 = inlined_call_operand.vmem [shape: bf16[8,72], index: 4, kind: input, shape index: {}]
  %s5 = inlined_call_operand.vmem [shape: f32[8,1], index: 5, kind: input, shape index: {}]
  %s6 = inlined_call_operand.<no memory space> [shape: f32[1], index: 6, kind: input, shape index: {}]
  %s7 = inlined_call_operand.vmem [shape: f32[2,1,256], index: 7, kind: output, shape index: {}]
  %s8 = sld [smem:[#allocation0]]
  $region61: #{net_forward.1} parent=0
    _
  %s10 = ssub.s32 1, %s8
  %s11 = scalar_select 0, %s10, %s8
  %12 = sst [smem:[#allocation8]] %s6
  loop: start=0, step=1, limit=4
  $region2: #{net_forward.1} parent=0 // loop_pre_header
    _
  $region3: #{net_forward.1} parent=0 // loop_header
    %s14 = sphi 0, %s18
    %p15 = scmp.ge.s32.totalorder %s14, 4
    %s24 = sphi 0, %s26
    %s27 = sphi 0, %s24
    %s28 = sphi 0, %s27
    %s44 = sphi 0, %s28
    %s50 = sphi 0, %s52
    %s53 = sphi 0, %s50
    %s54 = sphi 0, %s53
    %s70 = sphi 0, %s54
    %s74 = sphi 0, %s74
    %s76 = sphi 0, %s74
    %s77 = sphi 0, %s76
    %s91 = sphi 0, %s77
    %s95 = sphi 0, %s95
    %s97 = sphi 0, %s95
    %s98 = sphi 0, %s97
    %s112 = sphi 0, %s98
    %s116 = sphi 0, %s116
    %s118 = sphi 0, %s116
    %s119 = sphi 0, %s118
    %s133 = sphi 0, %s119
    %s137 = sphi 0, %s137
    %s139 = sphi 0, %s137
    %s140 = sphi 0, %s139
    %s154 = sphi 0, %s140
    %s158 = sphi 0, %s158
    %s160 = sphi 0, %s158
    %s161 = sphi 0, %s160
    %s175 = sphi 0, %s161
    %s181 = sphi 0, %s183
    %s184 = sphi 0, %s181
    %s185 = sphi 0, %s184
    %s201 = sphi 0, %s185
  $region4: #{net_forward.1} parent=0 // loop_header_branch
    %17 = sbr.rel (%p15) target = $region8
  $region5: #{net_forward.1} parent=0 // loop_body
    %s19 = ssub.s32 %s14, 1
    %s20 = ssub.s32 %s14, 2
    %s21 = sadd.s32 %s14, 1
    %s22 = ssub.s32 %s14, %s21
    %p23 = scmp.eq.s32.totalorder %s22, 0
    %s25 = sadd.s32 %s24, 1
    %s26 = scalar_select %p23, %s24, %s25
    %p29 = pneg %p23
    %p30 = scmp.eq.s32.totalorder %s14, 1
    %p31 = por %p29, %p30
    %p32 = scmp.ne.s32.totalorder %s24, %s27
    %p33 = scmp.eq.s32.totalorder %s14, 0
    %p34 = por %p32, %p33
    %p35 = scmp.ne.s32.totalorder %s24, %s27
    %p36 = scmp.eq.s32.totalorder %s19, 1
    %p37 = por %p35, %p36
    %p38 = scmp.ne.s32.totalorder %s27, %s28
    %p39 = scmp.eq.s32.totalorder %s19, 0
    %p40 = por %p38, %p39
    %p41 = scmp.ne.s32.totalorder %s27, %s28
    %p42 = scmp.eq.s32.totalorder %s20, 1
    %p43 = por %p41, %p42
    %p45 = scmp.ne.s32.totalorder %s28, %s44
    %p46 = scmp.eq.s32.totalorder %s20, 0
    %p47 = por %p45, %p46
    %s48 = ssub.s32 %s14, %s21
    %p49 = scmp.eq.s32.totalorder %s48, 0
    %s51 = sadd.s32 %s50, 1
    %s52 = scalar_select %p49, %s50, %s51
    %p55 = pneg %p49
    %p56 = scmp.eq.s32.totalorder %s14, 1
    %p57 = por %p55, %p56
    %p58 = scmp.ne.s32.totalorder %s50, %s53
    %p59 = scmp.eq.s32.totalorder %s14, 0
    %p60 = por %p58, %p59
    %p61 = scmp.ne.s32.totalorder %s50, %s53
    %p62 = scmp.eq.s32.totalorder %s19, 1
    %p63 = por %p61, %p62
    %p64 = scmp.ne.s32.totalorder %s53, %s54
    %p65 = scmp.eq.s32.totalorder %s19, 0
    %p66 = por %p64, %p65
    %p67 = scmp.ne.s32.totalorder %s53, %s54
    %p68 = scmp.eq.s32.totalorder %s20, 1
    %p69 = por %p67, %p68
    %p71 = scmp.ne.s32.totalorder %s54, %s70
    %p72 = scmp.eq.s32.totalorder %s20, 0
    %p73 = por %p71, %p72
    %s75 = sadd.s32 %s74, 1
    %p78 = scmp.eq.s32.totalorder %s14, 1
    %p79 = scmp.ne.s32.totalorder %s74, %s76
    %p80 = scmp.eq.s32.totalorder %s14, 0
    %p81 = por %p79, %p80
    %p82 = scmp.ne.s32.totalorder %s74, %s76
    %p83 = scmp.eq.s32.totalorder %s19, 1
    %p84 = por %p82, %p83
    %p85 = scmp.ne.s32.totalorder %s76, %s77
    %p86 = scmp.eq.s32.totalorder %s19, 0
    %p87 = por %p85, %p86
    %p88 = scmp.ne.s32.totalorder %s76, %s77
    %p89 = scmp.eq.s32.totalorder %s20, 1
    %p90 = por %p88, %p89
    %p92 = scmp.ne.s32.totalorder %s77, %s91
    %p93 = scmp.eq.s32.totalorder %s20, 0
    %p94 = por %p92, %p93
    %s96 = sadd.s32 %s95, 1
    %p99 = scmp.eq.s32.totalorder %s14, 1
    %p100 = scmp.ne.s32.totalorder %s95, %s97
    %p101 = scmp.eq.s32.totalorder %s14, 0
    %p102 = por %p100, %p101
    %p103 = scmp.ne.s32.totalorder %s95, %s97
    %p104 = scmp.eq.s32.totalorder %s19, 1
    %p105 = por %p103, %p104
    %p106 = scmp.ne.s32.totalorder %s97, %s98
    %p107 = scmp.eq.s32.totalorder %s19, 0
    %p108 = por %p106, %p107
    %p109 = scmp.ne.s32.totalorder %s97, %s98
    %p110 = scmp.eq.s32.totalorder %s20, 1
    %p111 = por %p109, %p110
    %p113 = scmp.ne.s32.totalorder %s98, %s112
    %p114 = scmp.eq.s32.totalorder %s20, 0
    %p115 = por %p113, %p114
    %s117 = sadd.s32 %s116, 1
    %p120 = scmp.eq.s32.totalorder %s14, 1
    %p121 = scmp.ne.s32.totalorder %s116, %s118
    %p122 = scmp.eq.s32.totalorder %s14, 0
    %p123 = por %p121, %p122
    %p124 = scmp.ne.s32.totalorder %s116, %s118
    %p125 = scmp.eq.s32.totalorder %s19, 1
    %p126 = por %p124, %p125
    %p127 = scmp.ne.s32.totalorder %s118, %s119
    %p128 = scmp.eq.s32.totalorder %s19, 0
    %p129 = por %p127, %p128
    %p130 = scmp.ne.s32.totalorder %s118, %s119
    %p131 = scmp.eq.s32.totalorder %s20, 1
    %p132 = por %p130, %p131
    %p134 = scmp.ne.s32.totalorder %s119, %s133
    %p135 = scmp.eq.s32.totalorder %s20, 0
    %p136 = por %p134, %p135
    %s138 = sadd.s32 %s137, 1
    %p141 = scmp.eq.s32.totalorder %s14, 1
    %p142 = scmp.ne.s32.totalorder %s137, %s139
    %p143 = scmp.eq.s32.totalorder %s14, 0
    %p144 = por %p142, %p143
    %p145 = scmp.ne.s32.totalorder %s137, %s139
    %p146 = scmp.eq.s32.totalorder %s19, 1
    %p147 = por %p145, %p146
    %p148 = scmp.ne.s32.totalorder %s139, %s140
    %p149 = scmp.eq.s32.totalorder %s19, 0
    %p150 = por %p148, %p149
    %p151 = scmp.ne.s32.totalorder %s139, %s140
    %p152 = scmp.eq.s32.totalorder %s20, 1
    %p153 = por %p151, %p152
    %p155 = scmp.ne.s32.totalorder %s140, %s154
    %p156 = scmp.eq.s32.totalorder %s20, 0
    %p157 = por %p155, %p156
    %s159 = sadd.s32 %s158, 1
    %p162 = scmp.eq.s32.totalorder %s14, 1
    %p163 = scmp.ne.s32.totalorder %s158, %s160
    %p164 = scmp.eq.s32.totalorder %s14, 0
    %p165 = por %p163, %p164
    %p166 = scmp.ne.s32.totalorder %s158, %s160
    %p167 = scmp.eq.s32.totalorder %s19, 1
    %p168 = por %p166, %p167
    %p169 = scmp.ne.s32.totalorder %s160, %s161
    %p170 = scmp.eq.s32.totalorder %s19, 0
    %p171 = por %p169, %p170
    %p172 = scmp.ne.s32.totalorder %s160, %s161
    %p173 = scmp.eq.s32.totalorder %s20, 1
    %p174 = por %p172, %p173
    %p176 = scmp.ne.s32.totalorder %s161, %s175
    %p177 = scmp.eq.s32.totalorder %s20, 0
    %p178 = por %p176, %p177
    %s179 = ssub.s32 %s14, %s21
    %p180 = scmp.eq.s32.totalorder %s179, 0
    %s182 = sadd.s32 %s181, 1
    %s183 = scalar_select %p180, %s181, %s182
    %p186 = pneg %p180
    %p187 = scmp.eq.s32.totalorder %s14, 1
    %p188 = por %p186, %p187
    %p189 = scmp.ne.s32.totalorder %s181, %s184
    %p190 = scmp.eq.s32.totalorder %s14, 0
    %p191 = por %p189, %p190
    %p192 = scmp.ne.s32.totalorder %s181, %s184
    %p193 = scmp.eq.s32.totalorder %s19, 1
    %p194 = por %p192, %p193
    %p195 = scmp.ne.s32.totalorder %s184, %s185
    %p196 = scmp.eq.s32.totalorder %s19, 0
    %p197 = por %p195, %p196
    %p198 = scmp.ne.s32.totalorder %s184, %s185
    %p199 = scmp.eq.s32.totalorder %s20, 1
    %p200 = por %p198, %p199
    %p202 = scmp.ne.s32.totalorder %s185, %s201
    %p203 = scmp.eq.s32.totalorder %s20, 0
    %p204 = por %p202, %p203
    %p205 = scmp.le.s32.totalorder 1, %s14
    %p206 = scmp.lt.s32.totalorder %s14, 3
    %p207 = pnand %p205, %p206
    %p208 = pneg %p207
    // Predicated region
    $region9: #{net_forward.1} parent=5 // pred_check
      _
    $region10: #{net_forward.1} parent=5 // pred_check_branch
      %210 = sbr.rel (%p207) target = $region12
    $region11: #{net_forward.1} parent=5 // pred_region
      %s211 = ssub.s32 %s14, 1
      // Predicated region
      $region13: #{net_forward.1} parent=11 // pred_check
        %p212 = pneg %p87
      $region14: #{net_forward.1} parent=11 // pred_check_branch
        %214 = sbr.rel (%p212) target = $region16
      $region15: #{net_forward.1} parent=11 // pred_region
        _
      $region16: #{net_forward.1} parent=11 // pred_fallthru
        _
      // Predicated region
      $region17: #{net_forward.1} parent=11 // pred_check
        %p215 = pneg %p108
      $region18: #{net_forward.1} parent=11 // pred_check_branch
        %217 = sbr.rel (%p215) target = $region20
      $region19: #{net_forward.1} parent=11 // pred_region
        _
      $region20: #{net_forward.1} parent=11 // pred_fallthru
        _
      // Predicated region
      $region21: #{net_forward.1} parent=11 // pred_check
        %p218 = pneg %p129
      $region22: #{net_forward.1} parent=11 // pred_check_branch
        %220 = sbr.rel (%p218) target = $region24
      $region23: #{net_forward.1} parent=11 // pred_region
        _
      $region24: #{net_forward.1} parent=11 // pred_fallthru
        _
      // Predicated region
      $region25: #{net_forward.1} parent=11 // pred_check
        %p221 = pneg %p150
      $region26: #{net_forward.1} parent=11 // pred_check_branch
        %223 = sbr.rel (%p221) target = $region28
      $region27: #{net_forward.1} parent=11 // pred_region
        _
      $region28: #{net_forward.1} parent=11 // pred_fallthru
        _
      // Predicated region
      $region29: #{net_forward.1} parent=11 // pred_check
        %p224 = pneg %p171
      $region30: #{net_forward.1} parent=11 // pred_check_branch
        %226 = sbr.rel (%p224) target = $region32
      $region31: #{net_forward.1} parent=11 // pred_region
        _
      $region32: #{net_forward.1} parent=11 // pred_fallthru
        _
    $region12: #{net_forward.1} parent=5 // pred_fallthru
      _
    %p227 = scmp.lt.s32.totalorder %s14, 2
    // Predicated region
    $region33: #{net_forward.1} parent=5 // pred_check
      %p228 = pneg %p227
    $region34: #{net_forward.1} parent=5 // pred_check_branch
      %230 = sbr.rel (%p228) target = $region36
    $region35: #{net_forward.1} parent=5 // pred_region
      // Predicated region
      $region37: #{net_forward.1} parent=35 // pred_check
        %p231 = pneg %p34
      $region38: #{net_forward.1} parent=35 // pred_check_branch
        %233 = sbr.rel (%p231) target = $region40
      $region39: #{net_forward.1} parent=35 // pred_region
        %p234 = scmp.lt.s32.totalorder %s14, 1
        %s235 = scalar_select %p234, %s14, 1
        %s236 = smul.addr %s235, 2
        %s237 = smul.addr %s236, 2
        %s238 = scalar_lea.vmem %s0, %s237
      $region40: #{net_forward.1} parent=35 // pred_fallthru
        _
      // Predicated region
      $region41: #{net_forward.1} parent=35 // pred_check
        %p239 = pneg %p60
      $region42: #{net_forward.1} parent=35 // pred_check_branch
        %241 = sbr.rel (%p239) target = $region44
      $region43: #{net_forward.1} parent=35 // pred_region
        %p242 = scmp.lt.s32.totalorder %s14, 1
        %s243 = scalar_select %p242, %s14, 1
        %s244 = smul.addr %s243, 4
        %s245 = smul.addr %s244, 2
        %s246 = scalar_lea.vmem %s1, %s245
      $region44: #{net_forward.1} parent=35 // pred_fallthru
        _
    $region36: #{net_forward.1} parent=5 // pred_fallthru
      _
    %p247 = scmp.le.s32.totalorder 1, %s14
    %p248 = scmp.lt.s32.totalorder %s14, 3
    %p249 = pnand %p247, %p248
    %p250 = pneg %p249
    // Predicated region
    $region45: #{net_forward.1} parent=5 // pred_check
      _
    $region46: #{net_forward.1} parent=5 // pred_check_branch
      %252 = sbr.rel (%p249) target = $region48
    $region47: #{net_forward.1} parent=5 // pred_region
      %s253 = ssub.s32 %s14, 1
      %p254 = scmp.lt.s32.totalorder %s19, 1
      %s255 = scalar_select %p254, %s19, 1
      %s256 = smul.addr %s255, 2
      %s257 = smul.addr %s256, 2
      %s258 = scalar_lea.vmem %s0, %s257
      %p259 = pneg %p40
      %p260 = pneg %p37
      %p261 = scmp.lt.s32.totalorder %s19, 1
      %s262 = scalar_select %p261, %s19, 1
      %s263 = smul.addr %s262, 4
      %s264 = smul.addr %s263, 2
      %s265 = scalar_lea.vmem %s1, %s264
      %p266 = pneg %p66
      %p267 = pneg %p63
      %p268 = pneg %p87
      %p269 = pneg %p84
      %p270 = pneg %p108
      %p271 = pneg %p105
      %p272 = pneg %p129
      %p273 = pneg %p126
      %p274 = pneg %p150
      %p275 = pneg %p147
      %p276 = pneg %p171
      %p277 = pneg %p168
      %p278 = pneg %p197
      %p279 = pneg %p194
      %p280 = scmp.lt.s32.totalorder %s19, 1
      %s281 = scalar_select %p280, %s19, 1
      %s282 = smul.addr %s281, 2
      %s283 = scalar_lea.vmem %s7, %s282
      %p284 = scmp.lt.s32.totalorder %s19, 1
      %s285 = scalar_select %p284, %s19, 1
      %s286 = smul.addr %s285, 2
      %s287 = smul.addr %s286, 2
      %s288 = scalar_lea.vmem %s0, %s287
      %p289 = scmp.lt.s32.totalorder %s19, 1
      %s290 = scalar_select %p289, %s19, 1
      %s291 = smul.addr %s290, 4
      %s292 = smul.addr %s291, 2
      %s293 = scalar_lea.vmem %s1, %s292
      %p294 = scmp.lt.s32.totalorder %s19, 1
      %s295 = scalar_select %p294, %s19, 1
      %s296 = smul.addr %s295, 2
      %s297 = scalar_lea.vmem %s7, %s296
      %v299 = vld [vmem:[%s288] sm:$0xf]
      %300 = vst [vmem:[#allocation2] sm:$0x3] %v299
      %v302 = vcombine.low %v299, %v299
      %v304 = vunpack.c.l.s4 1983009808
      %v305 = vunpack.c.0.s8 %v304
      %v306 = vlaneseq
      %v307 = vshrl.u32 %v306, 7
      %v308 = vsub.s32 %v305, %v307
      %v309 = vrot.slane %v302, %v308
      %310 = vrot.lane.b32.xlu0 %v309, 127
      %v311 = vpop.permute.xlu0 %310
      %v312 = vrot.slane %v311, 4
      %vm313 = vcmask 1039360
      %v314 = vsel %vm313, %v311, %v312
      %316 = vst [vmem:[#allocation2] sm:$0xc] %v314
      %v318 = vunpack.c.l.s4 1983009808
      %v319 = vunpack.c.0.s8 %v318
      %v320 = vlaneseq
      %v321 = vshrl.u32 %v320, 7
      %v322 = vsub.s32 %v319, %v321
      %v323 = vrot.slane %v299, %v322
      %324 = vrot.lane.b32.xlu0 %v323, 126
      %v325 = vpop.permute.xlu0 %324
      %v326 = vrot.slane %v325, 4
      %vm327 = vcmask 1031168
      %v328 = vsel %vm327, %v325, %v326
      %330 = vst [vmem:[#allocation2 + $0xc] sm:$0x3] %v328
      %331 = vrot.lane.b32.xlu0 %v309, 116
      %v332 = vpop.permute.xlu0 %331
      %v333 = vrot.slane %v332, 4
      %vm334 = vcmask 949248
      %v335 = vsel %vm334, %v332, %v333
      %337 = vst [vmem:[#allocation2 + $0xc] sm:$0xc] %v335
      %338 = vrot.lane.b32.xlu0 %v323, 115
      %v339 = vpop.permute.xlu0 %338
      %v340 = vrot.slane %v339, 4
      %vm341 = vcmask 941056
      %v342 = vsel %vm341, %v339, %v340
      %344 = vst [vmem:[#allocation2 + $0x18] sm:$0x3] %v342
      %345 = vrot.lane.b32.xlu0 %v309, 114
      %v346 = vpop.permute.xlu0 %345
      %v347 = vrot.slane %v346, 4
      %vm348 = vcmask 932864
      %v349 = vsel %vm348, %v346, %v347
      %351 = vst [vmem:[#allocation2 + $0x18] sm:$0xc] %v349
      %352 = vrot.lane.b32.xlu0 %v323, 104
      %v353 = vpop.permute.xlu0 %352
      %v354 = vrot.slane %v353, 4
      %vm355 = vcmask 850944
      %v356 = vsel %vm355, %v353, %v354
      %358 = vst [vmem:[#allocation2 + $0x24] sm:$0x3] %v356
      %359 = vrot.lane.b32.xlu0 %v309, 103
      %v360 = vpop.permute.xlu0 %359
      %v361 = vrot.slane %v360, 4
      %vm362 = vcmask 842752
      %v363 = vsel %vm362, %v360, %v361
      %365 = vst [vmem:[#allocation2 + $0x24] sm:$0xc] %v363
      %366 = vrot.lane.b32.xlu0 %v323, 102
      %v367 = vpop.permute.xlu0 %366
      %v368 = vrot.slane %v367, 4
      %vm369 = vcmask 834560
      %v370 = vsel %vm369, %v367, %v368
      %372 = vst [vmem:[#allocation2 + $0x30] sm:$0x3] %v370
      %v373 = vld [vmem:[%s2] sm:$0xf]
      %v374 = vld [vmem:[#allocation2] sm:$0xf]
      %v375 = vld [vmem:[#allocation2 + $0xc] sm:$0xf]
      %v376 = vld [vmem:[#allocation2 + $0x18] sm:$0xf]
      %v377 = vld [vmem:[#allocation2 + $0x24] sm:$0xf]
      %v378 = vld [vmem:[#allocation2 + $0x30] sm:$0x3]
      %v379 = vld [vmem:[%s3] sm:$0xff]
      %381 = vset.pattern.permute.xlu0 0
      %382 = vperm.xlu0 %381, %v379
      %v383 = vpop.permute.xlu0 %382
      %v390 = vunpack.c.l.b16 %v374
      %v391 = vunpack.c.l.b16 %v375
      %v392 = vunpack.c.l.b16 %v376
      %v393 = vunpack.c.l.b16 %v377
      %v394 = vunpack.c.l.b16 %v378
      %v395 = vpack.c.b16 %v391, %v390
      %v396 = vpack.c.b16 %v393, %v392
      %v397 = vpack.c.b16 %v394, %v394
      %vm400 = vcmask 293888
      %v402 = vsel %vm400, %v373, 0
      %vm404 = vcmask 1041408
      %v406 = vsel %vm404, %v397, 0
      %408 = vmatprep.subr.bf16.mxu0 0
      %409 = vmatpush1.bf16.msra.mxu0 %v395
      %410 = vmatprep.subr.bf16.mxu0 0
      %411 = vmatpush1.bf16.msra.mxu0 %v396
      %412 = vmatprep.subr.bf16.mxu0 0
      %413 = vmatpush1.bf16.msra.mxu0 %v406
      %414 = vmatprep.subr.bf16.mxu0 0
      %415 = vmatpush1.bf16.msra.mxu0 0
      %416 = vmatprep.subr.bf16.mxu0 0
      %417 = vmatpush1.bf16.msra.mxu0 0
      %418 = vmatprep.subr.bf16.mxu0 0
      %419 = vmatpush1.bf16.msra.mxu0 0
      %420 = vmatprep.subr.bf16.mxu0 0
      %421 = vmatpush1.bf16.msra.mxu0 0
      %422 = vmatprep.subr.bf16.mxu0 0
      %423 = vmatpush1.bf16.msra.mxu0 0
      %424 = vmatprep.subr.bf16.mxu0 0
      %425 = vmatpush1.bf16.msra.mxu0 0
      %426 = vmatprep.subr.bf16.mxu0 0
      %427 = vmatpush1.bf16.msra.mxu0 0
      %428 = vmatprep.subr.bf16.mxu0 0
      %429 = vmatpush1.bf16.msra.mxu0 0
      %430 = vmatprep.subr.bf16.mxu0 0
      %431 = vmatpush1.bf16.msra.mxu0 0
      %432 = vmatprep.subr.bf16.mxu0 0
      %433 = vmatpush1.bf16.msra.mxu0 0
      %434 = vmatprep.subr.bf16.mxu0 0
      %435 = vmatpush1.bf16.msra.mxu0 0
      %436 = vmatprep.subr.bf16.mxu0 0
      %437 = vmatpush1.bf16.msra.mxu0 0
      %438 = vmatprep.subr.bf16.mxu0 0
      %439 = vmatpush1.bf16.msra.mxu0 0
      %440 = vmatprep.mubr.bf16.mxu0 0
      %441 = vmatmul.mubr.bf16.gmra.mrb[0].mxu0 %v402
      %v442 = vpop.f32.mrb[0].mxu0
      %v443 = vadd.f32 %v383, %v442
      %v444 = vpop.f32.mrb[0].mxu0
      %v445 = vpop.f32.mrb[0].mxu0
      %v446 = vpop.f32.mrb[0].mxu0
      %447 = vdwg.mxu0
      %v448 = vmax.f32 %v443, 0.0
      %v449 = vpack.c.bf16 %v448, %v448
      %450 = vst [vmem:[#allocation4] sm:$0xf] %v449
      %451 = vst [vmem:[#allocation4 + $0x4] sm:$0xf] 0
      %v452 = vld [vmem:[#allocation4] sm:$0xff]
      %453 = vst [vmem:[#allocation3] sm:$0xf] %v452
      %455 = vrot.lane.b32.xlu0 %v452, 127
      %v456 = vpop.permute.xlu0 %455
      %v457 = vrot.slane %v456, 4
      %v458 = vsel %vm313, %v456, %v457
      %460 = vst [vmem:[#allocation3 + $0xc] sm:$0xf] %v458
      %461 = vrot.lane.b32.xlu0 %v452, 126
      %v462 = vpop.permute.xlu0 %461
      %v463 = vrot.slane %v462, 4
      %v464 = vsel %vm327, %v462, %v463
      %466 = vst [vmem:[#allocation3 + $0x18] sm:$0xf] %v464
      %467 = vrot.lane.b32.xlu0 %v452, 116
      %v468 = vpop.permute.xlu0 %467
      %v469 = vrot.slane %v468, 4
      %v470 = vsel %vm334, %v468, %v469
      %472 = vst [vmem:[#allocation3 + $0x24] sm:$0xf] %v470
      %473 = vrot.lane.b32.xlu0 %v452, 115
      %v474 = vpop.permute.xlu0 %473
      %v475 = vrot.slane %v474, 4
      %v476 = vsel %vm341, %v474, %v475
      %478 = vst [vmem:[#allocation3 + $0x30] sm:$0xf] %v476
      %479 = vrot.lane.b32.xlu0 %v452, 114
      %v480 = vpop.permute.xlu0 %479
      %v481 = vrot.slane %v480, 4
      %v482 = vsel %vm348, %v480, %v481
      %484 = vst [vmem:[#allocation3 + $0x3c] sm:$0xf] %v482
      %485 = vrot.lane.b32.xlu0 %v452, 104
      %v486 = vpop.permute.xlu0 %485
      %v487 = vrot.slane %v486, 4
      %v488 = vsel %vm355, %v486, %v487
      %490 = vst [vmem:[#allocation3 + $0x48] sm:$0xf] %v488
      %491 = vrot.lane.b32.xlu0 %v452, 103
      %v492 = vpop.permute.xlu0 %491
      %v493 = vrot.slane %v492, 4
      %v494 = vsel %vm362, %v492, %v493
      %496 = vst [vmem:[#allocation3 + $0x54] sm:$0xf] %v494
      %497 = vrot.lane.b32.xlu0 %v452, 102
      %v498 = vpop.permute.xlu0 %497
      %v499 = vrot.slane %v498, 4
      %v500 = vsel %vm369, %v498, %v499
      %502 = vst [vmem:[#allocation3 + $0x60] sm:$0xf] %v500
      %v503 = vld [vmem:[%s4] sm:$0xf]
      %v504 = vld [vmem:[#allocation3] sm:$0xf]
      %v505 = vld [vmem:[#allocation3 + $0xc] sm:$0xf]
      %v506 = vld [vmem:[#allocation3 + $0x18] sm:$0xf]
      %v507 = vld [vmem:[#allocation3 + $0x24] sm:$0xf]
      %v508 = vld [vmem:[#allocation3 + $0x30] sm:$0xf]
      %v509 = vld [vmem:[#allocation3 + $0x3c] sm:$0xf]
      %v510 = vld [vmem:[#allocation3 + $0x48] sm:$0xf]
      %v511 = vld [vmem:[#allocation3 + $0x54] sm:$0xf]
      %v512 = vld [vmem:[#allocation3 + $0x60] sm:$0xf]
      %v513 = vld [vmem:[%s5] sm:$0xff]
      %515 = vset.pattern.permute.xlu0 0
      %516 = vperm.xlu0 %515, %v513
      %v517 = vpop.permute.xlu0 %516
      %v528 = vunpack.c.l.b16 %v504
      %v529 = vunpack.c.l.b16 %v505
      %v530 = vunpack.c.l.b16 %v506
      %v531 = vunpack.c.l.b16 %v507
      %v532 = vunpack.c.l.b16 %v508
      %v533 = vunpack.c.l.b16 %v509
      %v534 = vunpack.c.l.b16 %v510
      %v535 = vunpack.c.l.b16 %v511
      %v536 = vunpack.c.l.b16 %v512
      %v537 = vpack.c.b16 %v529, %v528
      %v538 = vpack.c.b16 %v531, %v530
      %v539 = vpack.c.b16 %v533, %v532
      %v540 = vpack.c.b16 %v535, %v534
      %v541 = vpack.c.b16 %v536, %v536
      %vm546 = vcmask 588800
      %v548 = vsel %vm546, %v503, 0
      %vm550 = vcmask 1043456
      %v552 = vsel %vm550, %v541, 0
      %554 = vmatprep.subr.bf16.mxu0 0
      %555 = vmatpush1.bf16.msra.mxu0 %v537
      %556 = vmatprep.subr.bf16.mxu0 0
      %557 = vmatpush1.bf16.msra.mxu0 %v538
      %558 = vmatprep.subr.bf16.mxu0 0
      %559 = vmatpush1.bf16.msra.mxu0 %v539
      %560 = vmatprep.subr.bf16.mxu0 0
      %561 = vmatpush1.bf16.msra.mxu0 %v540
      %562 = vmatprep.subr.bf16.mxu0 0
      %563 = vmatpush1.bf16.msra.mxu0 %v552
      %564 = vmatprep.subr.bf16.mxu0 0
      %565 = vmatpush1.bf16.msra.mxu0 0
      %566 = vmatprep.subr.bf16.mxu0 0
      %567 = vmatpush1.bf16.msra.mxu0 0
      %568 = vmatprep.subr.bf16.mxu0 0
      %569 = vmatpush1.bf16.msra.mxu0 0
      %570 = vmatprep.subr.bf16.mxu0 0
      %571 = vmatpush1.bf16.msra.mxu0 0
      %572 = vmatprep.subr.bf16.mxu0 0
      %573 = vmatpush1.bf16.msra.mxu0 0
      %574 = vmatprep.subr.bf16.mxu0 0
      %575 = vmatpush1.bf16.msra.mxu0 0
      %576 = vmatprep.subr.bf16.mxu0 0
      %577 = vmatpush1.bf16.msra.mxu0 0
      %578 = vmatprep.subr.bf16.mxu0 0
      %579 = vmatpush1.bf16.msra.mxu0 0
      %580 = vmatprep.subr.bf16.mxu0 0
      %581 = vmatpush1.bf16.msra.mxu0 0
      %582 = vmatprep.subr.bf16.mxu0 0
      %583 = vmatpush1.bf16.msra.mxu0 0
      %584 = vmatprep.subr.bf16.mxu0 0
      %585 = vmatpush1.bf16.msra.mxu0 0
      %586 = vmatprep.mubr.bf16.mxu0 0
      %587 = vmatmul.mubr.bf16.gmra.mrb[0].mxu0 %v548
      %v588 = vpop.f32.mrb[0].mxu0
      %v589 = vadd.f32 %v517, %v588
      %v590 = vpop.f32.mrb[0].mxu0
      %v591 = vpop.f32.mrb[0].mxu0
      %v592 = vpop.f32.mrb[0].mxu0
      %593 = vdwg.mxu0
      %v594 = vmax.f32 %v589, 0.0
      %v595 = vpack.c.bf16 %v594, %v594
      %596 = vst [vmem:[#allocation5] sm:$0xf] %v595
      %v597 = vld [vmem:[%s293] sm:$0xff]
      %v599 = vcombine.high %v597, %v597
      %v601 = vunpack.c.l.s4 1983009808
      %v602 = vunpack.c.0.s8 %v601
      %v603 = vlaneseq
      %v604 = vshrl.u32 %v603, 7
      %v605 = vsub.s32 %v602, %v604
      %v606 = vrot.slane %v597, %v605
      %v608 = vunpack.c.l.s4 1983009808
      %v609 = vunpack.c.0.s8 %v608
      %v610 = vlaneseq
      %v611 = vshrl.u32 %v610, 7
      %v612 = vsub.s32 %v609, %v611
      %v613 = vrot.slane %v599, %v612
      %616 = vst [vmem:[#allocation2] sm:$0x33] %v606
      %617 = vst [vmem:[#allocation2 + $0x8] sm:$0x3] %v613
      %v618 = vcombine.low %v597, %v597
      %v620 = vunpack.c.l.s4 1983009808
      %v621 = vunpack.c.0.s8 %v620
      %v622 = vlaneseq
      %v623 = vshrl.u32 %v622, 7
      %v624 = vsub.s32 %v621, %v623
      %v625 = vrot.slane %v618, %v624
      %626 = vrot.lane.b32.xlu0 %v625, 127
      %v627 = vpop.permute.xlu0 %626
      %628 = vrot.lane.b32.xlu0 %v606, 127
      %v629 = vpop.permute.xlu0 %628
      %v630 = vrot.slane %v627, 4
      %v631 = vrot.slane %v629, 4
      %vm632 = vcmask 1043456
      %v633 = vsel %vm632, %v630, %v631
      %v634 = vsel %vm313, %v627, %v633
      %v635 = vsel %vm313, %v629, %v631
      %638 = vst [vmem:[#allocation2] sm:$0xcc] %v634
      %639 = vst [vmem:[#allocation2 + $0x8] sm:$0xc] %v635
      %640 = vrot.lane.b32.xlu0 %v606, 126
      %v641 = vpop.permute.xlu0 %640
      %642 = vrot.lane.b32.xlu0 %v613, 126
      %v643 = vpop.permute.xlu0 %642
      %v644 = vrot.slane %v641, 4
      %v645 = vrot.slane %v643, 4
      %v646 = vsel %vm632, %v644, %v645
      %v647 = vsel %vm327, %v641, %v646
      %v648 = vsel %vm327, %v643, %v645
      %651 = vst [vmem:[#allocation2 + $0xc] sm:$0x33] %v647
      %652 = vst [vmem:[#allocation2 + $0x14] sm:$0x3] %v648
      %653 = vrot.lane.b32.xlu0 %v625, 108
      %v654 = vpop.permute.xlu0 %653
      %655 = vrot.lane.b32.xlu0 %v606, 108
      %v656 = vpop.permute.xlu0 %655
      %v657 = vrot.slane %v654, 4
      %v658 = vrot.slane %v656, 4
      %v659 = vsel %vm632, %v657, %v658
      %vm660 = vcmask 883712
      %v661 = vsel %vm660, %v654, %v659
      %v662 = vsel %vm660, %v656, %v658
      %665 = vst [vmem:[#allocation2 + $0xc] sm:$0xcc] %v661
      %666 = vst [vmem:[#allocation2 + $0x14] sm:$0xc] %v662
      %667 = vrot.lane.b32.xlu0 %v606, 107
      %v668 = vpop.permute.xlu0 %667
      %669 = vrot.lane.b32.xlu0 %v613, 107
      %v670 = vpop.permute.xlu0 %669
      %v671 = vrot.slane %v668, 4
      %v672 = vrot.slane %v670, 4
      %v673 = vsel %vm632, %v671, %v672
      %vm674 = vcmask 875520
      %v675 = vsel %vm674, %v668, %v673
      %v676 = vsel %vm674, %v670, %v672
      %679 = vst [vmem:[#allocation2 + $0x18] sm:$0x33] %v675
      %680 = vst [vmem:[#allocation2 + $0x20] sm:$0x3] %v676
      %681 = vrot.lane.b32.xlu0 %v625, 106
      %v682 = vpop.permute.xlu0 %681
      %683 = vrot.lane.b32.xlu0 %v606, 106
      %v684 = vpop.permute.xlu0 %683
      %v685 = vrot.slane %v682, 4
      %v686 = vrot.slane %v684, 4
      %v687 = vsel %vm632, %v685, %v686
      %vm688 = vcmask 867328
      %v689 = vsel %vm688, %v682, %v687
      %v690 = vsel %vm688, %v684, %v686
      %693 = vst [vmem:[#allocation2 + $0x18] sm:$0xcc] %v689
      %694 = vst [vmem:[#allocation2 + $0x20] sm:$0xc] %v690
      %695 = vrot.lane.b32.xlu0 %v606, 88
      %v696 = vpop.permute.xlu0 %695
      %697 = vrot.lane.b32.xlu0 %v613, 88
      %v698 = vpop.permute.xlu0 %697
      %v699 = vrot.slane %v696, 4
      %v700 = vrot.slane %v698, 4
      %v701 = vsel %vm632, %v699, %v700
      %vm702 = vcmask 719872
      %v703 = vsel %vm702, %v696, %v701
      %v704 = vsel %vm702, %v698, %v700
      %707 = vst [vmem:[#allocation2 + $0x24] sm:$0x33] %v703
      %708 = vst [vmem:[#allocation2 + $0x2c] sm:$0x3] %v704
      %709 = vrot.lane.b32.xlu0 %v625, 87
      %v710 = vpop.permute.xlu0 %709
      %711 = vrot.lane.b32.xlu0 %v606, 87
      %v712 = vpop.permute.xlu0 %711
      %v713 = vrot.slane %v710, 4
      %v714 = vrot.slane %v712, 4
      %v715 = vsel %vm632, %v713, %v714
      %vm716 = vcmask 711680
      %v717 = vsel %vm716, %v710, %v715
      %v718 = vsel %vm716, %v712, %v714
      %721 = vst [vmem:[#allocation2 + $0x24] sm:$0xcc] %v717
      %722 = vst [vmem:[#allocation2 + $0x2c] sm:$0xc] %v718
      %723 = vrot.lane.b32.xlu0 %v606, 86
      %v724 = vpop.permute.xlu0 %723
      %725 = vrot.lane.b32.xlu0 %v613, 86
      %v726 = vpop.permute.xlu0 %725
      %v727 = vrot.slane %v724, 4
      %v728 = vrot.slane %v726, 4
      %v729 = vsel %vm632, %v727, %v728
      %vm730 = vcmask 703488
      %v731 = vsel %vm730, %v724, %v729
      %v732 = vsel %vm730, %v726, %v728
      %735 = vst [vmem:[#allocation2 + $0x30] sm:$0x33] %v731
      %736 = vst [vmem:[#allocation2 + $0x38] sm:$0x3] %v732
      %v737 = vld [vmem:[%s2] sm:$0xf]
      %v738 = vld [vmem:[#allocation2] sm:$0xff]
      %v739 = vld [vmem:[#allocation2 + $0x8] sm:$0xf]
      %v740 = vld [vmem:[#allocation2 + $0xc] sm:$0xff]
      %v741 = vld [vmem:[#allocation2 + $0x14] sm:$0xf]
      %v742 = vld [vmem:[#allocation2 + $0x18] sm:$0xff]
      %v743 = vld [vmem:[#allocation2 + $0x20] sm:$0xf]
      %v744 = vld [vmem:[#allocation2 + $0x24] sm:$0xff]
      %v745 = vld [vmem:[#allocation2 + $0x2c] sm:$0xf]
      %v746 = vld [vmem:[#allocation2 + $0x30] sm:$0x33]
      %v747 = vld [vmem:[#allocation2 + $0x38] sm:$0x3]
      %v748 = vld [vmem:[%s3] sm:$0xff]
      %750 = vset.pattern.permute.xlu0 0
      %751 = vperm.xlu0 %750, %v748
      %v752 = vpop.permute.xlu0 %751
      %v764 = vunpack.c.l.b16 %v738
      %v765 = vunpack.c.h.b16 %v738
      %v766 = vunpack.c.l.b16 %v739
      %v767 = vunpack.c.l.b16 %v740
      %v768 = vunpack.c.h.b16 %v740
      %v769 = vunpack.c.l.b16 %v741
      %v770 = vunpack.c.l.b16 %v742
      %v771 = vunpack.c.h.b16 %v742
      %v772 = vunpack.c.l.b16 %v743
      %v773 = vunpack.c.l.b16 %v744
      %v774 = vunpack.c.h.b16 %v744
      %v775 = vunpack.c.l.b16 %v745
      %v776 = vunpack.c.l.b16 %v746
      %v777 = vunpack.c.h.b16 %v746
      %v778 = vunpack.c.l.b16 %v747
      %v779 = vpack.c.b16 %v767, %v764
      %v780 = vpack.c.b16 %v768, %v765
      %v781 = vpack.c.b16 %v769, %v766
      %v782 = vpack.c.b16 %v773, %v770
      %v783 = vpack.c.b16 %v774, %v771
      %v784 = vpack.c.b16 %v775, %v772
      %v785 = vpack.c.b16 %v776, %v776
      %v786 = vpack.c.b16 %v777, %v777
      %v787 = vpack.c.b16 %v778, %v778
      %v795 = vsel %vm400, %v737, 0
      %v798 = vsel %vm404, %v785, 0
      %v801 = vsel %vm404, %v786, 0
      %v804 = vsel %vm404, %v787, 0
      %806 = vmatprep.subr.bf16.mxu0 %v780
      %807 = vmatpush1.bf16.msra.mxu0 %v779
      %808 = vmatprep.subr.bf16.mxu0 %v783
      %809 = vmatpush1.bf16.msra.mxu0 %v782
      %810 = vmatprep.subr.bf16.mxu0 %v801
      %811 = vmatpush1.bf16.msra.mxu0 %v798
      %812 = vmatprep.subr.bf16.mxu0 0
      %813 = vmatpush1.bf16.msra.mxu0 0
      %814 = vmatprep.subr.bf16.mxu0 0
      %815 = vmatpush1.bf16.msra.mxu0 0
      %816 = vmatprep.subr.bf16.mxu0 0
      %817 = vmatpush1.bf16.msra.mxu0 0
      %818 = vmatprep.subr.bf16.mxu0 0
      %819 = vmatpush1.bf16.msra.mxu0 0
      %820 = vmatprep.subr.bf16.mxu0 0
      %821 = vmatpush1.bf16.msra.mxu0 0
      %822 = vmatprep.subr.bf16.mxu0 0
      %823 = vmatpush1.bf16.msra.mxu0 0
      %824 = vmatprep.subr.bf16.mxu0 0
      %825 = vmatpush1.bf16.msra.mxu0 0
      %826 = vmatprep.subr.bf16.mxu0 0
      %827 = vmatpush1.bf16.msra.mxu0 0
      %828 = vmatprep.subr.bf16.mxu0 0
      %829 = vmatpush1.bf16.msra.mxu0 0
      %830 = vmatprep.subr.bf16.mxu0 0
      %831 = vmatpush1.bf16.msra.mxu0 0
      %832 = vmatprep.subr.bf16.mxu0 0
      %833 = vmatpush1.bf16.msra.mxu0 0
      %834 = vmatprep.subr.bf16.mxu0 0
      %835 = vmatpush1.bf16.msra.mxu0 0
      %836 = vmatprep.subr.bf16.mxu0 0
      %837 = vmatpush1.bf16.msra.mxu0 0
      %838 = vmatprep.mubr.bf16.mxu0 0
      %839 = vmatmul.mubr.bf16.gmra.mrb[0].mxu0 %v795
      %v840 = vpop.f32.mrb[0].mxu0
      %v841 = vadd.f32 %v752, %v840
      %v842 = vpop.f32.mrb[0].mxu0
      %v843 = vadd.f32 %v752, %v842
      %v844 = vpop.f32.mrb[0].mxu0
      %v845 = vpop.f32.mrb[0].mxu0
      %846 = vdwg.mxu0
      %847 = vmatprep.subr.bf16.mxu0 0
      %848 = vmatpush1.bf16.msra.mxu0 %v781
      %849 = vmatprep.subr.bf16.mxu0 0
      %850 = vmatpush1.bf16.msra.mxu0 %v784
      %851 = vmatprep.subr.bf16.mxu0 0
      %852 = vmatpush1.bf16.msra.mxu0 %v804
      %853 = vmatprep.subr.bf16.mxu0 0
      %854 = vmatpush1.bf16.msra.mxu0 0
      %855 = vmatprep.subr.bf16.mxu0 0
      %856 = vmatpush1.bf16.msra.mxu0 0
      %857 = vmatprep.subr.bf16.mxu0 0
      %858 = vmatpush1.bf16.msra.mxu0 0
      %859 = vmatprep.subr.bf16.mxu0 0
      %860 = vmatpush1.bf16.msra.mxu0 0
      %861 = vmatprep.subr.bf16.mxu0 0
      %862 = vmatpush1.bf16.msra.mxu0 0
      %863 = vmatprep.subr.bf16.mxu0 0
      %864 = vmatpush1.bf16.msra.mxu0 0
      %865 = vmatprep.subr.bf16.mxu0 0
      %866 = vmatpush1.bf16.msra.mxu0 0
      %867 = vmatprep.subr.bf16.mxu0 0
      %868 = vmatpush1.bf16.msra.mxu0 0
      %869 = vmatprep.subr.bf16.mxu0 0
      %870 = vmatpush1.bf16.msra.mxu0 0
      %871 = vmatprep.subr.bf16.mxu0 0
      %872 = vmatpush1.bf16.msra.mxu0 0
      %873 = vmatprep.subr.bf16.mxu0 0
      %874 = vmatpush1.bf16.msra.mxu0 0
      %875 = vmatprep.subr.bf16.mxu0 0
      %876 = vmatpush1.bf16.msra.mxu0 0
      %877 = vmatprep.subr.bf16.mxu0 0
      %878 = vmatpush1.bf16.msra.mxu0 0
      %879 = vmatprep.mubr.bf16.mxu0 0
      %880 = vmatmul.mubr.bf16.gmra.mrb[0].mxu0 %v795
      %v881 = vpop.f32.mrb[0].mxu0
      %v882 = vadd.f32 %v752, %v881
      %v883 = vpop.f32.mrb[0].mxu0
      %v884 = vpop.f32.mrb[0].mxu0
      %v885 = vpop.f32.mrb[0].mxu0
      %886 = vdwg.mxu0
      %v887 = vmax.f32 %v841, 0.0
      %v888 = vmax.f32 %v843, 0.0
      %v889 = vmax.f32 %v882, 0.0
      %v890 = vpack.c.bf16 %v887, %v887
      %v891 = vpack.c.bf16 %v888, %v888
      %v892 = vpack.c.bf16 %v889, %v889
      %v896 = vunpack.c.l.b16 %v890
      %v897 = vunpack.c.l.b16 %v891
      %v898 = vunpack.c.l.b16 %v892
      %v899 = vpack.c.b16 %v897, %v896
      %v900 = vpack.c.b16 %v898, %v898
      %903 = vst [vmem:[#allocation6] sm:$0xff] %v899
      %904 = vst [vmem:[#allocation6 + $0x8] sm:$0xf] %v900
      %905 = vst [vmem:[#allocation6 + $0xc] sm:$0xf] 0
      %v906 = vld [vmem:[#allocation6] sm:$0xff]
      %v907 = vld [vmem:[#allocation6 + $0x8] sm:$0xff]
      %908 = vst [vmem:[#allocation3] sm:$0xff] %v906
      %909 = vst [vmem:[#allocation3 + $0x8] sm:$0xf] %v907
      %912 = vrot.lane.b32.xlu0 %v906, 127
      %v913 = vpop.permute.xlu0 %912
      %914 = vrot.lane.b32.xlu0 %v907, 127
      %v915 = vpop.permute.xlu0 %914
      %v916 = vrot.slane %v913, 4
      %v917 = vrot.slane %v915, 4
      %v918 = vsel %vm632, %v916, %v917
      %v919 = vsel %vm313, %v913, %v918
      %v920 = vsel %vm313, %v915, %v917
      %923 = vst [vmem:[#allocation3 + $0xc] sm:$0xff] %v919
      %924 = vst [vmem:[#allocation3 + $0x14] sm:$0xf] %v920
      %925 = vrot.lane.b32.xlu0 %v906, 126
      %v926 = vpop.permute.xlu0 %925
      %927 = vrot.lane.b32.xlu0 %v907, 126
      %v928 = vpop.permute.xlu0 %927
      %v929 = vrot.slane %v926, 4
      %v930 = vrot.slane %v928, 4
      %v931 = vsel %vm632, %v929, %v930
      %v932 = vsel %vm327, %v926, %v931
      %v933 = vsel %vm327, %v928, %v930
      %936 = vst [vmem:[#allocation3 + $0x18] sm:$0xff] %v932
      %937 = vst [vmem:[#allocation3 + $0x20] sm:$0xf] %v933
      %938 = vrot.lane.b32.xlu0 %v906, 108
      %v939 = vpop.permute.xlu0 %938
      %940 = vrot.lane.b32.xlu0 %v907, 108
      %v941 = vpop.permute.xlu0 %940
      %v942 = vrot.slane %v939, 4
      %v943 = vrot.slane %v941, 4
      %v944 = vsel %vm632, %v942, %v943
      %v945 = vsel %vm660, %v939, %v944
      %v946 = vsel %vm660, %v941, %v943
      %949 = vst [vmem:[#allocation3 + $0x24] sm:$0xff] %v945
      %950 = vst [vmem:[#allocation3 + $0x2c] sm:$0xf] %v946
      %951 = vrot.lane.b32.xlu0 %v906, 107
      %v952 = vpop.permute.xlu0 %951
      %953 = vrot.lane.b32.xlu0 %v907, 107
      %v954 = vpop.permute.xlu0 %953
      %v955 = vrot.slane %v952, 4
      %v956 = vrot.slane %v954, 4
      %v957 = vsel %vm632, %v955, %v956
      %v958 = vsel %vm674, %v952, %v957
      %v959 = vsel %vm674, %v954, %v956
      %962 = vst [vmem:[#allocation3 + $0x30] sm:$0xff] %v958
      %963 = vst [vmem:[#allocation3 + $0x38] sm:$0xf] %v959
      %964 = vrot.lane.b32.xlu0 %v906, 106
      %v965 = vpop.permute.xlu0 %964
      %966 = vrot.lane.b32.xlu0 %v907, 106
      %v967 = vpop.permute.xlu0 %966
      %v968 = vrot.slane %v965, 4
      %v969 = vrot.slane %v967, 4
      %v970 = vsel %vm632, %v968, %v969
      %v971 = vsel %vm688, %v965, %v970
      %v972 = vsel %vm688, %v967, %v969
      %975 = vst [vmem:[#allocation3 + $0x3c] sm:$0xff] %v971
      %976 = vst [vmem:[#allocation3 + $0x44] sm:$0xf] %v972
      %977 = vrot.lane.b32.xlu0 %v906, 88
      %v978 = vpop.permute.xlu0 %977
      %979 = vrot.lane.b32.xlu0 %v907, 88
      %v980 = vpop.permute.xlu0 %979
      %v981 = vrot.slane %v978, 4
      %v982 = vrot.slane %v980, 4
      %v983 = vsel %vm632, %v981, %v982
      %v984 = vsel %vm702, %v978, %v983
      %v985 = vsel %vm702, %v980, %v982
      %988 = vst [vmem:[#allocation3 + $0x48] sm:$0xff] %v984
      %989 = vst [vmem:[#allocation3 + $0x50] sm:$0xf] %v985
      %990 = vrot.lane.b32.xlu0 %v906, 87
      %v991 = vpop.permute.xlu0 %990
      %992 = vrot.lane.b32.xlu0 %v907, 87
      %v993 = vpop.permute.xlu0 %992
      %v994 = vrot.slane %v991, 4
      %v995 = vrot.slane %v993, 4
      %v996 = vsel %vm632, %v994, %v995
      %v997 = vsel %vm716, %v991, %v996
      %v998 = vsel %vm716, %v993, %v995
      %1001 = vst [vmem:[#allocation3 + $0x54] sm:$0xff] %v997
      %1002 = vst [vmem:[#allocation3 + $0x5c] sm:$0xf] %v998
      %1003 = vrot.lane.b32.xlu0 %v906, 86
      %v1004 = vpop.permute.xlu0 %1003
      %1005 = vrot.lane.b32.xlu0 %v907, 86
      %v1006 = vpop.permute.xlu0 %1005
      %v1007 = vrot.slane %v1004, 4
      %v1008 = vrot.slane %v1006, 4
      %v1009 = vsel %vm632, %v1007, %v1008
      %v1010 = vsel %vm730, %v1004, %v1009
      %v1011 = vsel %vm730, %v1006, %v1008
      %1014 = vst [vmem:[#allocation3 + $0x60] sm:$0xff] %v1010
      %1015 = vst [vmem:[#allocation3 + $0x68] sm:$0xf] %v1011
      %v1016 = vld [vmem:[%s4] sm:$0xf]
      %v1017 = vld [vmem:[#allocation3] sm:$0xff]
      %v1018 = vld [vmem:[#allocation3 + $0x8] sm:$0xf]
      %v1019 = vld [vmem:[#allocation3 + $0xc] sm:$0xff]
      %v1020 = vld [vmem:[#allocation3 + $0x14] sm:$0xf]
      %v1021 = vld [vmem:[#allocation3 + $0x18] sm:$0xff]
      %v1022 = vld [vmem:[#allocation3 + $0x20] sm:$0xf]
      %v1023 = vld [vmem:[#allocation3 + $0x24] sm:$0xff]
      %v1024 = vld [vmem:[#allocation3 + $0x2c] sm:$0xf]
      %v1025 = vld [vmem:[#allocation3 + $0x30] sm:$0xff]
      %v1026 = vld [vmem:[#allocation3 + $0x38] sm:$0xf]
      %v1027 = vld [vmem:[#allocation3 + $0x3c] sm:$0xff]
      %v1028 = vld [vmem:[#allocation3 + $0x44] sm:$0xf]
      %v1029 = vld [vmem:[#allocation3 + $0x48] sm:$0xff]
      %v1030 = vld [vmem:[#allocation3 + $0x50] sm:$0xf]
      %v1031 = vld [vmem:[#allocation3 + $0x54] sm:$0xff]
      %v1032 = vld [vmem:[#allocation3 + $0x5c] sm:$0xf]
      %v1033 = vld [vmem:[#allocation3 + $0x60] sm:$0xff]
      %v1034 = vld [vmem:[#allocation3 + $0x68] sm:$0xf]
      %v1035 = vld [vmem:[%s5] sm:$0xff]
      %1037 = vset.pattern.permute.xlu0 0
      %1038 = vperm.xlu0 %1037, %v1035
      %v1039 = vpop.permute.xlu0 %1038
      %v1059 = vunpack.c.l.b16 %v1017
      %v1060 = vunpack.c.h.b16 %v1017
      %v1061 = vunpack.c.l.b16 %v1018
      %v1062 = vunpack.c.l.b16 %v1019
      %v1063 = vunpack.c.h.b16 %v1019
      %v1064 = vunpack.c.l.b16 %v1020
      %v1065 = vunpack.c.l.b16 %v1021
      %v1066 = vunpack.c.h.b16 %v1021
      %v1067 = vunpack.c.l.b16 %v1022
      %v1068 = vunpack.c.l.b16 %v1023
      %v1069 = vunpack.c.h.b16 %v1023
      %v1070 = vunpack.c.l.b16 %v1024
      %v1071 = vunpack.c.l.b16 %v1025
      %v1072 = vunpack.c.h.b16 %v1025
      %v1073 = vunpack.c.l.b16 %v1026
      %v1074 = vunpack.c.l.b16 %v1027
      %v1075 = vunpack.c.h.b16 %v1027
      %v1076 = vunpack.c.l.b16 %v1028
      %v1077 = vunpack.c.l.b16 %v1029
      %v1078 = vunpack.c.h.b16 %v1029
      %v1079 = vunpack.c.l.b16 %v1030
      %v1080 = vunpack.c.l.b16 %v1031
      %v1081 = vunpack.c.h.b16 %v1031
      %v1082 = vunpack.c.l.b16 %v1032
      %v1083 = vunpack.c.l.b16 %v1033
      %v1084 = vunpack.c.h.b16 %v1033
      %v1085 = vunpack.c.l.b16 %v1034
      %v1086 = vpack.c.b16 %v1062, %v1059
      %v1087 = vpack.c.b16 %v1063, %v1060
      %v1088 = vpack.c.b16 %v1064, %v1061
      %v1089 = vpack.c.b16 %v1068, %v1065
      %v1090 = vpack.c.b16 %v1069, %v1066
      %v1091 = vpack.c.b16 %v1070, %v1067
      %v1092 = vpack.c.b16 %v1074, %v1071
      %v1093 = vpack.c.b16 %v1075, %v1072
      %v1094 = vpack.c.b16 %v1076, %v1073
      %v1095 = vpack.c.b16 %v1080, %v1077
      %v1096 = vpack.c.b16 %v1081, %v1078
      %v1097 = vpack.c.b16 %v1082, %v1079
      %v1098 = vpack.c.b16 %v1083, %v1083
      %v1099 = vpack.c.b16 %v1084, %v1084
      %v1100 = vpack.c.b16 %v1085, %v1085
      %v1114 = vsel %vm546, %v1016, 0
      %v1117 = vsel %vm550, %v1098, 0
      %v1120 = vsel %vm550, %v1099, 0
      %v1123 = vsel %vm550, %v1100, 0
      %1125 = vmatprep.subr.bf16.mxu0 %v1087
      %1126 = vmatpush1.bf16.msra.mxu0 %v1086
      %1127 = vmatprep.subr.bf16.mxu0 %v1090
      %1128 = vmatpush1.bf16.msra.mxu0 %v1089
      %1129 = vmatprep.subr.bf16.mxu0 %v1093
      %1130 = vmatpush1.bf16.msra.mxu0 %v1092
      %1131 = vmatprep.subr.bf16.mxu0 %v1096
      %1132 = vmatpush1.bf16.msra.mxu0 %v1095
      %1133 = vmatprep.subr.bf16.mxu0 %v1120
      %1134 = vmatpush1.bf16.msra.mxu0 %v1117
      %1135 = vmatprep.subr.bf16.mxu0 0
      %1136 = vmatpush1.bf16.msra.mxu0 0
      %1137 = vmatprep.subr.bf16.mxu0 0
      %1138 = vmatpush1.bf16.msra.mxu0 0
      %1139 = vmatprep.subr.bf16.mxu0 0
      %1140 = vmatpush1.bf16.msra.mxu0 0
      %1141 = vmatprep.subr.bf16.mxu0 0
      %1142 = vmatpush1.bf16.msra.mxu0 0
      %1143 = vmatprep.subr.bf16.mxu0 0
      %1144 = vmatpush1.bf16.msra.mxu0 0
      %1145 = vmatprep.subr.bf16.mxu0 0
      %1146 = vmatpush1.bf16.msra.mxu0 0
      %1147 = vmatprep.subr.bf16.mxu0 0
      %1148 = vmatpush1.bf16.msra.mxu0 0
      %1149 = vmatprep.subr.bf16.mxu0 0
      %1150 = vmatpush1.bf16.msra.mxu0 0
      %1151 = vmatprep.subr.bf16.mxu0 0
      %1152 = vmatpush1.bf16.msra.mxu0 0
      %1153 = vmatprep.subr.bf16.mxu0 0
      %1154 = vmatpush1.bf16.msra.mxu0 0
      %1155 = vmatprep.subr.bf16.mxu0 0
      %1156 = vmatpush1.bf16.msra.mxu0 0
      %1157 = vmatprep.mubr.bf16.mxu0 0
      %1158 = vmatmul.mubr.bf16.gmra.mrb[0].mxu0 %v1114
      %v1159 = vpop.f32.mrb[0].mxu0
      %v1160 = vadd.f32 %v1039, %v1159
      %v1161 = vpop.f32.mrb[0].mxu0
      %v1162 = vadd.f32 %v1039, %v1161
      %v1163 = vpop.f32.mrb[0].mxu0
      %v1164 = vpop.f32.mrb[0].mxu0
      %1165 = vdwg.mxu0
      %1166 = vmatprep.subr.bf16.mxu0 0
      %1167 = vmatpush1.bf16.msra.mxu0 %v1088
      %1168 = vmatprep.subr.bf16.mxu0 0
      %1169 = vmatpush1.bf16.msra.mxu0 %v1091
      %1170 = vmatprep.subr.bf16.mxu0 0
      %1171 = vmatpush1.bf16.msra.mxu0 %v1094
      %1172 = vmatprep.subr.bf16.mxu0 0
      %1173 = vmatpush1.bf16.msra.mxu0 %v1097
      %1174 = vmatprep.subr.bf16.mxu0 0
      %1175 = vmatpush1.bf16.msra.mxu0 %v1123
      %1176 = vmatprep.subr.bf16.mxu0 0
      %1177 = vmatpush1.bf16.msra.mxu0 0
      %1178 = vmatprep.subr.bf16.mxu0 0
      %1179 = vmatpush1.bf16.msra.mxu0 0
      %1180 = vmatprep.subr.bf16.mxu0 0
      %1181 = vmatpush1.bf16.msra.mxu0 0
      %1182 = vmatprep.subr.bf16.mxu0 0
      %1183 = vmatpush1.bf16.msra.mxu0 0
      %1184 = vmatprep.subr.bf16.mxu0 0
      %1185 = vmatpush1.bf16.msra.mxu0 0
      %1186 = vmatprep.subr.bf16.mxu0 0
      %1187 = vmatpush1.bf16.msra.mxu0 0
      %1188 = vmatprep.subr.bf16.mxu0 0
      %1189 = vmatpush1.bf16.msra.mxu0 0
      %1190 = vmatprep.subr.bf16.mxu0 0
      %1191 = vmatpush1.bf16.msra.mxu0 0
      %1192 = vmatprep.subr.bf16.mxu0 0
      %1193 = vmatpush1.bf16.msra.mxu0 0
      %1194 = vmatprep.subr.bf16.mxu0 0
      %1195 = vmatpush1.bf16.msra.mxu0 0
      %1196 = vmatprep.subr.bf16.mxu0 0
      %1197 = vmatpush1.bf16.msra.mxu0 0
      %1198 = vmatprep.mubr.bf16.mxu0 0
      %1199 = vmatmul.mubr.bf16.gmra.mrb[0].mxu0 %v1114
      %v1200 = vpop.f32.mrb[0].mxu0
      %v1201 = vadd.f32 %v1039, %v1200
      %v1202 = vpop.f32.mrb[0].mxu0
      %v1203 = vpop.f32.mrb[0].mxu0
      %v1204 = vpop.f32.mrb[0].mxu0
      %1205 = vdwg.mxu0
      %v1206 = vmax.f32 %v1160, 0.0
      %v1207 = vmax.f32 %v1162, 0.0
      %v1208 = vmax.f32 %v1201, 0.0
      %v1209 = vpack.c.bf16 %v1206, %v1206
      %v1210 = vpack.c.bf16 %v1207, %v1207
      %v1211 = vpack.c.bf16 %v1208, %v1208
      %v1215 = vunpack.c.l.b16 %v1209
      %v1216 = vunpack.c.l.b16 %v1210
      %v1217 = vunpack.c.l.b16 %v1211
      %v1218 = vpack.c.b16 %v1216, %v1215
      %v1219 = vpack.c.b16 %v1217, %v1217
      %1222 = vst [vmem:[#allocation7] sm:$0xff] %v1218
      %1223 = vst [vmem:[#allocation7 + $0x8] sm:$0xf] %v1219
      %1224 = vst [vmem:[#allocation7 + $0xc] sm:$0xf] 0
      %v1225 = vld [vmem:[#allocation5] sm:$0xf]
      %v1226 = vunpack.c.l.bf16 %v1225
      %v1227 = vld [vmem:[#allocation7] sm:$0xff]
      %v1228 = vld [vmem:[#allocation7 + $0x8] sm:$0xff]
      %v1229 = vunpack.c.l.bf16 %v1227
      %v1230 = vunpack.c.h.bf16 %v1227
      %v1231 = vunpack.c.l.bf16 %v1228
      %v1232 = vunpack.c.h.bf16 %v1228
      %1234 = vset.pattern.permute.xlu0 0
      %1235 = vperm.xlu0 %1234, %v1226
      %v1236 = vpop.permute.xlu0 %1235
      %v1238 = vmul.f32 %v1236, %v1229
      %v1239 = vmul.f32 %v1236, %v1230
      %v1240 = vadd.f32 %v1238, 0.0
      %v1241 = vadd.f32 %v1239, 0.0
      %1242 = vset.pattern.permute.xlu0 1
      %1243 = vperm.xlu0 %1242, %v1226
      %v1244 = vpop.permute.xlu0 %1243
      %v1246 = vmul.f32 %v1244, %v1229
      %v1247 = vmul.f32 %v1244, %v1230
      %v1248 = vmul.f32 %v1244, %v1231
      %1252 = vrot.lane.b32.xlu0 %v1246, 127
      %v1253 = vpop.permute.xlu0 %1252
      %1254 = vrot.lane.b32.xlu0 %v1247, 127
      %v1255 = vpop.permute.xlu0 %1254
      %1256 = vrot.lane.b32.xlu0 %v1248, 127
      %v1257 = vpop.permute.xlu0 %1256
      %vm1258 = vcmask 1039360
      %v1259 = vsel %vm1258, %v1253, %v1255
      %v1260 = vsel %vm1258, %v1255, %v1257
      %v1263 = vadd.f32 %v1240, %v1259
      %v1264 = vadd.f32 %v1241, %v1260
      %1265 = vset.pattern.permute.xlu0 2
      %1266 = vperm.xlu0 %1265, %v1226
      %v1267 = vpop.permute.xlu0 %1266
      %v1269 = vmul.f32 %v1267, %v1229
      %v1270 = vmul.f32 %v1267, %v1230
      %v1271 = vmul.f32 %v1267, %v1231
      %1275 = vrot.lane.b32.xlu0 %v1269, 126
      %v1276 = vpop.permute.xlu0 %1275
      %1277 = vrot.lane.b32.xlu0 %v1270, 126
      %v1278 = vpop.permute.xlu0 %1277
      %1279 = vrot.lane.b32.xlu0 %v1271, 126
      %v1280 = vpop.permute.xlu0 %1279
      %vm1281 = vcmask 1031168
      %v1282 = vsel %vm1281, %v1276, %v1278
      %v1283 = vsel %vm1281, %v1278, %v1280
      %v1286 = vadd.f32 %v1263, %v1282
      %v1287 = vadd.f32 %v1264, %v1283
      %1288 = vset.pattern.permute.xlu0 3
      %1289 = vperm.xlu0 %1288, %v1226
      %v1290 = vpop.permute.xlu0 %1289
      %v1292 = vmul.f32 %v1290, %v1229
      %v1293 = vmul.f32 %v1290, %v1230
      %v1294 = vmul.f32 %v1290, %v1231
      %1298 = vrot.lane.b32.xlu0 %v1292, 125
      %v1299 = vpop.permute.xlu0 %1298
      %1300 = vrot.lane.b32.xlu0 %v1293, 125
      %v1301 = vpop.permute.xlu0 %1300
      %1302 = vrot.lane.b32.xlu0 %v1294, 125
      %v1303 = vpop.permute.xlu0 %1302
      %vm1304 = vcmask 1022976
      %v1305 = vsel %vm1304, %v1299, %v1301
      %v1306 = vsel %vm1304, %v1301, %v1303
      %v1309 = vadd.f32 %v1286, %v1305
      %v1310 = vadd.f32 %v1287, %v1306
      %1311 = vset.pattern.permute.xlu0 4
      %1312 = vperm.xlu0 %1311, %v1226
      %v1313 = vpop.permute.xlu0 %1312
      %v1315 = vmul.f32 %v1313, %v1229
      %v1316 = vmul.f32 %v1313, %v1230
      %v1317 = vmul.f32 %v1313, %v1231
      %1321 = vrot.lane.b32.xlu0 %v1315, 124
      %v1322 = vpop.permute.xlu0 %1321
      %1323 = vrot.lane.b32.xlu0 %v1316, 124
      %v1324 = vpop.permute.xlu0 %1323
      %1325 = vrot.lane.b32.xlu0 %v1317, 124
      %v1326 = vpop.permute.xlu0 %1325
      %vm1327 = vcmask 1014784
      %v1328 = vsel %vm1327, %v1322, %v1324
      %v1329 = vsel %vm1327, %v1324, %v1326
      %v1332 = vadd.f32 %v1309, %v1328
      %v1333 = vadd.f32 %v1310, %v1329
      %1334 = vset.pattern.permute.xlu0 5
      %1335 = vperm.xlu0 %1334, %v1226
      %v1336 = vpop.permute.xlu0 %1335
      %v1338 = vmul.f32 %v1336, %v1229
      %v1339 = vmul.f32 %v1336, %v1230
      %v1340 = vmul.f32 %v1336, %v1231
      %1344 = vrot.lane.b32.xlu0 %v1338, 123
      %v1345 = vpop.permute.xlu0 %1344
      %1346 = vrot.lane.b32.xlu0 %v1339, 123
      %v1347 = vpop.permute.xlu0 %1346
      %1348 = vrot.lane.b32.xlu0 %v1340, 123
      %v1349 = vpop.permute.xlu0 %1348
      %vm1350 = vcmask 1006592
      %v1351 = vsel %vm1350, %v1345, %v1347
      %v1352 = vsel %vm1350, %v1347, %v1349
      %v1355 = vadd.f32 %v1332, %v1351
      %v1356 = vadd.f32 %v1333, %v1352
      %1357 = vset.pattern.permute.xlu0 6
      %1358 = vperm.xlu0 %1357, %v1226
      %v1359 = vpop.permute.xlu0 %1358
      %v1361 = vmul.f32 %v1359, %v1229
      %v1362 = vmul.f32 %v1359, %v1230
      %v1363 = vmul.f32 %v1359, %v1231
      %1367 = vrot.lane.b32.xlu0 %v1361, 122
      %v1368 = vpop.permute.xlu0 %1367
      %1369 = vrot.lane.b32.xlu0 %v1362, 122
      %v1370 = vpop.permute.xlu0 %1369
      %1371 = vrot.lane.b32.xlu0 %v1363, 122
      %v1372 = vpop.permute.xlu0 %1371
      %vm1373 = vcmask 998400
      %v1374 = vsel %vm1373, %v1368, %v1370
      %v1375 = vsel %vm1373, %v1370, %v1372
      %v1378 = vadd.f32 %v1355, %v1374
      %v1379 = vadd.f32 %v1356, %v1375
      %1380 = vset.pattern.permute.xlu0 7
      %1381 = vperm.xlu0 %1380, %v1226
      %v1382 = vpop.permute.xlu0 %1381
      %v1384 = vmul.f32 %v1382, %v1229
      %v1385 = vmul.f32 %v1382, %v1230
      %v1386 = vmul.f32 %v1382, %v1231
      %1390 = vrot.lane.b32.xlu0 %v1384, 121
      %v1391 = vpop.permute.xlu0 %1390
      %1392 = vrot.lane.b32.xlu0 %v1385, 121
      %v1393 = vpop.permute.xlu0 %1392
      %1394 = vrot.lane.b32.xlu0 %v1386, 121
      %v1395 = vpop.permute.xlu0 %1394
      %vm1396 = vcmask 990208
      %v1397 = vsel %vm1396, %v1391, %v1393
      %v1398 = vsel %vm1396, %v1393, %v1395
      %v1401 = vadd.f32 %v1378, %v1397
      %v1402 = vadd.f32 %v1379, %v1398
      %1403 = vset.pattern.permute.xlu0 12
      %1404 = vperm.xlu0 %1403, %v1226
      %v1405 = vpop.permute.xlu0 %1404
      %v1407 = vmul.f32 %v1405, %v1229
      %v1408 = vmul.f32 %v1405, %v1230
      %v1409 = vmul.f32 %v1405, %v1231
      %1413 = vrot.lane.b32.xlu0 %v1407, 108
      %v1414 = vpop.permute.xlu0 %1413
      %1415 = vrot.lane.b32.xlu0 %v1408, 108
      %v1416 = vpop.permute.xlu0 %1415
      %1417 = vrot.lane.b32.xlu0 %v1409, 108
      %v1418 = vpop.permute.xlu0 %1417
      %vm1419 = vcmask 883712
      %v1420 = vsel %vm1419, %v1414, %v1416
      %v1421 = vsel %vm1419, %v1416, %v1418
      %v1424 = vadd.f32 %v1401, %v1420
      %v1425 = vadd.f32 %v1402, %v1421
      %1426 = vset.pattern.permute.xlu0 13
      %1427 = vperm.xlu0 %1426, %v1226
      %v1428 = vpop.permute.xlu0 %1427
      %v1430 = vmul.f32 %v1428, %v1229
      %v1431 = vmul.f32 %v1428, %v1230
      %v1432 = vmul.f32 %v1428, %v1231
      %1436 = vrot.lane.b32.xlu0 %v1430, 107
      %v1437 = vpop.permute.xlu0 %1436
      %1438 = vrot.lane.b32.xlu0 %v1431, 107
      %v1439 = vpop.permute.xlu0 %1438
      %1440 = vrot.lane.b32.xlu0 %v1432, 107
      %v1441 = vpop.permute.xlu0 %1440
      %vm1442 = vcmask 875520
      %v1443 = vsel %vm1442, %v1437, %v1439
      %v1444 = vsel %vm1442, %v1439, %v1441
      %v1447 = vadd.f32 %v1424, %v1443
      %v1448 = vadd.f32 %v1425, %v1444
      %1449 = vset.pattern.permute.xlu0 14
      %1450 = vperm.xlu0 %1449, %v1226
      %v1451 = vpop.permute.xlu0 %1450
      %v1453 = vmul.f32 %v1451, %v1229
      %v1454 = vmul.f32 %v1451, %v1230
      %v1455 = vmul.f32 %v1451, %v1231
      %1459 = vrot.lane.b32.xlu0 %v1453, 106
      %v1460 = vpop.permute.xlu0 %1459
      %1461 = vrot.lane.b32.xlu0 %v1454, 106
      %v1462 = vpop.permute.xlu0 %1461
      %1463 = vrot.lane.b32.xlu0 %v1455, 106
      %v1464 = vpop.permute.xlu0 %1463
      %vm1465 = vcmask 867328
      %v1466 = vsel %vm1465, %v1460, %v1462
      %v1467 = vsel %vm1465, %v1462, %v1464
      %v1470 = vadd.f32 %v1447, %v1466
      %v1471 = vadd.f32 %v1448, %v1467
      %1472 = vset.pattern.permute.xlu0 15
      %1473 = vperm.xlu0 %1472, %v1226
      %v1474 = vpop.permute.xlu0 %1473
      %v1476 = vmul.f32 %v1474, %v1229
      %v1477 = vmul.f32 %v1474, %v1230
      %v1478 = vmul.f32 %v1474, %v1231
      %1482 = vrot.lane.b32.xlu0 %v1476, 105
      %v1483 = vpop.permute.xlu0 %1482
      %1484 = vrot.lane.b32.xlu0 %v1477, 105
      %v1485 = vpop.permute.xlu0 %1484
      %1486 = vrot.lane.b32.xlu0 %v1478, 105
      %v1487 = vpop.permute.xlu0 %1486
      %vm1488 = vcmask 859136
      %v1489 = vsel %vm1488, %v1483, %v1485
      %v1490 = vsel %vm1488, %v1485, %v1487
      %v1493 = vadd.f32 %v1470, %v1489
      %v1494 = vadd.f32 %v1471, %v1490
      %1495 = vset.pattern.permute.xlu0 16
      %1496 = vperm.xlu0 %1495, %v1226
      %v1497 = vpop.permute.xlu0 %1496
      %v1499 = vmul.f32 %v1497, %v1229
      %v1500 = vmul.f32 %v1497, %v1230
      %v1501 = vmul.f32 %v1497, %v1231
      %1505 = vrot.lane.b32.xlu0 %v1499, 104
      %v1506 = vpop.permute.xlu0 %1505
      %1507 = vrot.lane.b32.xlu0 %v1500, 104
      %v1508 = vpop.permute.xlu0 %1507
      %1509 = vrot.lane.b32.xlu0 %v1501, 104
      %v1510 = vpop.permute.xlu0 %1509
      %vm1511 = vcmask 850944
      %v1512 = vsel %vm1511, %v1506, %v1508
      %v1513 = vsel %vm1511, %v1508, %v1510
      %v1516 = vadd.f32 %v1493, %v1512
      %v1517 = vadd.f32 %v1494, %v1513
      %1518 = vset.pattern.permute.xlu0 17
      %1519 = vperm.xlu0 %1518, %v1226
      %v1520 = vpop.permute.xlu0 %1519
      %v1522 = vmul.f32 %v1520, %v1229
      %v1523 = vmul.f32 %v1520, %v1230
      %v1524 = vmul.f32 %v1520, %v1231
      %1528 = vrot.lane.b32.xlu0 %v1522, 103
      %v1529 = vpop.permute.xlu0 %1528
      %1530 = vrot.lane.b32.xlu0 %v1523, 103
      %v1531 = vpop.permute.xlu0 %1530
      %1532 = vrot.lane.b32.xlu0 %v1524, 103
      %v1533 = vpop.permute.xlu0 %1532
      %vm1534 = vcmask 842752
      %v1535 = vsel %vm1534, %v1529, %v1531
      %v1536 = vsel %vm1534, %v1531, %v1533
      %v1539 = vadd.f32 %v1516, %v1535
      %v1540 = vadd.f32 %v1517, %v1536
      %1541 = vset.pattern.permute.xlu0 18
      %1542 = vperm.xlu0 %1541, %v1226
      %v1543 = vpop.permute.xlu0 %1542
      %v1545 = vmul.f32 %v1543, %v1229
      %v1546 = vmul.f32 %v1543, %v1230
      %v1547 = vmul.f32 %v1543, %v1231
      %1551 = vrot.lane.b32.xlu0 %v1545, 102
      %v1552 = vpop.permute.xlu0 %1551
      %1553 = vrot.lane.b32.xlu0 %v1546, 102
      %v1554 = vpop.permute.xlu0 %1553
      %1555 = vrot.lane.b32.xlu0 %v1547, 102
      %v1556 = vpop.permute.xlu0 %1555
      %vm1557 = vcmask 834560
      %v1558 = vsel %vm1557, %v1552, %v1554
      %v1559 = vsel %vm1557, %v1554, %v1556
      %v1562 = vadd.f32 %v1539, %v1558
      %v1563 = vadd.f32 %v1540, %v1559
      %1564 = vset.pattern.permute.xlu0 19
      %1565 = vperm.xlu0 %1564, %v1226
      %v1566 = vpop.permute.xlu0 %1565
      %v1568 = vmul.f32 %v1566, %v1229
      %v1569 = vmul.f32 %v1566, %v1230
      %v1570 = vmul.f32 %v1566, %v1231
      %1574 = vrot.lane.b32.xlu0 %v1568, 101
      %v1575 = vpop.permute.xlu0 %1574
      %1576 = vrot.lane.b32.xlu0 %v1569, 101
      %v1577 = vpop.permute.xlu0 %1576
      %1578 = vrot.lane.b32.xlu0 %v1570, 101
      %v1579 = vpop.permute.xlu0 %1578
      %vm1580 = vcmask 826368
      %v1581 = vsel %vm1580, %v1575, %v1577
      %v1582 = vsel %vm1580, %v1577, %v1579
      %v1585 = vadd.f32 %v1562, %v1581
      %v1586 = vadd.f32 %v1563, %v1582
      %1587 = vset.pattern.permute.xlu0 24
      %1588 = vperm.xlu0 %1587, %v1226
      %v1589 = vpop.permute.xlu0 %1588
      %v1591 = vmul.f32 %v1589, %v1229
      %v1592 = vmul.f32 %v1589, %v1230
      %v1593 = vmul.f32 %v1589, %v1231
      %1597 = vrot.lane.b32.xlu0 %v1591, 88
      %v1598 = vpop.permute.xlu0 %1597
      %1599 = vrot.lane.b32.xlu0 %v1592, 88
      %v1600 = vpop.permute.xlu0 %1599
      %1601 = vrot.lane.b32.xlu0 %v1593, 88
      %v1602 = vpop.permute.xlu0 %1601
      %vm1603 = vcmask 719872
      %v1604 = vsel %vm1603, %v1598, %v1600
      %v1605 = vsel %vm1603, %v1600, %v1602
      %v1608 = vadd.f32 %v1585, %v1604
      %v1609 = vadd.f32 %v1586, %v1605
      %1610 = vset.pattern.permute.xlu0 25
      %1611 = vperm.xlu0 %1610, %v1226
      %v1612 = vpop.permute.xlu0 %1611
      %v1614 = vmul.f32 %v1612, %v1229
      %v1615 = vmul.f32 %v1612, %v1230
      %v1616 = vmul.f32 %v1612, %v1231
      %1620 = vrot.lane.b32.xlu0 %v1614, 87
      %v1621 = vpop.permute.xlu0 %1620
      %1622 = vrot.lane.b32.xlu0 %v1615, 87
      %v1623 = vpop.permute.xlu0 %1622
      %1624 = vrot.lane.b32.xlu0 %v1616, 87
      %v1625 = vpop.permute.xlu0 %1624
      %vm1626 = vcmask 711680
      %v1627 = vsel %vm1626, %v1621, %v1623
      %v1628 = vsel %vm1626, %v1623, %v1625
      %v1631 = vadd.f32 %v1608, %v1627
      %v1632 = vadd.f32 %v1609, %v1628
      %1633 = vset.pattern.permute.xlu0 26
      %1634 = vperm.xlu0 %1633, %v1226
      %v1635 = vpop.permute.xlu0 %1634
      %v1637 = vmul.f32 %v1635, %v1229
      %v1638 = vmul.f32 %v1635, %v1230
      %v1639 = vmul.f32 %v1635, %v1231
      %1643 = vrot.lane.b32.xlu0 %v1637, 86
      %v1644 = vpop.permute.xlu0 %1643
      %1645 = vrot.lane.b32.xlu0 %v1638, 86
      %v1646 = vpop.permute.xlu0 %1645
      %1647 = vrot.lane.b32.xlu0 %v1639, 86
      %v1648 = vpop.permute.xlu0 %1647
      %vm1649 = vcmask 703488
      %v1650 = vsel %vm1649, %v1644, %v1646
      %v1651 = vsel %vm1649, %v1646, %v1648
      %v1654 = vadd.f32 %v1631, %v1650
      %v1655 = vadd.f32 %v1632, %v1651
      %1656 = vset.pattern.permute.xlu0 27
      %1657 = vperm.xlu0 %1656, %v1226
      %v1658 = vpop.permute.xlu0 %1657
      %v1660 = vmul.f32 %v1658, %v1229
      %v1661 = vmul.f32 %v1658, %v1230
      %v1662 = vmul.f32 %v1658, %v1231
      %1666 = vrot.lane.b32.xlu0 %v1660, 85
      %v1667 = vpop.permute.xlu0 %1666
      %1668 = vrot.lane.b32.xlu0 %v1661, 85
      %v1669 = vpop.permute.xlu0 %1668
      %1670 = vrot.lane.b32.xlu0 %v1662, 85
      %v1671 = vpop.permute.xlu0 %1670
      %vm1672 = vcmask 695296
      %v1673 = vsel %vm1672, %v1667, %v1669
      %v1674 = vsel %vm1672, %v1669, %v1671
      %v1677 = vadd.f32 %v1654, %v1673
      %v1678 = vadd.f32 %v1655, %v1674
      %1679 = vset.pattern.permute.xlu0 28
      %1680 = vperm.xlu0 %1679, %v1226
      %v1681 = vpop.permute.xlu0 %1680
      %v1683 = vmul.f32 %v1681, %v1229
      %v1684 = vmul.f32 %v1681, %v1230
      %v1685 = vmul.f32 %v1681, %v1231
      %1689 = vrot.lane.b32.xlu0 %v1683, 84
      %v1690 = vpop.permute.xlu0 %1689
      %1691 = vrot.lane.b32.xlu0 %v1684, 84
      %v1692 = vpop.permute.xlu0 %1691
      %1693 = vrot.lane.b32.xlu0 %v1685, 84
      %v1694 = vpop.permute.xlu0 %1693
      %vm1695 = vcmask 687104
      %v1696 = vsel %vm1695, %v1690, %v1692
      %v1697 = vsel %vm1695, %v1692, %v1694
      %v1700 = vadd.f32 %v1677, %v1696
      %v1701 = vadd.f32 %v1678, %v1697
      %1702 = vset.pattern.permute.xlu0 29
      %1703 = vperm.xlu0 %1702, %v1226
      %v1704 = vpop.permute.xlu0 %1703
      %v1706 = vmul.f32 %v1704, %v1229
      %v1707 = vmul.f32 %v1704, %v1230
      %v1708 = vmul.f32 %v1704, %v1231
      %1712 = vrot.lane.b32.xlu0 %v1706, 83
      %v1713 = vpop.permute.xlu0 %1712
      %1714 = vrot.lane.b32.xlu0 %v1707, 83
      %v1715 = vpop.permute.xlu0 %1714
      %1716 = vrot.lane.b32.xlu0 %v1708, 83
      %v1717 = vpop.permute.xlu0 %1716
      %vm1718 = vcmask 678912
      %v1719 = vsel %vm1718, %v1713, %v1715
      %v1720 = vsel %vm1718, %v1715, %v1717
      %v1723 = vadd.f32 %v1700, %v1719
      %v1724 = vadd.f32 %v1701, %v1720
      %1725 = vset.pattern.permute.xlu0 30
      %1726 = vperm.xlu0 %1725, %v1226
      %v1727 = vpop.permute.xlu0 %1726
      %v1729 = vmul.f32 %v1727, %v1229
      %v1730 = vmul.f32 %v1727, %v1230
      %v1731 = vmul.f32 %v1727, %v1231
      %1735 = vrot.lane.b32.xlu0 %v1729, 82
      %v1736 = vpop.permute.xlu0 %1735
      %1737 = vrot.lane.b32.xlu0 %v1730, 82
      %v1738 = vpop.permute.xlu0 %1737
      %1739 = vrot.lane.b32.xlu0 %v1731, 82
      %v1740 = vpop.permute.xlu0 %1739
      %vm1741 = vcmask 670720
      %v1742 = vsel %vm1741, %v1736, %v1738
      %v1743 = vsel %vm1741, %v1738, %v1740
      %v1746 = vadd.f32 %v1723, %v1742
      %v1747 = vadd.f32 %v1724, %v1743
      %1748 = vset.pattern.permute.xlu0 31
      %1749 = vperm.xlu0 %1748, %v1226
      %v1750 = vpop.permute.xlu0 %1749
      %v1752 = vmul.f32 %v1750, %v1229
      %v1753 = vmul.f32 %v1750, %v1230
      %v1754 = vmul.f32 %v1750, %v1231
      %1758 = vrot.lane.b32.xlu0 %v1752, 81
      %v1759 = vpop.permute.xlu0 %1758
      %1760 = vrot.lane.b32.xlu0 %v1753, 81
      %v1761 = vpop.permute.xlu0 %1760
      %1762 = vrot.lane.b32.xlu0 %v1754, 81
      %v1763 = vpop.permute.xlu0 %1762
      %vm1764 = vcmask 662528
      %v1765 = vsel %vm1764, %v1759, %v1761
      %v1766 = vsel %vm1764, %v1761, %v1763
      %v1769 = vadd.f32 %v1746, %v1765
      %v1770 = vadd.f32 %v1747, %v1766
      %1771 = vset.pattern.permute.xlu0 36
      %1772 = vperm.xlu0 %1771, %v1226
      %v1773 = vpop.permute.xlu0 %1772
      %v1775 = vmul.f32 %v1773, %v1229
      %v1776 = vmul.f32 %v1773, %v1230
      %v1777 = vmul.f32 %v1773, %v1231
      %1781 = vrot.lane.b32.xlu0 %v1775, 68
      %v1782 = vpop.permute.xlu0 %1781
      %1783 = vrot.lane.b32.xlu0 %v1776, 68
      %v1784 = vpop.permute.xlu0 %1783
      %1785 = vrot.lane.b32.xlu0 %v1777, 68
      %v1786 = vpop.permute.xlu0 %1785
      %vm1787 = vcmask 556032
      %v1788 = vsel %vm1787, %v1782, %v1784
      %v1789 = vsel %vm1787, %v1784, %v1786
      %v1792 = vadd.f32 %v1769, %v1788
      %v1793 = vadd.f32 %v1770, %v1789
      %1794 = vset.pattern.permute.xlu0 37
      %1795 = vperm.xlu0 %1794, %v1226
      %v1796 = vpop.permute.xlu0 %1795
      %v1798 = vmul.f32 %v1796, %v1229
      %v1799 = vmul.f32 %v1796, %v1230
      %v1800 = vmul.f32 %v1796, %v1231
      %1804 = vrot.lane.b32.xlu0 %v1798, 67
      %v1805 = vpop.permute.xlu0 %1804
      %1806 = vrot.lane.b32.xlu0 %v1799, 67
      %v1807 = vpop.permute.xlu0 %1806
      %1808 = vrot.lane.b32.xlu0 %v1800, 67
      %v1809 = vpop.permute.xlu0 %1808
      %vm1810 = vcmask 547840
      %v1811 = vsel %vm1810, %v1805, %v1807
      %v1812 = vsel %vm1810, %v1807, %v1809
      %v1815 = vadd.f32 %v1792, %v1811
      %v1816 = vadd.f32 %v1793, %v1812
      %1817 = vset.pattern.permute.xlu0 38
      %1818 = vperm.xlu0 %1817, %v1226
      %v1819 = vpop.permute.xlu0 %1818
      %v1821 = vmul.f32 %v1819, %v1229
      %v1822 = vmul.f32 %v1819, %v1230
      %v1823 = vmul.f32 %v1819, %v1231
      %1827 = vrot.lane.b32.xlu0 %v1821, 66
      %v1828 = vpop.permute.xlu0 %1827
      %1829 = vrot.lane.b32.xlu0 %v1822, 66
      %v1830 = vpop.permute.xlu0 %1829
      %1831 = vrot.lane.b32.xlu0 %v1823, 66
      %v1832 = vpop.permute.xlu0 %1831
      %vm1833 = vcmask 539648
      %v1834 = vsel %vm1833, %v1828, %v1830
      %v1835 = vsel %vm1833, %v1830, %v1832
      %v1838 = vadd.f32 %v1815, %v1834
      %v1839 = vadd.f32 %v1816, %v1835
      %1840 = vset.pattern.permute.xlu0 39
      %1841 = vperm.xlu0 %1840, %v1226
      %v1842 = vpop.permute.xlu0 %1841
      %v1844 = vmul.f32 %v1842, %v1229
      %v1845 = vmul.f32 %v1842, %v1230
      %v1846 = vmul.f32 %v1842, %v1231
      %1850 = vrot.lane.b32.xlu0 %v1844, 65
      %v1851 = vpop.permute.xlu0 %1850
      %1852 = vrot.lane.b32.xlu0 %v1845, 65
      %v1853 = vpop.permute.xlu0 %1852
      %1854 = vrot.lane.b32.xlu0 %v1846, 65
      %v1855 = vpop.permute.xlu0 %1854
      %vm1856 = vcmask 531456
      %v1857 = vsel %vm1856, %v1851, %v1853
      %v1858 = vsel %vm1856, %v1853, %v1855
      %v1861 = vadd.f32 %v1838, %v1857
      %v1862 = vadd.f32 %v1839, %v1858
      %1863 = vset.pattern.permute.xlu0 40
      %1864 = vperm.xlu0 %1863, %v1226
      %v1865 = vpop.permute.xlu0 %1864
      %v1867 = vmul.f32 %v1865, %v1229
      %v1868 = vmul.f32 %v1865, %v1230
      %v1869 = vmul.f32 %v1865, %v1231
      %1873 = vrot.lane.b32.xlu0 %v1867, 64
      %v1874 = vpop.permute.xlu0 %1873
      %1875 = vrot.lane.b32.xlu0 %v1868, 64
      %v1876 = vpop.permute.xlu0 %1875
      %1877 = vrot.lane.b32.xlu0 %v1869, 64
      %v1878 = vpop.permute.xlu0 %1877
      %vm1879 = vcmask 523264
      %v1880 = vsel %vm1879, %v1874, %v1876
      %v1881 = vsel %vm1879, %v1876, %v1878
      %v1884 = vadd.f32 %v1861, %v1880
      %v1885 = vadd.f32 %v1862, %v1881
      %1886 = vset.pattern.permute.xlu0 41
      %1887 = vperm.xlu0 %1886, %v1226
      %v1888 = vpop.permute.xlu0 %1887
      %v1890 = vmul.f32 %v1888, %v1229
      %v1891 = vmul.f32 %v1888, %v1230
      %v1892 = vmul.f32 %v1888, %v1231
      %1896 = vrot.lane.b32.xlu0 %v1890, 63
      %v1897 = vpop.permute.xlu0 %1896
      %1898 = vrot.lane.b32.xlu0 %v1891, 63
      %v1899 = vpop.permute.xlu0 %1898
      %1900 = vrot.lane.b32.xlu0 %v1892, 63
      %v1901 = vpop.permute.xlu0 %1900
      %vm1902 = vcmask 515072
      %v1903 = vsel %vm1902, %v1897, %v1899
      %v1904 = vsel %vm1902, %v1899, %v1901
      %v1907 = vadd.f32 %v1884, %v1903
      %v1908 = vadd.f32 %v1885, %v1904
      %1909 = vset.pattern.permute.xlu0 42
      %1910 = vperm.xlu0 %1909, %v1226
      %v1911 = vpop.permute.xlu0 %1910
      %v1913 = vmul.f32 %v1911, %v1229
      %v1914 = vmul.f32 %v1911, %v1230
      %v1915 = vmul.f32 %v1911, %v1231
      %1919 = vrot.lane.b32.xlu0 %v1913, 62
      %v1920 = vpop.permute.xlu0 %1919
      %1921 = vrot.lane.b32.xlu0 %v1914, 62
      %v1922 = vpop.permute.xlu0 %1921
      %1923 = vrot.lane.b32.xlu0 %v1915, 62
      %v1924 = vpop.permute.xlu0 %1923
      %vm1925 = vcmask 506880
      %v1926 = vsel %vm1925, %v1920, %v1922
      %v1927 = vsel %vm1925, %v1922, %v1924
      %v1930 = vadd.f32 %v1907, %v1926
      %v1931 = vadd.f32 %v1908, %v1927
      %1932 = vset.pattern.permute.xlu0 43
      %1933 = vperm.xlu0 %1932, %v1226
      %v1934 = vpop.permute.xlu0 %1933
      %v1936 = vmul.f32 %v1934, %v1229
      %v1937 = vmul.f32 %v1934, %v1230
      %v1938 = vmul.f32 %v1934, %v1231
      %1942 = vrot.lane.b32.xlu0 %v1936, 61
      %v1943 = vpop.permute.xlu0 %1942
      %1944 = vrot.lane.b32.xlu0 %v1937, 61
      %v1945 = vpop.permute.xlu0 %1944
      %1946 = vrot.lane.b32.xlu0 %v1938, 61
      %v1947 = vpop.permute.xlu0 %1946
      %vm1948 = vcmask 498688
      %v1949 = vsel %vm1948, %v1943, %v1945
      %v1950 = vsel %vm1948, %v1945, %v1947
      %v1953 = vadd.f32 %v1930, %v1949
      %v1954 = vadd.f32 %v1931, %v1950
      %1955 = vset.pattern.permute.xlu0 48
      %1956 = vperm.xlu0 %1955, %v1226
      %v1957 = vpop.permute.xlu0 %1956
      %v1959 = vmul.f32 %v1957, %v1229
      %v1960 = vmul.f32 %v1957, %v1230
      %v1961 = vmul.f32 %v1957, %v1231
      %1965 = vrot.lane.b32.xlu0 %v1959, 48
      %v1966 = vpop.permute.xlu0 %1965
      %1967 = vrot.lane.b32.xlu0 %v1960, 48
      %v1968 = vpop.permute.xlu0 %1967
      %1969 = vrot.lane.b32.xlu0 %v1961, 48
      %v1970 = vpop.permute.xlu0 %1969
      %vm1971 = vcmask 392192
      %v1972 = vsel %vm1971, %v1966, %v1968
      %v1973 = vsel %vm1971, %v1968, %v1970
      %v1976 = vadd.f32 %v1953, %v1972
      %v1977 = vadd.f32 %v1954, %v1973
      %1978 = vset.pattern.permute.xlu0 49
      %1979 = vperm.xlu0 %1978, %v1226
      %v1980 = vpop.permute.xlu0 %1979
      %v1982 = vmul.f32 %v1980, %v1229
      %v1983 = vmul.f32 %v1980, %v1230
      %v1984 = vmul.f32 %v1980, %v1231
      %1988 = vrot.lane.b32.xlu0 %v1982, 47
      %v1989 = vpop.permute.xlu0 %1988
      %1990 = vrot.lane.b32.xlu0 %v1983, 47
      %v1991 = vpop.permute.xlu0 %1990
      %1992 = vrot.lane.b32.xlu0 %v1984, 47
      %v1993 = vpop.permute.xlu0 %1992
      %vm1994 = vcmask 384000
      %v1995 = vsel %vm1994, %v1989, %v1991
      %v1996 = vsel %vm1994, %v1991, %v1993
      %v1999 = vadd.f32 %v1976, %v1995
      %v2000 = vadd.f32 %v1977, %v1996
      %2001 = vset.pattern.permute.xlu0 50
      %2002 = vperm.xlu0 %2001, %v1226
      %v2003 = vpop.permute.xlu0 %2002
      %v2005 = vmul.f32 %v2003, %v1229
      %v2006 = vmul.f32 %v2003, %v1230
      %v2007 = vmul.f32 %v2003, %v1231
      %2011 = vrot.lane.b32.xlu0 %v2005, 46
      %v2012 = vpop.permute.xlu0 %2011
      %2013 = vrot.lane.b32.xlu0 %v2006, 46
      %v2014 = vpop.permute.xlu0 %2013
      %2015 = vrot.lane.b32.xlu0 %v2007, 46
      %v2016 = vpop.permute.xlu0 %2015
      %vm2017 = vcmask 375808
      %v2018 = vsel %vm2017, %v2012, %v2014
      %v2019 = vsel %vm2017, %v2014, %v2016
      %v2022 = vadd.f32 %v1999, %v2018
      %v2023 = vadd.f32 %v2000, %v2019
      %2024 = vset.pattern.permute.xlu0 51
      %2025 = vperm.xlu0 %2024, %v1226
      %v2026 = vpop.permute.xlu0 %2025
      %v2028 = vmul.f32 %v2026, %v1229
      %v2029 = vmul.f32 %v2026, %v1230
      %v2030 = vmul.f32 %v2026, %v1231
      %2034 = vrot.lane.b32.xlu0 %v2028, 45
      %v2035 = vpop.permute.xlu0 %2034
      %2036 = vrot.lane.b32.xlu0 %v2029, 45
      %v2037 = vpop.permute.xlu0 %2036
      %2038 = vrot.lane.b32.xlu0 %v2030, 45
      %v2039 = vpop.permute.xlu0 %2038
      %vm2040 = vcmask 367616
      %v2041 = vsel %vm2040, %v2035, %v2037
      %v2042 = vsel %vm2040, %v2037, %v2039
      %v2045 = vadd.f32 %v2022, %v2041
      %v2046 = vadd.f32 %v2023, %v2042
      %2047 = vset.pattern.permute.xlu0 52
      %2048 = vperm.xlu0 %2047, %v1226
      %v2049 = vpop.permute.xlu0 %2048
      %v2051 = vmul.f32 %v2049, %v1229
      %v2052 = vmul.f32 %v2049, %v1230
      %v2053 = vmul.f32 %v2049, %v1231
      %2057 = vrot.lane.b32.xlu0 %v2051, 44
      %v2058 = vpop.permute.xlu0 %2057
      %2059 = vrot.lane.b32.xlu0 %v2052, 44
      %v2060 = vpop.permute.xlu0 %2059
      %2061 = vrot.lane.b32.xlu0 %v2053, 44
      %v2062 = vpop.permute.xlu0 %2061
      %vm2063 = vcmask 359424
      %v2064 = vsel %vm2063, %v2058, %v2060
      %v2065 = vsel %vm2063, %v2060, %v2062
      %v2068 = vadd.f32 %v2045, %v2064
      %v2069 = vadd.f32 %v2046, %v2065
      %2070 = vset.pattern.permute.xlu0 53
      %2071 = vperm.xlu0 %2070, %v1226
      %v2072 = vpop.permute.xlu0 %2071
      %v2074 = vmul.f32 %v2072, %v1229
      %v2075 = vmul.f32 %v2072, %v1230
      %v2076 = vmul.f32 %v2072, %v1231
      %2080 = vrot.lane.b32.xlu0 %v2074, 43
      %v2081 = vpop.permute.xlu0 %2080
      %2082 = vrot.lane.b32.xlu0 %v2075, 43
      %v2083 = vpop.permute.xlu0 %2082
      %2084 = vrot.lane.b32.xlu0 %v2076, 43
      %v2085 = vpop.permute.xlu0 %2084
      %vm2086 = vcmask 351232
      %v2087 = vsel %vm2086, %v2081, %v2083
      %v2088 = vsel %vm2086, %v2083, %v2085
      %v2091 = vadd.f32 %v2068, %v2087
      %v2092 = vadd.f32 %v2069, %v2088
      %2093 = vset.pattern.permute.xlu0 54
      %2094 = vperm.xlu0 %2093, %v1226
      %v2095 = vpop.permute.xlu0 %2094
      %v2097 = vmul.f32 %v2095, %v1229
      %v2098 = vmul.f32 %v2095, %v1230
      %v2099 = vmul.f32 %v2095, %v1231
      %2103 = vrot.lane.b32.xlu0 %v2097, 42
      %v2104 = vpop.permute.xlu0 %2103
      %2105 = vrot.lane.b32.xlu0 %v2098, 42
      %v2106 = vpop.permute.xlu0 %2105
      %2107 = vrot.lane.b32.xlu0 %v2099, 42
      %v2108 = vpop.permute.xlu0 %2107
      %vm2109 = vcmask 343040
      %v2110 = vsel %vm2109, %v2104, %v2106
      %v2111 = vsel %vm2109, %v2106, %v2108
      %v2114 = vadd.f32 %v2091, %v2110
      %v2115 = vadd.f32 %v2092, %v2111
      %2116 = vset.pattern.permute.xlu0 55
      %2117 = vperm.xlu0 %2116, %v1226
      %v2118 = vpop.permute.xlu0 %2117
      %v2120 = vmul.f32 %v2118, %v1229
      %v2121 = vmul.f32 %v2118, %v1230
      %v2122 = vmul.f32 %v2118, %v1231
      %2126 = vrot.lane.b32.xlu0 %v2120, 41
      %v2127 = vpop.permute.xlu0 %2126
      %2128 = vrot.lane.b32.xlu0 %v2121, 41
      %v2129 = vpop.permute.xlu0 %2128
      %2130 = vrot.lane.b32.xlu0 %v2122, 41
      %v2131 = vpop.permute.xlu0 %2130
      %vm2132 = vcmask 334848
      %v2133 = vsel %vm2132, %v2127, %v2129
      %v2134 = vsel %vm2132, %v2129, %v2131
      %v2137 = vadd.f32 %v2114, %v2133
      %v2138 = vadd.f32 %v2115, %v2134
      %2139 = vset.pattern.permute.xlu0 60
      %2140 = vperm.xlu0 %2139, %v1226
      %v2141 = vpop.permute.xlu0 %2140
      %v2143 = vmul.f32 %v2141, %v1229
      %v2144 = vmul.f32 %v2141, %v1230
      %v2145 = vmul.f32 %v2141, %v1231
      %2149 = vrot.lane.b32.xlu0 %v2143, 28
      %v2150 = vpop.permute.xlu0 %2149
      %2151 = vrot.lane.b32.xlu0 %v2144, 28
      %v2152 = vpop.permute.xlu0 %2151
      %2153 = vrot.lane.b32.xlu0 %v2145, 28
      %v2154 = vpop.permute.xlu0 %2153
      %vm2155 = vcmask 228352
      %v2156 = vsel %vm2155, %v2150, %v2152
      %v2157 = vsel %vm2155, %v2152, %v2154
      %v2160 = vadd.f32 %v2137, %v2156
      %v2161 = vadd.f32 %v2138, %v2157
      %2162 = vset.pattern.permute.xlu0 61
      %2163 = vperm.xlu0 %2162, %v1226
      %v2164 = vpop.permute.xlu0 %2163
      %v2166 = vmul.f32 %v2164, %v1229
      %v2167 = vmul.f32 %v2164, %v1230
      %v2168 = vmul.f32 %v2164, %v1231
      %2172 = vrot.lane.b32.xlu0 %v2166, 27
      %v2173 = vpop.permute.xlu0 %2172
      %2174 = vrot.lane.b32.xlu0 %v2167, 27
      %v2175 = vpop.permute.xlu0 %2174
      %2176 = vrot.lane.b32.xlu0 %v2168, 27
      %v2177 = vpop.permute.xlu0 %2176
      %vm2178 = vcmask 220160
      %v2179 = vsel %vm2178, %v2173, %v2175
      %v2180 = vsel %vm2178, %v2175, %v2177
      %v2183 = vadd.f32 %v2160, %v2179
      %v2184 = vadd.f32 %v2161, %v2180
      %2185 = vset.pattern.permute.xlu0 62
      %2186 = vperm.xlu0 %2185, %v1226
      %v2187 = vpop.permute.xlu0 %2186
      %v2189 = vmul.f32 %v2187, %v1229
      %v2190 = vmul.f32 %v2187, %v1230
      %v2191 = vmul.f32 %v2187, %v1231
      %2195 = vrot.lane.b32.xlu0 %v2189, 26
      %v2196 = vpop.permute.xlu0 %2195
      %2197 = vrot.lane.b32.xlu0 %v2190, 26
      %v2198 = vpop.permute.xlu0 %2197
      %2199 = vrot.lane.b32.xlu0 %v2191, 26
      %v2200 = vpop.permute.xlu0 %2199
      %vm2201 = vcmask 211968
      %v2202 = vsel %vm2201, %v2196, %v2198
      %v2203 = vsel %vm2201, %v2198, %v2200
      %v2206 = vadd.f32 %v2183, %v2202
      %v2207 = vadd.f32 %v2184, %v2203
      %2208 = vset.pattern.permute.xlu0 63
      %2209 = vperm.xlu0 %2208, %v1226
      %v2210 = vpop.permute.xlu0 %2209
      %v2212 = vmul.f32 %v2210, %v1229
      %v2213 = vmul.f32 %v2210, %v1230
      %v2214 = vmul.f32 %v2210, %v1231
      %2218 = vrot.lane.b32.xlu0 %v2212, 25
      %v2219 = vpop.permute.xlu0 %2218
      %2220 = vrot.lane.b32.xlu0 %v2213, 25
      %v2221 = vpop.permute.xlu0 %2220
      %2222 = vrot.lane.b32.xlu0 %v2214, 25
      %v2223 = vpop.permute.xlu0 %2222
      %vm2224 = vcmask 203776
      %v2225 = vsel %vm2224, %v2219, %v2221
      %v2226 = vsel %vm2224, %v2221, %v2223
      %v2229 = vadd.f32 %v2206, %v2225
      %v2230 = vadd.f32 %v2207, %v2226
      %2231 = vset.pattern.permute.xlu0 64
      %2232 = vperm.xlu0 %2231, %v1226
      %v2233 = vpop.permute.xlu0 %2232
      %v2235 = vmul.f32 %v2233, %v1229
      %v2236 = vmul.f32 %v2233, %v1230
      %v2237 = vmul.f32 %v2233, %v1231
      %2241 = vrot.lane.b32.xlu0 %v2235, 24
      %v2242 = vpop.permute.xlu0 %2241
      %2243 = vrot.lane.b32.xlu0 %v2236, 24
      %v2244 = vpop.permute.xlu0 %2243
      %2245 = vrot.lane.b32.xlu0 %v2237, 24
      %v2246 = vpop.permute.xlu0 %2245
      %vm2247 = vcmask 195584
      %v2248 = vsel %vm2247, %v2242, %v2244
      %v2249 = vsel %vm2247, %v2244, %v2246
      %v2252 = vadd.f32 %v2229, %v2248
      %v2253 = vadd.f32 %v2230, %v2249
      %2254 = vset.pattern.permute.xlu0 65
      %2255 = vperm.xlu0 %2254, %v1226
      %v2256 = vpop.permute.xlu0 %2255
      %v2258 = vmul.f32 %v2256, %v1229
      %v2259 = vmul.f32 %v2256, %v1230
      %v2260 = vmul.f32 %v2256, %v1231
      %2264 = vrot.lane.b32.xlu0 %v2258, 23
      %v2265 = vpop.permute.xlu0 %2264
      %2266 = vrot.lane.b32.xlu0 %v2259, 23
      %v2267 = vpop.permute.xlu0 %2266
      %2268 = vrot.lane.b32.xlu0 %v2260, 23
      %v2269 = vpop.permute.xlu0 %2268
      %vm2270 = vcmask 187392
      %v2271 = vsel %vm2270, %v2265, %v2267
      %v2272 = vsel %vm2270, %v2267, %v2269
      %v2275 = vadd.f32 %v2252, %v2271
      %v2276 = vadd.f32 %v2253, %v2272
      %2277 = vset.pattern.permute.xlu0 66
      %2278 = vperm.xlu0 %2277, %v1226
      %v2279 = vpop.permute.xlu0 %2278
      %v2281 = vmul.f32 %v2279, %v1229
      %v2282 = vmul.f32 %v2279, %v1230
      %v2283 = vmul.f32 %v2279, %v1231
      %2287 = vrot.lane.b32.xlu0 %v2281, 22
      %v2288 = vpop.permute.xlu0 %2287
      %2289 = vrot.lane.b32.xlu0 %v2282, 22
      %v2290 = vpop.permute.xlu0 %2289
      %2291 = vrot.lane.b32.xlu0 %v2283, 22
      %v2292 = vpop.permute.xlu0 %2291
      %vm2293 = vcmask 179200
      %v2294 = vsel %vm2293, %v2288, %v2290
      %v2295 = vsel %vm2293, %v2290, %v2292
      %v2298 = vadd.f32 %v2275, %v2294
      %v2299 = vadd.f32 %v2276, %v2295
      %2300 = vset.pattern.permute.xlu0 67
      %2301 = vperm.xlu0 %2300, %v1226
      %v2302 = vpop.permute.xlu0 %2301
      %v2304 = vmul.f32 %v2302, %v1229
      %v2305 = vmul.f32 %v2302, %v1230
      %v2306 = vmul.f32 %v2302, %v1231
      %2310 = vrot.lane.b32.xlu0 %v2304, 21
      %v2311 = vpop.permute.xlu0 %2310
      %2312 = vrot.lane.b32.xlu0 %v2305, 21
      %v2313 = vpop.permute.xlu0 %2312
      %2314 = vrot.lane.b32.xlu0 %v2306, 21
      %v2315 = vpop.permute.xlu0 %2314
      %vm2316 = vcmask 171008
      %v2317 = vsel %vm2316, %v2311, %v2313
      %v2318 = vsel %vm2316, %v2313, %v2315
      %v2321 = vadd.f32 %v2298, %v2317
      %v2322 = vadd.f32 %v2299, %v2318
      %2323 = vset.pattern.permute.xlu0 72
      %2324 = vperm.xlu0 %2323, %v1226
      %v2325 = vpop.permute.xlu0 %2324
      %v2327 = vmul.f32 %v2325, %v1229
      %v2328 = vmul.f32 %v2325, %v1230
      %v2329 = vmul.f32 %v2325, %v1231
      %2333 = vrot.lane.b32.xlu0 %v2327, 8
      %v2334 = vpop.permute.xlu0 %2333
      %2335 = vrot.lane.b32.xlu0 %v2328, 8
      %v2336 = vpop.permute.xlu0 %2335
      %2337 = vrot.lane.b32.xlu0 %v2329, 8
      %v2338 = vpop.permute.xlu0 %2337
      %vm2339 = vcmask 64512
      %v2340 = vsel %vm2339, %v2334, %v2336
      %v2341 = vsel %vm2339, %v2336, %v2338
      %v2344 = vadd.f32 %v2321, %v2340
      %v2345 = vadd.f32 %v2322, %v2341
      %2346 = vset.pattern.permute.xlu0 73
      %2347 = vperm.xlu0 %2346, %v1226
      %v2348 = vpop.permute.xlu0 %2347
      %v2350 = vmul.f32 %v2348, %v1229
      %v2351 = vmul.f32 %v2348, %v1230
      %v2352 = vmul.f32 %v2348, %v1231
      %2356 = vrot.lane.b32.xlu0 %v2350, 7
      %v2357 = vpop.permute.xlu0 %2356
      %2358 = vrot.lane.b32.xlu0 %v2351, 7
      %v2359 = vpop.permute.xlu0 %2358
      %2360 = vrot.lane.b32.xlu0 %v2352, 7
      %v2361 = vpop.permute.xlu0 %2360
      %vm2362 = vcmask 56320
      %v2363 = vsel %vm2362, %v2357, %v2359
      %v2364 = vsel %vm2362, %v2359, %v2361
      %v2367 = vadd.f32 %v2344, %v2363
      %v2368 = vadd.f32 %v2345, %v2364
      %2369 = vset.pattern.permute.xlu0 74
      %2370 = vperm.xlu0 %2369, %v1226
      %v2371 = vpop.permute.xlu0 %2370
      %v2373 = vmul.f32 %v2371, %v1229
      %v2374 = vmul.f32 %v2371, %v1230
      %v2375 = vmul.f32 %v2371, %v1231
      %2379 = vrot.lane.b32.xlu0 %v2373, 6
      %v2380 = vpop.permute.xlu0 %2379
      %2381 = vrot.lane.b32.xlu0 %v2374, 6
      %v2382 = vpop.permute.xlu0 %2381
      %2383 = vrot.lane.b32.xlu0 %v2375, 6
      %v2384 = vpop.permute.xlu0 %2383
      %vm2385 = vcmask 48128
      %v2386 = vsel %vm2385, %v2380, %v2382
      %v2387 = vsel %vm2385, %v2382, %v2384
      %v2390 = vadd.f32 %v2367, %v2386
      %v2391 = vadd.f32 %v2368, %v2387
      %2392 = vset.pattern.permute.xlu0 75
      %2393 = vperm.xlu0 %2392, %v1226
      %v2394 = vpop.permute.xlu0 %2393
      %v2396 = vmul.f32 %v2394, %v1229
      %v2397 = vmul.f32 %v2394, %v1230
      %v2398 = vmul.f32 %v2394, %v1231
      %2402 = vrot.lane.b32.xlu0 %v2396, 5
      %v2403 = vpop.permute.xlu0 %2402
      %2404 = vrot.lane.b32.xlu0 %v2397, 5
      %v2405 = vpop.permute.xlu0 %2404
      %2406 = vrot.lane.b32.xlu0 %v2398, 5
      %v2407 = vpop.permute.xlu0 %2406
      %vm2408 = vcmask 39936
      %v2409 = vsel %vm2408, %v2403, %v2405
      %v2410 = vsel %vm2408, %v2405, %v2407
      %v2413 = vadd.f32 %v2390, %v2409
      %v2414 = vadd.f32 %v2391, %v2410
      %2415 = vset.pattern.permute.xlu0 76
      %2416 = vperm.xlu0 %2415, %v1226
      %v2417 = vpop.permute.xlu0 %2416
      %v2419 = vmul.f32 %v2417, %v1229
      %v2420 = vmul.f32 %v2417, %v1230
      %v2421 = vmul.f32 %v2417, %v1231
      %2425 = vrot.lane.b32.xlu0 %v2419, 4
      %v2426 = vpop.permute.xlu0 %2425
      %2427 = vrot.lane.b32.xlu0 %v2420, 4
      %v2428 = vpop.permute.xlu0 %2427
      %2429 = vrot.lane.b32.xlu0 %v2421, 4
      %v2430 = vpop.permute.xlu0 %2429
      %vm2431 = vcmask 31744
      %v2432 = vsel %vm2431, %v2426, %v2428
      %v2433 = vsel %vm2431, %v2428, %v2430
      %v2436 = vadd.f32 %v2413, %v2432
      %v2437 = vadd.f32 %v2414, %v2433
      %2438 = vset.pattern.permute.xlu0 77
      %2439 = vperm.xlu0 %2438, %v1226
      %v2440 = vpop.permute.xlu0 %2439
      %v2442 = vmul.f32 %v2440, %v1229
      %v2443 = vmul.f32 %v2440, %v1230
      %v2444 = vmul.f32 %v2440, %v1231
      %2448 = vrot.lane.b32.xlu0 %v2442, 3
      %v2449 = vpop.permute.xlu0 %2448
      %2450 = vrot.lane.b32.xlu0 %v2443, 3
      %v2451 = vpop.permute.xlu0 %2450
      %2452 = vrot.lane.b32.xlu0 %v2444, 3
      %v2453 = vpop.permute.xlu0 %2452
      %vm2454 = vcmask 23552
      %v2455 = vsel %vm2454, %v2449, %v2451
      %v2456 = vsel %vm2454, %v2451, %v2453
      %v2459 = vadd.f32 %v2436, %v2455
      %v2460 = vadd.f32 %v2437, %v2456
      %2461 = vset.pattern.permute.xlu0 78
      %2462 = vperm.xlu0 %2461, %v1226
      %v2463 = vpop.permute.xlu0 %2462
      %v2465 = vmul.f32 %v2463, %v1229
      %v2466 = vmul.f32 %v2463, %v1230
      %v2467 = vmul.f32 %v2463, %v1231
      %2471 = vrot.lane.b32.xlu0 %v2465, 2
      %v2472 = vpop.permute.xlu0 %2471
      %2473 = vrot.lane.b32.xlu0 %v2466, 2
      %v2474 = vpop.permute.xlu0 %2473
      %2475 = vrot.lane.b32.xlu0 %v2467, 2
      %v2476 = vpop.permute.xlu0 %2475
      %vm2477 = vcmask 15360
      %v2478 = vsel %vm2477, %v2472, %v2474
      %v2479 = vsel %vm2477, %v2474, %v2476
      %v2482 = vadd.f32 %v2459, %v2478
      %v2483 = vadd.f32 %v2460, %v2479
      %2484 = vset.pattern.permute.xlu0 79
      %2485 = vperm.xlu0 %2484, %v1226
      %v2486 = vpop.permute.xlu0 %2485
      %v2488 = vmul.f32 %v2486, %v1229
      %v2489 = vmul.f32 %v2486, %v1230
      %v2490 = vmul.f32 %v2486, %v1231
      %2494 = vrot.lane.b32.xlu0 %v2488, 1
      %v2495 = vpop.permute.xlu0 %2494
      %2496 = vrot.lane.b32.xlu0 %v2489, 1
      %v2497 = vpop.permute.xlu0 %2496
      %2498 = vrot.lane.b32.xlu0 %v2490, 1
      %v2499 = vpop.permute.xlu0 %2498
      %vm2500 = vcmask 7168
      %v2501 = vsel %vm2500, %v2495, %v2497
      %v2502 = vsel %vm2500, %v2497, %v2499
      %v2505 = vadd.f32 %v2482, %v2501
      %v2506 = vadd.f32 %v2483, %v2502
      %2507 = vset.pattern.permute.xlu0 84
      %2508 = vperm.xlu0 %2507, %v1226
      %v2509 = vpop.permute.xlu0 %2508
      %v2511 = vmul.f32 %v2509, %v1230
      %v2512 = vmul.f32 %v2509, %v1231
      %v2513 = vmul.f32 %v2509, %v1232
      %2517 = vrot.lane.b32.xlu0 %v2511, 116
      %v2518 = vpop.permute.xlu0 %2517
      %2519 = vrot.lane.b32.xlu0 %v2512, 116
      %v2520 = vpop.permute.xlu0 %2519
      %2521 = vrot.lane.b32.xlu0 %v2513, 116
      %v2522 = vpop.permute.xlu0 %2521
      %vm2523 = vcmask 949248
      %v2524 = vsel %vm2523, %v2518, %v2520
      %v2525 = vsel %vm2523, %v2520, %v2522
      %v2528 = vadd.f32 %v2505, %v2524
      %v2529 = vadd.f32 %v2506, %v2525
      %2530 = vset.pattern.permute.xlu0 85
      %2531 = vperm.xlu0 %2530, %v1226
      %v2532 = vpop.permute.xlu0 %2531
      %v2534 = vmul.f32 %v2532, %v1230
      %v2535 = vmul.f32 %v2532, %v1231
      %v2536 = vmul.f32 %v2532, %v1232
      %2540 = vrot.lane.b32.xlu0 %v2534, 115
      %v2541 = vpop.permute.xlu0 %2540
      %2542 = vrot.lane.b32.xlu0 %v2535, 115
      %v2543 = vpop.permute.xlu0 %2542
      %2544 = vrot.lane.b32.xlu0 %v2536, 115
      %v2545 = vpop.permute.xlu0 %2544
      %vm2546 = vcmask 941056
      %v2547 = vsel %vm2546, %v2541, %v2543
      %v2548 = vsel %vm2546, %v2543, %v2545
      %v2551 = vadd.f32 %v2528, %v2547
      %v2552 = vadd.f32 %v2529, %v2548
      %2553 = vset.pattern.permute.xlu0 86
      %2554 = vperm.xlu0 %2553, %v1226
      %v2555 = vpop.permute.xlu0 %2554
      %v2557 = vmul.f32 %v2555, %v1230
      %v2558 = vmul.f32 %v2555, %v1231
      %v2559 = vmul.f32 %v2555, %v1232
      %2563 = vrot.lane.b32.xlu0 %v2557, 114
      %v2564 = vpop.permute.xlu0 %2563
      %2565 = vrot.lane.b32.xlu0 %v2558, 114
      %v2566 = vpop.permute.xlu0 %2565
      %2567 = vrot.lane.b32.xlu0 %v2559, 114
      %v2568 = vpop.permute.xlu0 %2567
      %vm2569 = vcmask 932864
      %v2570 = vsel %vm2569, %v2564, %v2566
      %v2571 = vsel %vm2569, %v2566, %v2568
      %v2574 = vadd.f32 %v2551, %v2570
      %v2575 = vadd.f32 %v2552, %v2571
      %2576 = vset.pattern.permute.xlu0 87
      %2577 = vperm.xlu0 %2576, %v1226
      %v2578 = vpop.permute.xlu0 %2577
      %v2580 = vmul.f32 %v2578, %v1230
      %v2581 = vmul.f32 %v2578, %v1231
      %v2582 = vmul.f32 %v2578, %v1232
      %2586 = vrot.lane.b32.xlu0 %v2580, 113
      %v2587 = vpop.permute.xlu0 %2586
      %2588 = vrot.lane.b32.xlu0 %v2581, 113
      %v2589 = vpop.permute.xlu0 %2588
      %2590 = vrot.lane.b32.xlu0 %v2582, 113
      %v2591 = vpop.permute.xlu0 %2590
      %vm2592 = vcmask 924672
      %v2593 = vsel %vm2592, %v2587, %v2589
      %v2594 = vsel %vm2592, %v2589, %v2591
      %v2597 = vadd.f32 %v2574, %v2593
      %v2598 = vadd.f32 %v2575, %v2594
      %2599 = vset.pattern.permute.xlu0 88
      %2600 = vperm.xlu0 %2599, %v1226
      %v2601 = vpop.permute.xlu0 %2600
      %v2603 = vmul.f32 %v2601, %v1230
      %v2604 = vmul.f32 %v2601, %v1231
      %v2605 = vmul.f32 %v2601, %v1232
      %2609 = vrot.lane.b32.xlu0 %v2603, 112
      %v2610 = vpop.permute.xlu0 %2609
      %2611 = vrot.lane.b32.xlu0 %v2604, 112
      %v2612 = vpop.permute.xlu0 %2611
      %2613 = vrot.lane.b32.xlu0 %v2605, 112
      %v2614 = vpop.permute.xlu0 %2613
      %vm2615 = vcmask 916480
      %v2616 = vsel %vm2615, %v2610, %v2612
      %v2617 = vsel %vm2615, %v2612, %v2614
      %v2620 = vadd.f32 %v2597, %v2616
      %v2621 = vadd.f32 %v2598, %v2617
      %2622 = vset.pattern.permute.xlu0 89
      %2623 = vperm.xlu0 %2622, %v1226
      %v2624 = vpop.permute.xlu0 %2623
      %v2626 = vmul.f32 %v2624, %v1230
      %v2627 = vmul.f32 %v2624, %v1231
      %v2628 = vmul.f32 %v2624, %v1232
      %2632 = vrot.lane.b32.xlu0 %v2626, 111
      %v2633 = vpop.permute.xlu0 %2632
      %2634 = vrot.lane.b32.xlu0 %v2627, 111
      %v2635 = vpop.permute.xlu0 %2634
      %2636 = vrot.lane.b32.xlu0 %v2628, 111
      %v2637 = vpop.permute.xlu0 %2636
      %vm2638 = vcmask 908288
      %v2639 = vsel %vm2638, %v2633, %v2635
      %v2640 = vsel %vm2638, %v2635, %v2637
      %v2643 = vadd.f32 %v2620, %v2639
      %v2644 = vadd.f32 %v2621, %v2640
      %2645 = vset.pattern.permute.xlu0 90
      %2646 = vperm.xlu0 %2645, %v1226
      %v2647 = vpop.permute.xlu0 %2646
      %v2649 = vmul.f32 %v2647, %v1230
      %v2650 = vmul.f32 %v2647, %v1231
      %v2651 = vmul.f32 %v2647, %v1232
      %2655 = vrot.lane.b32.xlu0 %v2649, 110
      %v2656 = vpop.permute.xlu0 %2655
      %2657 = vrot.lane.b32.xlu0 %v2650, 110
      %v2658 = vpop.permute.xlu0 %2657
      %2659 = vrot.lane.b32.xlu0 %v2651, 110
      %v2660 = vpop.permute.xlu0 %2659
      %vm2661 = vcmask 900096
      %v2662 = vsel %vm2661, %v2656, %v2658
      %v2663 = vsel %vm2661, %v2658, %v2660
      %v2666 = vadd.f32 %v2643, %v2662
      %v2667 = vadd.f32 %v2644, %v2663
      %2668 = vset.pattern.permute.xlu0 91
      %2669 = vperm.xlu0 %2668, %v1226
      %v2670 = vpop.permute.xlu0 %2669
      %v2672 = vmul.f32 %v2670, %v1230
      %v2673 = vmul.f32 %v2670, %v1231
      %v2674 = vmul.f32 %v2670, %v1232
      %2678 = vrot.lane.b32.xlu0 %v2672, 109
      %v2679 = vpop.permute.xlu0 %2678
      %2680 = vrot.lane.b32.xlu0 %v2673, 109
      %v2681 = vpop.permute.xlu0 %2680
      %2682 = vrot.lane.b32.xlu0 %v2674, 109
      %v2683 = vpop.permute.xlu0 %2682
      %vm2684 = vcmask 891904
      %v2685 = vsel %vm2684, %v2679, %v2681
      %v2686 = vsel %vm2684, %v2681, %v2683
      %v2689 = vadd.f32 %v2666, %v2685
      %v2690 = vadd.f32 %v2667, %v2686
      %v2691 = vrot.slane %v2689, 4
      %v2692 = vadd.f32 %v2689, %v2691
      %v2693 = vrot.slane %v2692, 2
      %v2694 = vadd.f32 %v2692, %v2693
      %v2695 = vrot.slane %v2694, 1
      %v2696 = vadd.f32 %v2694, %v2695
      %v2697 = vrot.slane %v2690, 4
      %v2698 = vadd.f32 %v2690, %v2697
      %v2699 = vrot.slane %v2698, 2
      %v2700 = vadd.f32 %v2698, %v2699
      %v2701 = vrot.slane %v2700, 1
      %v2702 = vadd.f32 %v2700, %v2701
      %s2703 = sld [smem:[#allocation8]]
      %v2704 = vstv %s2703
      %v2705 = vmul.f32 %v2696, %v2704
      %v2706 = vmul.f32 %v2702, %v2704
      %v2709 = vcombine.low %v2705, %v2706
      %v2711 = vunpack.c.l.s4 1966171168
      %v2712 = vunpack.c.0.s8 %v2711
      %v2713 = vlaneseq
      %v2714 = vshrl.u32 %v2713, 7
      %v2715 = vsub.s32 %v2712, %v2714
      %v2716 = vrot.slane %v2709, %v2715
      %v2718 = vunpack.c.l.s4 1966171168
      %v2719 = vunpack.c.0.s8 %v2718
      %v2720 = vlaneseq
      %v2721 = vshrl.u32 %v2720, 7
      %v2722 = vsub.s32 %v2719, %v2721
      %v2723 = vrot.slane %v2716, %v2722
      %v2725 = vlaneseq
      %vm2726 = vcmp.ge.s32.totalorder %v2725, 0
      %vm2727 = vcmp.lt.s32.totalorder %v2725, 256
      %vm2728 = vmand %vm2726, %vm2727
      %2729 = vst.msk [vmem:[%s297] sm:$0x3] %vm2728, %v2723
      %p2730 = scmp.lt.s32.totalorder %s19, 1
      %s2731 = scalar_select %p2730, %s19, 1
      %s2732 = smul.addr %s2731, 2
      %s2733 = scalar_lea.vmem %s7, %s2732
      // Predicated region
      $region49: #{net_forward.1} parent=47 // pred_check
        %p2734 = pneg %p194
      $region50: #{net_forward.1} parent=47 // pred_check_branch
        %2736 = sbr.rel (%p2734) target = $region52
      $region51: #{net_forward.1} parent=47 // pred_region
        _
      $region52: #{net_forward.1} parent=47 // pred_fallthru
        _
    $region48: #{net_forward.1} parent=5 // pred_fallthru
      _
    %p2737 = scmp.le.s32.totalorder 2, %s14
    // Predicated region
    $region53: #{net_forward.1} parent=5 // pred_check
      %p2738 = pneg %p2737
    $region54: #{net_forward.1} parent=5 // pred_check_branch
      %2740 = sbr.rel (%p2738) target = $region56
    $region55: #{net_forward.1} parent=5 // pred_region
      %s2741 = ssub.s32 %s14, 2
      // Predicated region
      $region57: #{net_forward.1} parent=55 // pred_check
        %p2742 = pneg %p200
      $region58: #{net_forward.1} parent=55 // pred_check_branch
        %2744 = sbr.rel (%p2742) target = $region60
      $region59: #{net_forward.1} parent=55 // pred_region
        %p2745 = scmp.lt.s32.totalorder %s20, 1
        %s2746 = scalar_select %p2745, %s20, 1
        %s2747 = smul.addr %s2746, 2
        %s2748 = scalar_lea.vmem %s7, %s2747
      $region60: #{net_forward.1} parent=55 // pred_fallthru
        _
    $region56: #{net_forward.1} parent=5 // pred_fallthru
      _
  $region6: #{net_forward.1} parent=0 // loop_footer
    %s18 = sadd.s32 1, %s14
  $region7: #{net_forward.1} parent=0 // loop_footer_branch
    %13 = sbr.rel target = $region3
  $region8: #{net_forward.1} parent=0 // loop_exit
    _

</llo_original>
